<compile_context>
chip_gen: v7x
topology: tpu7x:2x2x1
jax: 0.10.0
libtpu: 0.0.40
codegen_flags: <defaults>
</compile_context>

<pallas_src>
import functools

import jax
import jax.numpy as jnp
from jax.experimental import pallas as pl
from jax.experimental.pallas import tpu as pltpu  # noqa: F401  (kept for TPU-specific knobs if shapes grow)

CP = 128   # lane-padded channel width kept through the conv trunk
LP = 128   # lane-padded latent width


# ----------------------------------------------------------------------------
# Pallas kernels
# ----------------------------------------------------------------------------
def _mm_bias_act_kernel(x_ref, w_ref, b_ref, o_ref, *, act):
    """Single-tile matmul (bf16 operands, f32 MXU accumulation) + bias + act.
    All operands fit in VMEM at these shapes, so there is no K grid, no
    accumulator scratch and no pl.when gating."""
    acc = jnp.dot(x_ref[...], w_ref[...], preferred_element_type=jnp.float32)
    acc = acc + b_ref[...]
    if act == "relu":
        acc = jnp.maximum(acc, 0.0)
    elif act == "sigmoid":
        acc = jax.nn.sigmoid(acc)
    o_ref[...] = acc.astype(o_ref.dtype)


def matmul_bias_act(x, w, b, act, out_dtype):
    """x: [M, K] bf16, w: [K, N] bf16 (pre-packed, lane-dense), b: [1, N] f32."""
    M, K = x.shape
    K2, N = w.shape
    assert K == K2 and b.shape == (1, N)
    # TODO(synk): fall back to an (M, N, K)-tiled accumulator kernel if the
    # operands ever outgrow a single VMEM tile (never the case at these shapes).
    assert (M * K + K * N) * 2 + (M + 1) * N * 4 < 8 * 1024 * 1024
    return pl.pallas_call(
        functools.partial(_mm_bias_act_kernel, act=act),
        out_shape=jax.ShapeDtypeStruct((M, N), out_dtype),
    )(x, w, b)


def _heads_decode_kernel(feat_ref, wh_ref, bh_ref, eps_ref, wd_ref, bd_ref,
                         o_ref):
    """[mu | logvar] heads + reparameterize + decoder fc, fused in one body.

    wh packs the mu head in lanes [0, LP) and the logvar head in [LP, 2*LP).
    Padded lanes of both heads are zero, eps is zero-padded, and the padded
    rows of wd are zero, so padded latent lanes cannot leak into the output.
    """
    acc = jnp.dot(feat_ref[...], wh_ref[...],
                  preferred_element_type=jnp.float32) + bh_ref[...]
    mu = acc[:, :LP]
    logvar = acc[:, LP:]
    z = mu + jnp.exp(0.5 * logvar) * eps_ref[...]
    d = jnp.dot(z.astype(jnp.bfloat16), wd_ref[...],
                preferred_element_type=jnp.float32) + bd_ref[...]
    o_ref[...] = d.astype(o_ref.dtype)


def heads_decode(feat, w_heads, b_heads, eps, w_dec, b_dec):
    B = feat.shape[0]
    return pl.pallas_call(
        _heads_decode_kernel,
        out_shape=jax.ShapeDtypeStruct((B, w_dec.shape[1]), jnp.bfloat16),
    )(feat, w_heads, b_heads, eps, w_dec, b_dec)


# ----------------------------------------------------------------------------
# Conv / ConvTranspose wrappers (NHWC patch glue fused by jit, matmul in Pallas)
# ----------------------------------------------------------------------------
def conv2d_nhwc(x, w_packed, b_packed):
    """3x3 / stride-2 / pad-1 Conv2d + ReLU on an NHWC bf16 input.
    w_packed rows follow the im2col patch order (tap * C_in_eff + c_in)."""
    # TODO(synk): fuse the whole trunk into one VMEM-resident pallas_call and
    # build the 9 shifted windows by slicing a padded VMEM tile in-kernel; at
    # these shapes jit already fuses the pad/slices/stack into one fusion.
    B, H, W_, C = x.shape
    Ho, Wo = (H + 2 - 3) // 2 + 1, (W_ + 2 - 3) // 2 + 1
    xp = jnp.pad(x, ((0, 0), (1, 1), (1, 1), (0, 0)))
    cols = [xp[:, ky:ky + 2 * Ho:2, kx:kx + 2 * Wo:2, :]
            for ky in range(3) for kx in range(3)]
    patches = jnp.stack(cols, axis=3).reshape(B * Ho * Wo, 9 * C)
    out = matmul_bias_act(patches, w_packed, b_packed, act="relu",
                          out_dtype=jnp.bfloat16)
    return out.reshape(B, Ho, Wo, w_packed.shape[1])


def conv_transpose2d_nhwc(x, w_packed, b_packed, act, out_dtype):
    """3x3 / stride-2 / pad-1 / output_pad-1 ConvTranspose2d on NHWC input.
    Sub-pixel decomposition: the 4 output parities come from a 2x2-tap matmul
    on the UN-dilated input (kernel index k = o - 2*i + 1) and are then
    pixel-shuffled -- no 75%-zero dilated im2col."""
    B, H, W_, C = x.shape
    xp = jnp.pad(x, ((0, 0), (0, 1), (0, 1), (0, 0)))
    cols = [xp[:, ty:ty + H, tx:tx + W_, :] for ty in range(2) for tx in range(2)]
    patches = jnp.stack(cols, axis=3).reshape(B * H * W_, 4 * C)
    out = matmul_bias_act(patches, w_packed, b_packed, act=act,
                          out_dtype=out_dtype)                # (B*H*W, 4*CPo)
    CPo = w_packed.shape[1] // 4
    out = out.reshape(B, H, W_, 2, 2, CPo).transpose(0, 1, 3, 2, 4, 5)
    return out.reshape(B, 2 * H, 2 * W_, CPo)                 # pixel shuffle


# ----------------------------------------------------------------------------
# Init-time weight packing (runs once; nothing here appears in the forward)
# ----------------------------------------------------------------------------
def pack_conv(w, b, c_in_eff):
    """w: (C_out, C_in, 3, 3) PyTorch Conv2d layout -> (9*c_in_eff, CP) bf16."""
    C_out, C_in, KH, KW = w.shape
    wt = jnp.transpose(w, (2, 3, 1, 0))                       # (ky, kx, cin, cout)
    wt = jnp.pad(wt, ((0, 0), (0, 0), (0, c_in_eff - C_in), (0, CP - C_out)))
    w_packed = wt.reshape(KH * KW * c_in_eff, CP).astype(jnp.bfloat16)
    b_packed = jnp.pad(b, (0, CP - C_out)).reshape(1, CP).astype(jnp.float32)
    return w_packed, b_packed


def pack_conv_transpose(w, b):
    """w: (C_in, C_out, 3, 3) PyTorch ConvTranspose2d layout -> combined
    sub-pixel weight (4*CP, 4*CP): rows = (tap_y, tap_x, c_in), cols =
    (parity_y, parity_x, c_out). Mapping derived from k = o - 2*i + 1 with
    stride 2, padding 1, output_padding 1."""
    C_in, C_out, KH, KW = w.shape
    assert (KH, KW) == (3, 3)
    wt = jnp.transpose(w, (2, 3, 0, 1))                       # (ky, kx, cin, cout)
    wz = jnp.zeros((2, 2, CP, 2, 2, CP), jnp.float32)

    def put(wz, ty, tx, dy, dx, ky, kx):
        return wz.at[ty, tx, :C_in, dy, dx, :C_out].set(wt[ky, kx])

    wz = put(wz, 0, 0, 0, 0, 1, 1)        # parity (0,0)
    wz = put(wz, 0, 0, 0, 1, 1, 2)        # parity (0,1)
    wz = put(wz, 0, 1, 0, 1, 1, 0)
    wz = put(wz, 0, 0, 1, 0, 2, 1)        # parity (1,0)
    wz = put(wz, 1, 0, 1, 0, 0, 1)
    wz = put(wz, 0, 0, 1, 1, 2, 2)        # parity (1,1)
    wz = put(wz, 0, 1, 1, 1, 2, 0)
    wz = put(wz, 1, 0, 1, 1, 0, 2)
    wz = put(wz, 1, 1, 1, 1, 0, 0)
    w_packed = wz.reshape(4 * CP, 4 * CP).astype(jnp.bfloat16)
    b_packed = jnp.zeros((2, 2, CP), jnp.float32).at[:, :, :C_out].set(b)
    return w_packed, b_packed.reshape(1, 4 * CP)


def pack_heads(mu_w, mu_b, lv_w, lv_b, c_last, fh, fw):
    """Heads stored [h_dim, latent] with h_dim in PyTorch NCHW-Flatten order;
    rows are permuted to the NHWC, CP-padded feature order the kernel sees."""
    latent = mu_w.shape[1]

    def perm(wm):
        w4 = wm.reshape(c_last, fh, fw, latent).transpose(1, 2, 0, 3)
        w4 = jnp.pad(w4, ((0, 0), (0, 0), (0, CP - c_last), (0, LP - latent)))
        return w4.reshape(fh * fw * CP, LP)

    w_heads = jnp.concatenate([perm(mu_w), perm(lv_w)], axis=1).astype(jnp.bfloat16)
    b_heads = jnp.zeros((1, 2 * LP), jnp.float32)
    b_heads = b_heads.at[0, :latent].set(mu_b).at[0, LP:LP + latent].set(lv_b)
    return w_heads, b_heads


def pack_dec_fc(w, b, c_last, fh, fw):
    """Decoder fc stored [latent, h_dim]; columns are permuted so the kernel
    output is already the Review()-ed feature in NHWC, CP-padded order."""
    latent = w.shape[0]
    w4 = w.reshape(latent, c_last, fh, fw).transpose(0, 2, 3, 1)
    w4 = jnp.pad(w4, ((0, LP - latent), (0, 0), (0, 0), (0, CP - c_last)))
    w_dec = w4.reshape(LP, fh * fw * CP).astype(jnp.bfloat16)
    b4 = jnp.pad(b.reshape(c_last, fh, fw).transpose(1, 2, 0),
                 ((0, 0), (0, 0), (0, CP - c_last)))
    return w_dec, b4.reshape(1, fh * fw * CP).astype(jnp.float32)


# ----------------------------------------------------------------------------
# VAE: deterministic parameter construction + forward
# ----------------------------------------------------------------------------
def conv_out_size(s, kernel=3, stride=2, pad=1):
    return (s + 2 * pad - kernel) // stride + 1


def init_vae_params(key, in_channels, hidden_channels, latent_dim, H, W):
    """Generates random weights in the PyTorch layouts and pre-packs them once
    into the lane-dense bf16 matrices the Pallas kernels consume."""
    scale = 0.1
    keys = iter(jax.random.split(key, 64))

    def nrm(shape):
        return (scale * jax.random.normal(next(keys), shape)).astype(jnp.float32)

    params = {"enc": [], "dec_t": []}

    c, h, w = in_channels, H, W
    c_in_eff = in_channels            # layer-0 patches use the raw input channels
    for hc in hidden_channels:
        wc, bc = nrm((hc, c, 3, 3)), nrm((hc,))
        params["enc"].append(pack_conv(wc, bc, c_in_eff))
        c, c_in_eff = hc, CP          # later layers see CP-padded activations
        h, w = conv_out_size(h), conv_out_size(w)

    c_last, fh, fw = hidden_channels[-1], h, w
    h_dim = c_last * fh * fw

    params["w_heads"], params["b_heads"] = pack_heads(
        nrm((h_dim, latent_dim)), nrm((latent_dim,)),
        nrm((h_dim, latent_dim)), nrm((latent_dim,)), c_last, fh, fw)
    params["w_dec"], params["b_dec"] = pack_dec_fc(
        nrm((latent_dim, h_dim)), nrm((h_dim,)), c_last, fh, fw)

    rev = list(reversed(hidden_channels))
    chans = rev + [in_channels]       # ConvT chain: rev[0]->rev[1]->...->in_ch
    for ci, co in zip(chans[:-1], chans[1:]):
        params["dec_t"].append(pack_conv_transpose(nrm((ci, co, 3, 3)),
                                                   nrm((co,))))
    return params


def vae_forward(params, x, eps):
    """x: NCHW f32; eps: [B, latent_dim] f32 (external for determinism,
    replacing torch.randn_like inside reparameterize)."""
    B, Cin = x.shape[0], x.shape[1]
    latent = eps.shape[1]

    h = x.transpose(0, 2, 3, 1).astype(jnp.bfloat16)       # NCHW -> NHWC boundary
    for (w, b) in params["enc"]:
        h = conv2d_nhwc(h, w, b)
    _, fh, fw, _ = h.shape

    feat = h.reshape(B, fh * fw * CP)                      # flatten order baked into w_heads
    eps_p = jnp.pad(eps, ((0, 0), (0, LP - latent)))       # zero pad -> padded z lanes are 0
    d = heads_decode(feat, params["w_heads"], params["b_heads"], eps_p,
                     params["w_dec"], params["b_dec"])
    d = d.reshape(B, fh, fw, CP)                           # Review(): NHWC, CP-padded

    n_t = len(params["dec_t"])
    for idx, (w, b) in enumerate(params["dec_t"]):
        last = idx == n_t - 1
        d = conv_transpose2d_nhwc(d, w, b,
                                  act="sigmoid" if last else "relu",
                                  out_dtype=jnp.float32 if last else jnp.bfloat16)
    return d[..., :Cin].transpose(0, 3, 1, 2)              # NHWC -> NCHW boundary


if __name__ == "__main__":
    key = jax.random.PRNGKey(0)
    k_param, k_x, k_eps = jax.random.split(key, 3)

    # batch=2, channel=3, 16x16 input, hidden_channels=[8, 16], latent_dim=8
    # -> h_dim = 16*4*4 = 256
    B, C, H, W = 2, 3, 16, 16
    hidden_channels = (8, 16)
    latent_dim = 8

    params = init_vae_params(k_param, C, hidden_channels, latent_dim, H, W)
    x = jax.random.uniform(k_x, (B, C, H, W), dtype=jnp.float32)
    eps = jax.random.normal(k_eps, (B, latent_dim), dtype=jnp.float32)

    fwd = jax.jit(vae_forward)
    restore = jax.block_until_ready(fwd(params, x, eps))

    assert restore.shape == (B, C, H, W), restore.shape
    assert bool(jnp.all(jnp.isfinite(restore)))
    # final layer is sigmoid -> outputs in (0, 1) (smoke test)
    assert bool(jnp.all((restore > 0.0) & (restore < 1.0)))
    print("KERNEL_OK")
</pallas_src>

<mosaic_0001>
module attributes {stable_mosaic.version = 11 : i64} {
  func.func @_mm_bias_act_kernel(%arg0: memref<128x27xbf16, #tpu.memory_space<vmem>>, %arg1: memref<27x128xbf16, #tpu.memory_space<vmem>>, %arg2: memref<1x128xf32, #tpu.memory_space<vmem>>, %arg3: memref<128x128xbf16, #tpu.memory_space<vmem>>) attributes {dimension_semantics = [], scalar_prefetch = 0 : i64, scratch_operands = 0 : i64, tpu.core_type = #tpu.core_type<tc>} {
    %c0 = arith.constant 0 : index
    %c0_0 = arith.constant 0 : index
    %0 = vector.load %arg0[%c0, %c0_0] : memref<128x27xbf16, #tpu.memory_space<vmem>>, vector<128x27xbf16>
    %c0_1 = arith.constant 0 : index
    %c0_2 = arith.constant 0 : index
    %1 = vector.load %arg1[%c0_1, %c0_2] : memref<27x128xbf16, #tpu.memory_space<vmem>>, vector<27x128xbf16>
    %cst = arith.constant dense<0.000000e+00> : vector<128x128xf32>
    %2 = tpu.matmul %0, %1, %cst {dimension_numbers = #tpu.dot_dimension_numbers<[1], [0], [0], [1], [0, 0, 1, 1], [], []>} : vector<128x27xbf16>, vector<27x128xbf16>, vector<128x128xf32> -> vector<128x128xf32>
    %c0_3 = arith.constant 0 : index
    %c0_4 = arith.constant 0 : index
    %3 = vector.load %arg2[%c0_3, %c0_4] : memref<1x128xf32, #tpu.memory_space<vmem>>, vector<1x128xf32>
    %4 = vector.broadcast %3 : vector<1x128xf32> to vector<128x128xf32>
    %5 = arith.addf %2, %4 : vector<128x128xf32>
    %cst_5 = arith.constant 0.000000e+00 : f32
    %6 = vector.broadcast %cst_5 : f32 to vector<128x128xf32>
    %7 = arith.maximumf %5, %6 : vector<128x128xf32>
    %8 = arith.truncf %7 : vector<128x128xf32> to vector<128x128xbf16>
    %c0_6 = arith.constant 0 : index
    %c0_7 = arith.constant 0 : index
    %9 = vector.load %arg3[%c0_6, %c0_7] : memref<128x128xbf16, #tpu.memory_space<vmem>>, vector<128x128xbf16>
    tpu.vector_store %arg3[%c0_6, %c0_7], %8 {strides = array<i32>} : memref<128x128xbf16, #tpu.memory_space<vmem>>, vector<128x128xbf16>,
    return
  }
}

module attributes {stable_mosaic.version = 11 : i64} {
  func.func @_mm_bias_act_kernel(%arg0: memref<32x1152xbf16, #tpu.memory_space<vmem>>, %arg1: memref<1152x128xbf16, #tpu.memory_space<vmem>>, %arg2: memref<1x128xf32, #tpu.memory_space<vmem>>, %arg3: memref<32x128xbf16, #tpu.memory_space<vmem>>) attributes {dimension_semantics = [], scalar_prefetch = 0 : i64, scratch_operands = 0 : i64, tpu.core_type = #tpu.core_type<tc>} {
    %c0 = arith.constant 0 : index
    %c0_0 = arith.constant 0 : index
    %0 = vector.load %arg0[%c0, %c0_0] : memref<32x1152xbf16, #tpu.memory_space<vmem>>, vector<32x1152xbf16>
    %c0_1 = arith.constant 0 : index
    %c0_2 = arith.constant 0 : index
    %1 = vector.load %arg1[%c0_1, %c0_2] : memref<1152x128xbf16, #tpu.memory_space<vmem>>, vector<1152x128xbf16>
    %cst = arith.constant dense<0.000000e+00> : vector<32x128xf32>
    %2 = tpu.matmul %0, %1, %cst {dimension_numbers = #tpu.dot_dimension_numbers<[1], [0], [0], [1], [0, 0, 1, 1], [], []>} : vector<32x1152xbf16>, vector<1152x128xbf16>, vector<32x128xf32> -> vector<32x128xf32>
    %c0_3 = arith.constant 0 : index
    %c0_4 = arith.constant 0 : index
    %3 = vector.load %arg2[%c0_3, %c0_4] : memref<1x128xf32, #tpu.memory_space<vmem>>, vector<1x128xf32>
    %4 = vector.broadcast %3 : vector<1x128xf32> to vector<32x128xf32>
    %5 = arith.addf %2, %4 : vector<32x128xf32>
    %cst_5 = arith.constant 0.000000e+00 : f32
    %6 = vector.broadcast %cst_5 : f32 to vector<32x128xf32>
    %7 = arith.maximumf %5, %6 : vector<32x128xf32>
    %8 = arith.truncf %7 : vector<32x128xf32> to vector<32x128xbf16>
    %c0_6 = arith.constant 0 : index
    %c0_7 = arith.constant 0 : index
    %9 = vector.load %arg3[%c0_6, %c0_7] : memref<32x128xbf16, #tpu.memory_space<vmem>>, vector<32x128xbf16>
    tpu.vector_store %arg3[%c0_6, %c0_7], %8 {strides = array<i32>} : memref<32x128xbf16, #tpu.memory_space<vmem>>, vector<32x128xbf16>,
    return
  }
}

module attributes {stable_mosaic.version = 11 : i64} {
  func.func @_heads_decode_kernel(%arg0: memref<2x2048xbf16, #tpu.memory_space<vmem>>, %arg1: memref<2048x256xbf16, #tpu.memory_space<vmem>>, %arg2: memref<1x256xf32, #tpu.memory_space<vmem>>, %arg3: memref<2x128xf32, #tpu.memory_space<vmem>>, %arg4: memref<128x2048xbf16, #tpu.memory_space<vmem>>, %arg5: memref<1x2048xf32, #tpu.memory_space<vmem>>, %arg6: memref<2x2048xbf16, #tpu.memory_space<vmem>>) attributes {dimension_semantics = [], scalar_prefetch = 0 : i64, scratch_operands = 0 : i64, tpu.core_type = #tpu.core_type<tc>} {
    %c0 = arith.constant 0 : index
    %c0_0 = arith.constant 0 : index
    %0 = vector.load %arg0[%c0, %c0_0] : memref<2x2048xbf16, #tpu.memory_space<vmem>>, vector<2x2048xbf16>
    %c0_1 = arith.constant 0 : index
    %c0_2 = arith.constant 0 : index
    %1 = vector.load %arg1[%c0_1, %c0_2] : memref<2048x256xbf16, #tpu.memory_space<vmem>>, vector<2048x256xbf16>
    %cst = arith.constant dense<0.000000e+00> : vector<2x256xf32>
    %2 = tpu.matmul %0, %1, %cst {dimension_numbers = #tpu.dot_dimension_numbers<[1], [0], [0], [1], [0, 0, 1, 1], [], []>} : vector<2x2048xbf16>, vector<2048x256xbf16>, vector<2x256xf32> -> vector<2x256xf32>
    %c0_3 = arith.constant 0 : index
    %c0_4 = arith.constant 0 : index
    %3 = vector.load %arg2[%c0_3, %c0_4] : memref<1x256xf32, #tpu.memory_space<vmem>>, vector<1x256xf32>
    %4 = vector.broadcast %3 : vector<1x256xf32> to vector<2x256xf32>
    %5 = arith.addf %2, %4 : vector<2x256xf32>
    %6 = vector.extract_strided_slice %5 {offsets = [0, 0], sizes = [2, 128], strides = [1, 1]} : vector<2x256xf32> to vector<2x128xf32>
    %7 = vector.extract_strided_slice %5 {offsets = [0, 128], sizes = [2, 128], strides = [1, 1]} : vector<2x256xf32> to vector<2x128xf32>
    %cst_5 = arith.constant 5.000000e-01 : f32
    %8 = vector.broadcast %cst_5 : f32 to vector<2x128xf32>
    %9 = arith.mulf %8, %7 : vector<2x128xf32>
    %10 = math.exp %9 : vector<2x128xf32>
    %c0_6 = arith.constant 0 : index
    %c0_7 = arith.constant 0 : index
    %11 = vector.load %arg3[%c0_6, %c0_7] : memref<2x128xf32, #tpu.memory_space<vmem>>, vector<2x128xf32>
    %12 = arith.mulf %10, %11 : vector<2x128xf32>
    %13 = arith.addf %6, %12 : vector<2x128xf32>
    %14 = arith.truncf %13 : vector<2x128xf32> to vector<2x128xbf16>
    %c0_8 = arith.constant 0 : index
    %c0_9 = arith.constant 0 : index
    %15 = vector.load %arg4[%c0_8, %c0_9] : memref<128x2048xbf16, #tpu.memory_space<vmem>>, vector<128x2048xbf16>
    %cst_10 = arith.constant dense<0.000000e+00> : vector<2x2048xf32>
    %16 = tpu.matmul %14, %15, %cst_10 {dimension_numbers = #tpu.dot_dimension_numbers<[1], [0], [0], [1], [0, 0, 1, 1], [], []>} : vector<2x128xbf16>, vector<128x2048xbf16>, vector<2x2048xf32> -> vector<2x2048xf32>
    %c0_11 = arith.constant 0 : index
    %c0_12 = arith.constant 0 : index
    %17 = vector.load %arg5[%c0_11, %c0_12] : memref<1x2048xf32, #tpu.memory_space<vmem>>, vector<1x2048xf32>
    %18 = vector.broadcast %17 : vector<1x2048xf32> to vector<2x2048xf32>
    %19 = arith.addf %16, %18 : vector<2x2048xf32>
    %20 = arith.truncf %19 : vector<2x2048xf32> to vector<2x2048xbf16>
    %c0_13 = arith.constant 0 : index
    %c0_14 = arith.constant 0 : index
    %21 = vector.load %arg6[%c0_13, %c0_14] : memref<2x2048xbf16, #tpu.memory_space<vmem>>, vector<2x2048xbf16>
    tpu.vector_store %arg6[%c0_13, %c0_14], %20 {strides = array<i32>} : memref<2x2048xbf16, #tpu.memory_space<vmem>>, vector<2x2048xbf16>,
    return
  }
}

module attributes {stable_mosaic.version = 11 : i64} {
  func.func @_mm_bias_act_kernel(%arg0: memref<32x512xbf16, #tpu.memory_space<vmem>>, %arg1: memref<512x512xbf16, #tpu.memory_space<vmem>>, %arg2: memref<1x512xf32, #tpu.memory_space<vmem>>, %arg3: memref<32x512xbf16, #tpu.memory_space<vmem>>) attributes {dimension_semantics = [], scalar_prefetch = 0 : i64, scratch_operands = 0 : i64, tpu.core_type = #tpu.core_type<tc>} {
    %c0 = arith.constant 0 : index
    %c0_0 = arith.constant 0 : index
    %0 = vector.load %arg0[%c0, %c0_0] : memref<32x512xbf16, #tpu.memory_space<vmem>>, vector<32x512xbf16>
    %c0_1 = arith.constant 0 : index
    %c0_2 = arith.constant 0 : index
    %1 = vector.load %arg1[%c0_1, %c0_2] : memref<512x512xbf16, #tpu.memory_space<vmem>>, vector<512x512xbf16>
    %cst = arith.constant dense<0.000000e+00> : vector<32x512xf32>
    %2 = tpu.matmul %0, %1, %cst {dimension_numbers = #tpu.dot_dimension_numbers<[1], [0], [0], [1], [0, 0, 1, 1], [], []>} : vector<32x512xbf16>, vector<512x512xbf16>, vector<32x512xf32> -> vector<32x512xf32>
    %c0_3 = arith.constant 0 : index
    %c0_4 = arith.constant 0 : index
    %3 = vector.load %arg2[%c0_3, %c0_4] : memref<1x512xf32, #tpu.memory_space<vmem>>, vector<1x512xf32>
    %4 = vector.broadcast %3 : vector<1x512xf32> to vector<32x512xf32>
    %5 = arith.addf %2, %4 : vector<32x512xf32>
    %cst_5 = arith.constant 0.000000e+00 : f32
    %6 = vector.broadcast %cst_5 : f32 to vector<32x512xf32>
    %7 = arith.maximumf %5, %6 : vector<32x512xf32>
    %8 = arith.truncf %7 : vector<32x512xf32> to vector<32x512xbf16>
    %c0_6 = arith.constant 0 : index
    %c0_7 = arith.constant 0 : index
    %9 = vector.load %arg3[%c0_6, %c0_7] : memref<32x512xbf16, #tpu.memory_space<vmem>>, vector<32x512xbf16>
    tpu.vector_store %arg3[%c0_6, %c0_7], %8 {strides = array<i32>} : memref<32x512xbf16, #tpu.memory_space<vmem>>, vector<32x512xbf16>,
    return
  }
}

module attributes {stable_mosaic.version = 11 : i64} {
  func.func @_mm_bias_act_kernel(%arg0: memref<128x512xbf16, #tpu.memory_space<vmem>>, %arg1: memref<512x512xbf16, #tpu.memory_space<vmem>>, %arg2: memref<1x512xf32, #tpu.memory_space<vmem>>, %arg3: memref<128x512xf32, #tpu.memory_space<vmem>>) attributes {dimension_semantics = [], scalar_prefetch = 0 : i64, scratch_operands = 0 : i64, tpu.core_type = #tpu.core_type<tc>} {
    %c0 = arith.constant 0 : index
    %c0_0 = arith.constant 0 : index
    %0 = vector.load %arg0[%c0, %c0_0] : memref<128x512xbf16, #tpu.memory_space<vmem>>, vector<128x512xbf16>
    %c0_1 = arith.constant 0 : index
    %c0_2 = arith.constant 0 : index
    %1 = vector.load %arg1[%c0_1, %c0_2] : memref<512x512xbf16, #tpu.memory_space<vmem>>, vector<512x512xbf16>
    %cst = arith.constant dense<0.000000e+00> : vector<128x512xf32>
    %2 = tpu.matmul %0, %1, %cst {dimension_numbers = #tpu.dot_dimension_numbers<[1], [0], [0], [1], [0, 0, 1, 1], [], []>} : vector<128x512xbf16>, vector<512x512xbf16>, vector<128x512xf32> -> vector<128x512xf32>
    %c0_3 = arith.constant 0 : index
    %c0_4 = arith.constant 0 : index
    %3 = vector.load %arg2[%c0_3, %c0_4] : memref<1x512xf32, #tpu.memory_space<vmem>>, vector<1x512xf32>
    %4 = vector.broadcast %3 : vector<1x512xf32> to vector<128x512xf32>
    %5 = arith.addf %2, %4 : vector<128x512xf32>
    %6 = arith.negf %5 : vector<128x512xf32>
    %7 = math.exp %6 : vector<128x512xf32>
    %cst_5 = arith.constant 1.000000e+00 : f32
    %8 = vector.broadcast %cst_5 : f32 to vector<128x512xf32>
    %9 = arith.addf %8, %7 : vector<128x512xf32>
    %10 = arith.divf %8, %9 : vector<128x512xf32>
    %c0_6 = arith.constant 0 : index
    %c0_7 = arith.constant 0 : index
    %11 = vector.load %arg3[%c0_6, %c0_7] : memref<128x512xf32, #tpu.memory_space<vmem>>, vector<128x512xf32>
    tpu.vector_store %arg3[%c0_6, %c0_7], %10 {strides = array<i32>} : memref<128x512xf32, #tpu.memory_space<vmem>>, vector<128x512xf32>,
    return
  }
}

</mosaic_0001>

<llo_original>
// kernel: vae_forward.5
$region0: #{vae_forward.5}
  #allocation0 [shape = 'u32[]', space=smem, size = 0x4, offset = 0x4, fixed_abs, tag = 'smem constant byte address 0x4 - core index']
  #allocation1 [shape = 'u32[144,128]{1,0:T(1,128)}', space=vmem, size = 0x12000, scoped, tag = 'internal scratch']
  %s0 = inlined_call_operand.vmem [shape: bf16[128,27], index: 0, kind: input, shape index: {}]
  %s1 = inlined_call_operand.vmem [shape: bf16[27,128], index: 1, kind: input, shape index: {}]
  %s2 = inlined_call_operand.vmem [shape: f32[1,128], index: 2, kind: input, shape index: {}]
  %s3 = inlined_call_operand.vmem [shape: bf16[128,128], index: 3, kind: output, shape index: {}]
  %s4 = sld [smem:[#allocation0]]
  $region22: #{vae_forward.5} parent=0
    _
  %s6 = ssub.s32 1, %s4
  %s7 = scalar_select 0, %s6, %s4
  // Predicated region
  $region2: #{vae_forward.5} parent=0 // pred_check
    _
  $region3: #{vae_forward.5} parent=0 // pred_check_branch
    %9 = sbr.rel (0) target = $region5
  $region4: #{vae_forward.5} parent=0 // pred_region
    _
  $region5: #{vae_forward.5} parent=0 // pred_fallthru
    _
  // Predicated region
  $region6: #{vae_forward.5} parent=0 // pred_check
    _
  $region7: #{vae_forward.5} parent=0 // pred_check_branch
    %11 = sbr.rel (0) target = $region9
  $region8: #{vae_forward.5} parent=0 // pred_region
    _
  $region9: #{vae_forward.5} parent=0 // pred_fallthru
    _
  // Predicated region
  $region10: #{vae_forward.5} parent=0 // pred_check
    _
  $region11: #{vae_forward.5} parent=0 // pred_check_branch
    %13 = sbr.rel (0) target = $region13
  $region12: #{vae_forward.5} parent=0 // pred_region
    _
  $region13: #{vae_forward.5} parent=0 // pred_fallthru
    _
  %v15 = vld [vmem:[%s0] sm:$0xf]
  %v16 = vld [vmem:[%s0 + $0x4] sm:$0xf]
  %v17 = vld [vmem:[%s0 + $0x8] sm:$0xf]
  %v18 = vld [vmem:[%s0 + $0xc] sm:$0xf]
  %v19 = vld [vmem:[%s0 + $0x10] sm:$0xf]
  %v20 = vld [vmem:[%s0 + $0x14] sm:$0xf]
  %v21 = vld [vmem:[%s0 + $0x18] sm:$0xf]
  %v22 = vld [vmem:[%s0 + $0x1c] sm:$0xf]
  %v23 = vld [vmem:[%s0 + $0x20] sm:$0xf]
  %v24 = vld [vmem:[%s0 + $0x24] sm:$0xf]
  %v25 = vld [vmem:[%s0 + $0x28] sm:$0xf]
  %v26 = vld [vmem:[%s0 + $0x2c] sm:$0xf]
  %v27 = vld [vmem:[%s0 + $0x30] sm:$0xf]
  %v28 = vld [vmem:[%s0 + $0x34] sm:$0xf]
  %v29 = vld [vmem:[%s0 + $0x38] sm:$0xf]
  %v30 = vld [vmem:[%s0 + $0x3c] sm:$0xf]
  %v31 = vld [vmem:[%s1] sm:$0xf]
  %v32 = vld [vmem:[%s1 + $0x4] sm:$0xf]
  %v33 = vld [vmem:[%s1 + $0x8] sm:$0xf]
  %v34 = vld [vmem:[%s1 + $0xc] sm:$0x3]
  %v35 = vld [vmem:[%s2] sm:$0x1]
  %v37 = vlaneseq
  %v38 = vshrl.u32 %v37, 7
  %v39 = vsub.s32 0, %v38
  %v40 = vrot.slane %v35, %v39
  %v58 = vunpack.c.l.b16 %v15
  %v59 = vunpack.c.l.b16 %v16
  %v60 = vunpack.c.l.b16 %v17
  %v61 = vunpack.c.l.b16 %v18
  %v62 = vunpack.c.l.b16 %v19
  %v63 = vunpack.c.l.b16 %v20
  %v64 = vunpack.c.l.b16 %v21
  %v65 = vunpack.c.l.b16 %v22
  %v66 = vunpack.c.l.b16 %v23
  %v67 = vunpack.c.l.b16 %v24
  %v68 = vunpack.c.l.b16 %v25
  %v69 = vunpack.c.l.b16 %v26
  %v70 = vunpack.c.l.b16 %v27
  %v71 = vunpack.c.l.b16 %v28
  %v72 = vunpack.c.l.b16 %v29
  %v73 = vunpack.c.l.b16 %v30
  %v74 = vpack.c.b16 %v59, %v58
  %v75 = vpack.c.b16 %v61, %v60
  %v76 = vpack.c.b16 %v63, %v62
  %v77 = vpack.c.b16 %v65, %v64
  %v78 = vpack.c.b16 %v67, %v66
  %v79 = vpack.c.b16 %v69, %v68
  %v80 = vpack.c.b16 %v71, %v70
  %v81 = vpack.c.b16 %v73, %v72
  %v86 = vunpack.c.l.b16 %v31
  %v87 = vunpack.c.l.b16 %v32
  %v88 = vunpack.c.l.b16 %v33
  %v89 = vunpack.c.l.b16 %v34
  %v90 = vpack.c.b16 %v87, %v86
  %v91 = vpack.c.b16 %v89, %v88
  %vm93 = vcmask 220160
  %v95 = vsel %vm93, %v74, 0
  %v98 = vsel %vm93, %v75, 0
  %v101 = vsel %vm93, %v76, 0
  %v104 = vsel %vm93, %v77, 0
  %v107 = vsel %vm93, %v78, 0
  %v110 = vsel %vm93, %v79, 0
  %v113 = vsel %vm93, %v80, 0
  %v116 = vsel %vm93, %v81, 0
  %vm118 = vcmask 1044480
  %vm119 = vcmask 1045504
  %v120 = vsel %vm118, 4294967295, 65535
  %v121 = vsel %vm119, %v120, 0
  %v123 = vand.u32 %v91, %v121
  %125 = vmatprep.subr.bf16.mxu0 0
  %126 = vmatpush1.bf16.msra.mxu0 %v90
  %127 = vmatprep.subr.bf16.mxu0 0
  %128 = vmatpush1.bf16.msra.mxu0 %v123
  %129 = vmatprep.subr.bf16.mxu0 0
  %130 = vmatpush1.bf16.msra.mxu0 0
  %131 = vmatprep.subr.bf16.mxu0 0
  %132 = vmatpush1.bf16.msra.mxu0 0
  %133 = vmatprep.subr.bf16.mxu0 0
  %134 = vmatpush1.bf16.msra.mxu0 0
  %135 = vmatprep.subr.bf16.mxu0 0
  %136 = vmatpush1.bf16.msra.mxu0 0
  %137 = vmatprep.subr.bf16.mxu0 0
  %138 = vmatpush1.bf16.msra.mxu0 0
  %139 = vmatprep.subr.bf16.mxu0 0
  %140 = vmatpush1.bf16.msra.mxu0 0
  %141 = vmatprep.subr.bf16.mxu0 0
  %142 = vmatpush1.bf16.msra.mxu0 0
  %143 = vmatprep.subr.bf16.mxu0 0
  %144 = vmatpush1.bf16.msra.mxu0 0
  %145 = vmatprep.subr.bf16.mxu0 0
  %146 = vmatpush1.bf16.msra.mxu0 0
  %147 = vmatprep.subr.bf16.mxu0 0
  %148 = vmatpush1.bf16.msra.mxu0 0
  %149 = vmatprep.subr.bf16.mxu0 0
  %150 = vmatpush1.bf16.msra.mxu0 0
  %151 = vmatprep.subr.bf16.mxu0 0
  %152 = vmatpush1.bf16.msra.mxu0 0
  %153 = vmatprep.subr.bf16.mxu0 0
  %154 = vmatpush1.bf16.msra.mxu0 0
  %155 = vmatprep.subr.bf16.mxu0 0
  %156 = vmatpush1.bf16.msra.mxu0 0
  %157 = vmatprep.mubr.bf16.mxu0 0
  %158 = vmatmul.mubr.bf16.gmra.mrb[0].mxu0 %v95
  %v159 = vpop.f32.mrb[0].mxu0
  %v160 = vadd.f32 %v40, %v159
  %v161 = vpop.f32.mrb[0].mxu0
  %v162 = vpop.f32.mrb[0].mxu0
  %v163 = vadd.f32 %v40, %v162
  %v164 = vpop.f32.mrb[0].mxu0
  %165 = vmatprep.mubr.bf16.mxu0 0
  %166 = vmatmul.mubr.bf16.gmra.mrb[0].mxu0 %v98
  %v167 = vpop.f32.mrb[0].mxu0
  %v168 = vadd.f32 %v40, %v167
  %v169 = vpop.f32.mrb[0].mxu0
  %v170 = vpop.f32.mrb[0].mxu0
  %v171 = vadd.f32 %v40, %v170
  %v172 = vpop.f32.mrb[0].mxu0
  %173 = vmatprep.mubr.bf16.mxu0 0
  %174 = vmatmul.mubr.bf16.gmra.mrb[0].mxu0 %v101
  %v175 = vpop.f32.mrb[0].mxu0
  %v176 = vadd.f32 %v40, %v175
  %v177 = vpop.f32.mrb[0].mxu0
  %v178 = vpop.f32.mrb[0].mxu0
  %v179 = vadd.f32 %v40, %v178
  %v180 = vpop.f32.mrb[0].mxu0
  %181 = vmatprep.mubr.bf16.mxu0 0
  %182 = vmatmul.mubr.bf16.gmra.mrb[0].mxu0 %v104
  %v183 = vpop.f32.mrb[0].mxu0
  %v184 = vadd.f32 %v40, %v183
  %v185 = vpop.f32.mrb[0].mxu0
  %v186 = vpop.f32.mrb[0].mxu0
  %v187 = vadd.f32 %v40, %v186
  %v188 = vpop.f32.mrb[0].mxu0
  %189 = vmatprep.mubr.bf16.mxu0 0
  %190 = vmatmul.mubr.bf16.gmra.mrb[0].mxu0 %v107
  %v191 = vpop.f32.mrb[0].mxu0
  %v192 = vadd.f32 %v40, %v191
  %v193 = vpop.f32.mrb[0].mxu0
  %v194 = vpop.f32.mrb[0].mxu0
  %v195 = vadd.f32 %v40, %v194
  %v196 = vpop.f32.mrb[0].mxu0
  %197 = vmatprep.mubr.bf16.mxu0 0
  %198 = vmatmul.mubr.bf16.gmra.mrb[0].mxu0 %v110
  %v199 = vpop.f32.mrb[0].mxu0
  %v200 = vadd.f32 %v40, %v199
  %v201 = vpop.f32.mrb[0].mxu0
  %v202 = vpop.f32.mrb[0].mxu0
  %v203 = vadd.f32 %v40, %v202
  %v204 = vpop.f32.mrb[0].mxu0
  %205 = vmatprep.mubr.bf16.mxu0 0
  %206 = vmatmul.mubr.bf16.gmra.mrb[0].mxu0 %v113
  %v207 = vpop.f32.mrb[0].mxu0
  %v208 = vadd.f32 %v40, %v207
  %v209 = vpop.f32.mrb[0].mxu0
  %v210 = vpop.f32.mrb[0].mxu0
  %v211 = vadd.f32 %v40, %v210
  %v212 = vpop.f32.mrb[0].mxu0
  %213 = vmatprep.mubr.bf16.mxu0 0
  %214 = vmatmul.mubr.bf16.gmra.mrb[0].mxu0 %v116
  %v215 = vpop.f32.mrb[0].mxu0
  %v216 = vadd.f32 %v40, %v215
  %v217 = vpop.f32.mrb[0].mxu0
  %v218 = vpop.f32.mrb[0].mxu0
  %v219 = vadd.f32 %v40, %v218
  %v220 = vpop.f32.mrb[0].mxu0
  %221 = vdwg.mxu0
  %v222 = vmax.f32 %v160, 0.0
  %v223 = vmax.f32 %v163, 0.0
  %v224 = vmax.f32 %v168, 0.0
  %v225 = vmax.f32 %v171, 0.0
  %v226 = vmax.f32 %v176, 0.0
  %v227 = vmax.f32 %v179, 0.0
  %v228 = vmax.f32 %v184, 0.0
  %v229 = vmax.f32 %v187, 0.0
  %v230 = vmax.f32 %v192, 0.0
  %v231 = vmax.f32 %v195, 0.0
  %v232 = vmax.f32 %v200, 0.0
  %v233 = vmax.f32 %v203, 0.0
  %v234 = vmax.f32 %v208, 0.0
  %v235 = vmax.f32 %v211, 0.0
  %v236 = vmax.f32 %v216, 0.0
  %v237 = vmax.f32 %v219, 0.0
  %v238 = vpack.c.bf16 %v223, %v222
  %v239 = vpack.c.bf16 %v225, %v224
  %v240 = vpack.c.bf16 %v227, %v226
  %v241 = vpack.c.bf16 %v229, %v228
  %v242 = vpack.c.bf16 %v231, %v230
  %v243 = vpack.c.bf16 %v233, %v232
  %v244 = vpack.c.bf16 %v235, %v234
  %v245 = vpack.c.bf16 %v237, %v236
  %v254 = vunpack.c.l.b16 %v238
  %v255 = vunpack.c.h.b16 %v238
  %v256 = vunpack.c.l.b16 %v239
  %v257 = vunpack.c.h.b16 %v239
  %v258 = vunpack.c.l.b16 %v240
  %v259 = vunpack.c.h.b16 %v240
  %v260 = vunpack.c.l.b16 %v241
  %v261 = vunpack.c.h.b16 %v241
  %v262 = vunpack.c.l.b16 %v242
  %v263 = vunpack.c.h.b16 %v242
  %v264 = vunpack.c.l.b16 %v243
  %v265 = vunpack.c.h.b16 %v243
  %v266 = vunpack.c.l.b16 %v244
  %v267 = vunpack.c.h.b16 %v244
  %v268 = vunpack.c.l.b16 %v245
  %v269 = vunpack.c.h.b16 %v245
  %v270 = vpack.c.b16 %v254, %v254
  %v271 = vpack.c.b16 %v255, %v255
  %v272 = vpack.c.b16 %v256, %v256
  %v273 = vpack.c.b16 %v257, %v257
  %v274 = vpack.c.b16 %v258, %v258
  %v275 = vpack.c.b16 %v259, %v259
  %v276 = vpack.c.b16 %v260, %v260
  %v277 = vpack.c.b16 %v261, %v261
  %v278 = vpack.c.b16 %v262, %v262
  %v279 = vpack.c.b16 %v263, %v263
  %v280 = vpack.c.b16 %v264, %v264
  %v281 = vpack.c.b16 %v265, %v265
  %v282 = vpack.c.b16 %v266, %v266
  %v283 = vpack.c.b16 %v267, %v267
  %v284 = vpack.c.b16 %v268, %v268
  %v285 = vpack.c.b16 %v269, %v269
  %302 = vst [vmem:[%s3] sm:$0xf] %v270
  %303 = vst [vmem:[%s3 + $0x4] sm:$0xf] %v271
  %304 = vst [vmem:[%s3 + $0x8] sm:$0xf] %v272
  %305 = vst [vmem:[%s3 + $0xc] sm:$0xf] %v273
  %306 = vst [vmem:[%s3 + $0x10] sm:$0xf] %v274
  %307 = vst [vmem:[%s3 + $0x14] sm:$0xf] %v275
  %308 = vst [vmem:[%s3 + $0x18] sm:$0xf] %v276
  %309 = vst [vmem:[%s3 + $0x1c] sm:$0xf] %v277
  %310 = vst [vmem:[%s3 + $0x20] sm:$0xf] %v278
  %311 = vst [vmem:[%s3 + $0x24] sm:$0xf] %v279
  %312 = vst [vmem:[%s3 + $0x28] sm:$0xf] %v280
  %313 = vst [vmem:[%s3 + $0x2c] sm:$0xf] %v281
  %314 = vst [vmem:[%s3 + $0x30] sm:$0xf] %v282
  %315 = vst [vmem:[%s3 + $0x34] sm:$0xf] %v283
  %316 = vst [vmem:[%s3 + $0x38] sm:$0xf] %v284
  %317 = vst [vmem:[%s3 + $0x3c] sm:$0xf] %v285
  // Predicated region
  $region14: #{vae_forward.5} parent=0 // pred_check
    _
  $region15: #{vae_forward.5} parent=0 // pred_check_branch
    %319 = sbr.rel (0) target = $region17
  $region16: #{vae_forward.5} parent=0 // pred_region
    _
  $region17: #{vae_forward.5} parent=0 // pred_fallthru
    _
  // Predicated region
  $region18: #{vae_forward.5} parent=0 // pred_check
    _
  $region19: #{vae_forward.5} parent=0 // pred_check_branch
    %321 = sbr.rel (0) target = $region21
  $region20: #{vae_forward.5} parent=0 // pred_region
    _
  $region21: #{vae_forward.5} parent=0 // pred_fallthru
    _

// kernel: vae_forward.6
$region0: #{vae_forward.6}
  #allocation0 [shape = 'u32[]', space=smem, size = 0x4, offset = 0x4, fixed_abs, tag = 'smem constant byte address 0x4 - core index']
  #allocation1 [shape = 'u32[144,128]{1,0:T(1,128)}', space=vmem, size = 0x12000, scoped, tag = 'internal scratch']
  %s0 = inlined_call_operand.vmem [shape: bf16[32,1152], index: 0, kind: input, shape index: {}]
  %s1 = inlined_call_operand.vmem [shape: bf16[1152,128], index: 1, kind: input, shape index: {}]
  %s2 = inlined_call_operand.vmem [shape: f32[1,128], index: 2, kind: input, shape index: {}]
  %s3 = inlined_call_operand.vmem [shape: bf16[32,128], index: 3, kind: output, shape index: {}]
  %s4 = sld [smem:[#allocation0]]
  $region22: #{vae_forward.6} parent=0
    _
  %s6 = ssub.s32 1, %s4
  %s7 = scalar_select 0, %s6, %s4
  // Predicated region
  $region2: #{vae_forward.6} parent=0 // pred_check
    _
  $region3: #{vae_forward.6} parent=0 // pred_check_branch
    %9 = sbr.rel (0) target = $region5
  $region4: #{vae_forward.6} parent=0 // pred_region
    _
  $region5: #{vae_forward.6} parent=0 // pred_fallthru
    _
  // Predicated region
  $region6: #{vae_forward.6} parent=0 // pred_check
    _
  $region7: #{vae_forward.6} parent=0 // pred_check_branch
    %11 = sbr.rel (0) target = $region9
  $region8: #{vae_forward.6} parent=0 // pred_region
    _
  $region9: #{vae_forward.6} parent=0 // pred_fallthru
    _
  // Predicated region
  $region10: #{vae_forward.6} parent=0 // pred_check
    _
  $region11: #{vae_forward.6} parent=0 // pred_check_branch
    %13 = sbr.rel (0) target = $region13
  $region12: #{vae_forward.6} parent=0 // pred_region
    _
  $region13: #{vae_forward.6} parent=0 // pred_fallthru
    _
  %v15 = vld [vmem:[%s0] sm:$0xff]
  %v16 = vld [vmem:[%s0 + $0x8] sm:$0xff]
  %v17 = vld [vmem:[%s0 + $0x10] sm:$0xff]
  %v18 = vld [vmem:[%s0 + $0x18] sm:$0xff]
  %v19 = vld [vmem:[%s0 + $0x20] sm:$0xf]
  %v20 = vld [vmem:[%s0 + $0x24] sm:$0xff]
  %v21 = vld [vmem:[%s0 + $0x2c] sm:$0xff]
  %v22 = vld [vmem:[%s0 + $0x34] sm:$0xff]
  %v23 = vld [vmem:[%s0 + $0x3c] sm:$0xff]
  %v24 = vld [vmem:[%s0 + $0x44] sm:$0xf]
  %v25 = vld [vmem:[%s0 + $0x48] sm:$0xff]
  %v26 = vld [vmem:[%s0 + $0x50] sm:$0xff]
  %v27 = vld [vmem:[%s0 + $0x58] sm:$0xff]
  %v28 = vld [vmem:[%s0 + $0x60] sm:$0xff]
  %v29 = vld [vmem:[%s0 + $0x68] sm:$0xf]
  %v30 = vld [vmem:[%s0 + $0x6c] sm:$0xff]
  %v31 = vld [vmem:[%s0 + $0x74] sm:$0xff]
  %v32 = vld [vmem:[%s0 + $0x7c] sm:$0xff]
  %v33 = vld [vmem:[%s0 + $0x84] sm:$0xff]
  %v34 = vld [vmem:[%s0 + $0x8c] sm:$0xf]
  %v35 = vld [vmem:[%s1] sm:$0xf]
  %v36 = vld [vmem:[%s1 + $0x4] sm:$0xf]
  %v37 = vld [vmem:[%s1 + $0x8] sm:$0xf]
  %v38 = vld [vmem:[%s1 + $0xc] sm:$0xf]
  %v39 = vld [vmem:[%s1 + $0x10] sm:$0xf]
  %v40 = vld [vmem:[%s1 + $0x14] sm:$0xf]
  %v41 = vld [vmem:[%s1 + $0x18] sm:$0xf]
  %v42 = vld [vmem:[%s1 + $0x1c] sm:$0xf]
  %v43 = vld [vmem:[%s1 + $0x20] sm:$0xf]
  %v44 = vld [vmem:[%s1 + $0x24] sm:$0xf]
  %v45 = vld [vmem:[%s1 + $0x28] sm:$0xf]
  %v46 = vld [vmem:[%s1 + $0x2c] sm:$0xf]
  %v47 = vld [vmem:[%s1 + $0x30] sm:$0xf]
  %v48 = vld [vmem:[%s1 + $0x34] sm:$0xf]
  %v49 = vld [vmem:[%s1 + $0x38] sm:$0xf]
  %v50 = vld [vmem:[%s1 + $0x3c] sm:$0xf]
  %v51 = vld [vmem:[%s1 + $0x40] sm:$0xf]
  %v52 = vld [vmem:[%s1 + $0x44] sm:$0xf]
  %v53 = vld [vmem:[%s1 + $0x48] sm:$0xf]
  %v54 = vld [vmem:[%s1 + $0x4c] sm:$0xf]
  %v55 = vld [vmem:[%s1 + $0x50] sm:$0xf]
  %v56 = vld [vmem:[%s1 + $0x54] sm:$0xf]
  %v57 = vld [vmem:[%s1 + $0x58] sm:$0xf]
  %v58 = vld [vmem:[%s1 + $0x5c] sm:$0xf]
  %v59 = vld [vmem:[%s1 + $0x60] sm:$0xf]
  %v60 = vld [vmem:[%s1 + $0x64] sm:$0xf]
  %v61 = vld [vmem:[%s1 + $0x68] sm:$0xf]
  %v62 = vld [vmem:[%s1 + $0x6c] sm:$0xf]
  %v63 = vld [vmem:[%s1 + $0x70] sm:$0xf]
  %v64 = vld [vmem:[%s1 + $0x74] sm:$0xf]
  %v65 = vld [vmem:[%s1 + $0x78] sm:$0xf]
  %v66 = vld [vmem:[%s1 + $0x7c] sm:$0xf]
  %v67 = vld [vmem:[%s1 + $0x80] sm:$0xf]
  %v68 = vld [vmem:[%s1 + $0x84] sm:$0xf]
  %v69 = vld [vmem:[%s1 + $0x88] sm:$0xf]
  %v70 = vld [vmem:[%s1 + $0x8c] sm:$0xf]
  %v71 = vld [vmem:[%s1 + $0x90] sm:$0xf]
  %v72 = vld [vmem:[%s1 + $0x94] sm:$0xf]
  %v73 = vld [vmem:[%s1 + $0x98] sm:$0xf]
  %v74 = vld [vmem:[%s1 + $0x9c] sm:$0xf]
  %v75 = vld [vmem:[%s1 + $0xa0] sm:$0xf]
  %v76 = vld [vmem:[%s1 + $0xa4] sm:$0xf]
  %v77 = vld [vmem:[%s1 + $0xa8] sm:$0xf]
  %v78 = vld [vmem:[%s1 + $0xac] sm:$0xf]
  %v79 = vld [vmem:[%s1 + $0xb0] sm:$0xf]
  %v80 = vld [vmem:[%s1 + $0xb4] sm:$0xf]
  %v81 = vld [vmem:[%s1 + $0xb8] sm:$0xf]
  %v82 = vld [vmem:[%s1 + $0xbc] sm:$0xf]
  %v83 = vld [vmem:[%s1 + $0xc0] sm:$0xf]
  %v84 = vld [vmem:[%s1 + $0xc4] sm:$0xf]
  %v85 = vld [vmem:[%s1 + $0xc8] sm:$0xf]
  %v86 = vld [vmem:[%s1 + $0xcc] sm:$0xf]
  %v87 = vld [vmem:[%s1 + $0xd0] sm:$0xf]
  %v88 = vld [vmem:[%s1 + $0xd4] sm:$0xf]
  %v89 = vld [vmem:[%s1 + $0xd8] sm:$0xf]
  %v90 = vld [vmem:[%s1 + $0xdc] sm:$0xf]
  %v91 = vld [vmem:[%s1 + $0xe0] sm:$0xf]
  %v92 = vld [vmem:[%s1 + $0xe4] sm:$0xf]
  %v93 = vld [vmem:[%s1 + $0xe8] sm:$0xf]
  %v94 = vld [vmem:[%s1 + $0xec] sm:$0xf]
  %v95 = vld [vmem:[%s1 + $0xf0] sm:$0xf]
  %v96 = vld [vmem:[%s1 + $0xf4] sm:$0xf]
  %v97 = vld [vmem:[%s1 + $0xf8] sm:$0xf]
  %v98 = vld [vmem:[%s1 + $0xfc] sm:$0xf]
  %v99 = vld [vmem:[%s1 + $0x100] sm:$0xf]
  %v100 = vld [vmem:[%s1 + $0x104] sm:$0xf]
  %v101 = vld [vmem:[%s1 + $0x108] sm:$0xf]
  %v102 = vld [vmem:[%s1 + $0x10c] sm:$0xf]
  %v103 = vld [vmem:[%s1 + $0x110] sm:$0xf]
  %v104 = vld [vmem:[%s1 + $0x114] sm:$0xf]
  %v105 = vld [vmem:[%s1 + $0x118] sm:$0xf]
  %v106 = vld [vmem:[%s1 + $0x11c] sm:$0xf]
  %v107 = vld [vmem:[%s1 + $0x120] sm:$0xf]
  %v108 = vld [vmem:[%s1 + $0x124] sm:$0xf]
  %v109 = vld [vmem:[%s1 + $0x128] sm:$0xf]
  %v110 = vld [vmem:[%s1 + $0x12c] sm:$0xf]
  %v111 = vld [vmem:[%s1 + $0x130] sm:$0xf]
  %v112 = vld [vmem:[%s1 + $0x134] sm:$0xf]
  %v113 = vld [vmem:[%s1 + $0x138] sm:$0xf]
  %v114 = vld [vmem:[%s1 + $0x13c] sm:$0xf]
  %v115 = vld [vmem:[%s1 + $0x140] sm:$0xf]
  %v116 = vld [vmem:[%s1 + $0x144] sm:$0xf]
  %v117 = vld [vmem:[%s1 + $0x148] sm:$0xf]
  %v118 = vld [vmem:[%s1 + $0x14c] sm:$0xf]
  %v119 = vld [vmem:[%s1 + $0x150] sm:$0xf]
  %v120 = vld [vmem:[%s1 + $0x154] sm:$0xf]
  %v121 = vld [vmem:[%s1 + $0x158] sm:$0xf]
  %v122 = vld [vmem:[%s1 + $0x15c] sm:$0xf]
  %v123 = vld [vmem:[%s1 + $0x160] sm:$0xf]
  %v124 = vld [vmem:[%s1 + $0x164] sm:$0xf]
  %v125 = vld [vmem:[%s1 + $0x168] sm:$0xf]
  %v126 = vld [vmem:[%s1 + $0x16c] sm:$0xf]
  %v127 = vld [vmem:[%s1 + $0x170] sm:$0xf]
  %v128 = vld [vmem:[%s1 + $0x174] sm:$0xf]
  %v129 = vld [vmem:[%s1 + $0x178] sm:$0xf]
  %v130 = vld [vmem:[%s1 + $0x17c] sm:$0xf]
  %v131 = vld [vmem:[%s1 + $0x180] sm:$0xf]
  %v132 = vld [vmem:[%s1 + $0x184] sm:$0xf]
  %v133 = vld [vmem:[%s1 + $0x188] sm:$0xf]
  %v134 = vld [vmem:[%s1 + $0x18c] sm:$0xf]
  %v135 = vld [vmem:[%s1 + $0x190] sm:$0xf]
  %v136 = vld [vmem:[%s1 + $0x194] sm:$0xf]
  %v137 = vld [vmem:[%s1 + $0x198] sm:$0xf]
  %v138 = vld [vmem:[%s1 + $0x19c] sm:$0xf]
  %v139 = vld [vmem:[%s1 + $0x1a0] sm:$0xf]
  %v140 = vld [vmem:[%s1 + $0x1a4] sm:$0xf]
  %v141 = vld [vmem:[%s1 + $0x1a8] sm:$0xf]
  %v142 = vld [vmem:[%s1 + $0x1ac] sm:$0xf]
  %v143 = vld [vmem:[%s1 + $0x1b0] sm:$0xf]
  %v144 = vld [vmem:[%s1 + $0x1b4] sm:$0xf]
  %v145 = vld [vmem:[%s1 + $0x1b8] sm:$0xf]
  %v146 = vld [vmem:[%s1 + $0x1bc] sm:$0xf]
  %v147 = vld [vmem:[%s1 + $0x1c0] sm:$0xf]
  %v148 = vld [vmem:[%s1 + $0x1c4] sm:$0xf]
  %v149 = vld [vmem:[%s1 + $0x1c8] sm:$0xf]
  %v150 = vld [vmem:[%s1 + $0x1cc] sm:$0xf]
  %v151 = vld [vmem:[%s1 + $0x1d0] sm:$0xf]
  %v152 = vld [vmem:[%s1 + $0x1d4] sm:$0xf]
  %v153 = vld [vmem:[%s1 + $0x1d8] sm:$0xf]
  %v154 = vld [vmem:[%s1 + $0x1dc] sm:$0xf]
  %v155 = vld [vmem:[%s1 + $0x1e0] sm:$0xf]
  %v156 = vld [vmem:[%s1 + $0x1e4] sm:$0xf]
  %v157 = vld [vmem:[%s1 + $0x1e8] sm:$0xf]
  %v158 = vld [vmem:[%s1 + $0x1ec] sm:$0xf]
  %v159 = vld [vmem:[%s1 + $0x1f0] sm:$0xf]
  %v160 = vld [vmem:[%s1 + $0x1f4] sm:$0xf]
  %v161 = vld [vmem:[%s1 + $0x1f8] sm:$0xf]
  %v162 = vld [vmem:[%s1 + $0x1fc] sm:$0xf]
  %v163 = vld [vmem:[%s1 + $0x200] sm:$0xf]
  %v164 = vld [vmem:[%s1 + $0x204] sm:$0xf]
  %v165 = vld [vmem:[%s1 + $0x208] sm:$0xf]
  %v166 = vld [vmem:[%s1 + $0x20c] sm:$0xf]
  %v167 = vld [vmem:[%s1 + $0x210] sm:$0xf]
  %v168 = vld [vmem:[%s1 + $0x214] sm:$0xf]
  %v169 = vld [vmem:[%s1 + $0x218] sm:$0xf]
  %v170 = vld [vmem:[%s1 + $0x21c] sm:$0xf]
  %v171 = vld [vmem:[%s1 + $0x220] sm:$0xf]
  %v172 = vld [vmem:[%s1 + $0x224] sm:$0xf]
  %v173 = vld [vmem:[%s1 + $0x228] sm:$0xf]
  %v174 = vld [vmem:[%s1 + $0x22c] sm:$0xf]
  %v175 = vld [vmem:[%s1 + $0x230] sm:$0xf]
  %v176 = vld [vmem:[%s1 + $0x234] sm:$0xf]
  %v177 = vld [vmem:[%s1 + $0x238] sm:$0xf]
  %v178 = vld [vmem:[%s1 + $0x23c] sm:$0xf]
  %v179 = vld [vmem:[%s2] sm:$0x1]
  %v181 = vlaneseq
  %v182 = vshrl.u32 %v181, 7
  %v183 = vsub.s32 0, %v182
  %v184 = vrot.slane %v179, %v183
  %v206 = vunpack.c.l.b16 %v15
  %v207 = vunpack.c.h.b16 %v15
  %v208 = vunpack.c.l.b16 %v16
  %v209 = vunpack.c.h.b16 %v16
  %v210 = vunpack.c.l.b16 %v17
  %v211 = vunpack.c.h.b16 %v17
  %v212 = vunpack.c.l.b16 %v18
  %v213 = vunpack.c.h.b16 %v18
  %v214 = vunpack.c.l.b16 %v19
  %v215 = vunpack.c.l.b16 %v20
  %v216 = vunpack.c.h.b16 %v20
  %v217 = vunpack.c.l.b16 %v21
  %v218 = vunpack.c.h.b16 %v21
  %v219 = vunpack.c.l.b16 %v22
  %v220 = vunpack.c.h.b16 %v22
  %v221 = vunpack.c.l.b16 %v23
  %v222 = vunpack.c.h.b16 %v23
  %v223 = vunpack.c.l.b16 %v24
  %v224 = vunpack.c.l.b16 %v25
  %v225 = vunpack.c.h.b16 %v25
  %v226 = vunpack.c.l.b16 %v26
  %v227 = vunpack.c.h.b16 %v26
  %v228 = vunpack.c.l.b16 %v27
  %v229 = vunpack.c.h.b16 %v27
  %v230 = vunpack.c.l.b16 %v28
  %v231 = vunpack.c.h.b16 %v28
  %v232 = vunpack.c.l.b16 %v29
  %v233 = vunpack.c.l.b16 %v30
  %v234 = vunpack.c.h.b16 %v30
  %v235 = vunpack.c.l.b16 %v31
  %v236 = vunpack.c.h.b16 %v31
  %v237 = vunpack.c.l.b16 %v32
  %v238 = vunpack.c.h.b16 %v32
  %v239 = vunpack.c.l.b16 %v33
  %v240 = vunpack.c.h.b16 %v33
  %v241 = vunpack.c.l.b16 %v34
  %v242 = vpack.c.b16 %v215, %v206
  %v243 = vpack.c.b16 %v216, %v207
  %v244 = vpack.c.b16 %v217, %v208
  %v245 = vpack.c.b16 %v218, %v209
  %v246 = vpack.c.b16 %v219, %v210
  %v247 = vpack.c.b16 %v220, %v211
  %v248 = vpack.c.b16 %v221, %v212
  %v249 = vpack.c.b16 %v222, %v213
  %v250 = vpack.c.b16 %v223, %v214
  %v251 = vpack.c.b16 %v233, %v224
  %v252 = vpack.c.b16 %v234, %v225
  %v253 = vpack.c.b16 %v235, %v226
  %v254 = vpack.c.b16 %v236, %v227
  %v255 = vpack.c.b16 %v237, %v228
  %v256 = vpack.c.b16 %v238, %v229
  %v257 = vpack.c.b16 %v239, %v230
  %v258 = vpack.c.b16 %v240, %v231
  %v259 = vpack.c.b16 %v241, %v232
  %v422 = vunpack.c.l.b16 %v35
  %v423 = vunpack.c.l.b16 %v36
  %v424 = vunpack.c.l.b16 %v37
  %v425 = vunpack.c.l.b16 %v38
  %v426 = vunpack.c.l.b16 %v39
  %v427 = vunpack.c.l.b16 %v40
  %v428 = vunpack.c.l.b16 %v41
  %v429 = vunpack.c.l.b16 %v42
  %v430 = vunpack.c.l.b16 %v43
  %v431 = vunpack.c.l.b16 %v44
  %v432 = vunpack.c.l.b16 %v45
  %v433 = vunpack.c.l.b16 %v46
  %v434 = vunpack.c.l.b16 %v47
  %v435 = vunpack.c.l.b16 %v48
  %v436 = vunpack.c.l.b16 %v49
  %v437 = vunpack.c.l.b16 %v50
  %v438 = vunpack.c.l.b16 %v51
  %v439 = vunpack.c.l.b16 %v52
  %v440 = vunpack.c.l.b16 %v53
  %v441 = vunpack.c.l.b16 %v54
  %v442 = vunpack.c.l.b16 %v55
  %v443 = vunpack.c.l.b16 %v56
  %v444 = vunpack.c.l.b16 %v57
  %v445 = vunpack.c.l.b16 %v58
  %v446 = vunpack.c.l.b16 %v59
  %v447 = vunpack.c.l.b16 %v60
  %v448 = vunpack.c.l.b16 %v61
  %v449 = vunpack.c.l.b16 %v62
  %v450 = vunpack.c.l.b16 %v63
  %v451 = vunpack.c.l.b16 %v64
  %v452 = vunpack.c.l.b16 %v65
  %v453 = vunpack.c.l.b16 %v66
  %v454 = vunpack.c.l.b16 %v67
  %v455 = vunpack.c.l.b16 %v68
  %v456 = vunpack.c.l.b16 %v69
  %v457 = vunpack.c.l.b16 %v70
  %v458 = vunpack.c.l.b16 %v71
  %v459 = vunpack.c.l.b16 %v72
  %v460 = vunpack.c.l.b16 %v73
  %v461 = vunpack.c.l.b16 %v74
  %v462 = vunpack.c.l.b16 %v75
  %v463 = vunpack.c.l.b16 %v76
  %v464 = vunpack.c.l.b16 %v77
  %v465 = vunpack.c.l.b16 %v78
  %v466 = vunpack.c.l.b16 %v79
  %v467 = vunpack.c.l.b16 %v80
  %v468 = vunpack.c.l.b16 %v81
  %v469 = vunpack.c.l.b16 %v82
  %v470 = vunpack.c.l.b16 %v83
  %v471 = vunpack.c.l.b16 %v84
  %v472 = vunpack.c.l.b16 %v85
  %v473 = vunpack.c.l.b16 %v86
  %v474 = vunpack.c.l.b16 %v87
  %v475 = vunpack.c.l.b16 %v88
  %v476 = vunpack.c.l.b16 %v89
  %v477 = vunpack.c.l.b16 %v90
  %v478 = vunpack.c.l.b16 %v91
  %v479 = vunpack.c.l.b16 %v92
  %v480 = vunpack.c.l.b16 %v93
  %v481 = vunpack.c.l.b16 %v94
  %v482 = vunpack.c.l.b16 %v95
  %v483 = vunpack.c.l.b16 %v96
  %v484 = vunpack.c.l.b16 %v97
  %v485 = vunpack.c.l.b16 %v98
  %v486 = vunpack.c.l.b16 %v99
  %v487 = vunpack.c.l.b16 %v100
  %v488 = vunpack.c.l.b16 %v101
  %v489 = vunpack.c.l.b16 %v102
  %v490 = vunpack.c.l.b16 %v103
  %v491 = vunpack.c.l.b16 %v104
  %v492 = vunpack.c.l.b16 %v105
  %v493 = vunpack.c.l.b16 %v106
  %v494 = vunpack.c.l.b16 %v107
  %v495 = vunpack.c.l.b16 %v108
  %v496 = vunpack.c.l.b16 %v109
  %v497 = vunpack.c.l.b16 %v110
  %v498 = vunpack.c.l.b16 %v111
  %v499 = vunpack.c.l.b16 %v112
  %v500 = vunpack.c.l.b16 %v113
  %v501 = vunpack.c.l.b16 %v114
  %v502 = vunpack.c.l.b16 %v115
  %v503 = vunpack.c.l.b16 %v116
  %v504 = vunpack.c.l.b16 %v117
  %v505 = vunpack.c.l.b16 %v118
  %v506 = vunpack.c.l.b16 %v119
  %v507 = vunpack.c.l.b16 %v120
  %v508 = vunpack.c.l.b16 %v121
  %v509 = vunpack.c.l.b16 %v122
  %v510 = vunpack.c.l.b16 %v123
  %v511 = vunpack.c.l.b16 %v124
  %v512 = vunpack.c.l.b16 %v125
  %v513 = vunpack.c.l.b16 %v126
  %v514 = vunpack.c.l.b16 %v127
  %v515 = vunpack.c.l.b16 %v128
  %v516 = vunpack.c.l.b16 %v129
  %v517 = vunpack.c.l.b16 %v130
  %v518 = vunpack.c.l.b16 %v131
  %v519 = vunpack.c.l.b16 %v132
  %v520 = vunpack.c.l.b16 %v133
  %v521 = vunpack.c.l.b16 %v134
  %v522 = vunpack.c.l.b16 %v135
  %v523 = vunpack.c.l.b16 %v136
  %v524 = vunpack.c.l.b16 %v137
  %v525 = vunpack.c.l.b16 %v138
  %v526 = vunpack.c.l.b16 %v139
  %v527 = vunpack.c.l.b16 %v140
  %v528 = vunpack.c.l.b16 %v141
  %v529 = vunpack.c.l.b16 %v142
  %v530 = vunpack.c.l.b16 %v143
  %v531 = vunpack.c.l.b16 %v144
  %v532 = vunpack.c.l.b16 %v145
  %v533 = vunpack.c.l.b16 %v146
  %v534 = vunpack.c.l.b16 %v147
  %v535 = vunpack.c.l.b16 %v148
  %v536 = vunpack.c.l.b16 %v149
  %v537 = vunpack.c.l.b16 %v150
  %v538 = vunpack.c.l.b16 %v151
  %v539 = vunpack.c.l.b16 %v152
  %v540 = vunpack.c.l.b16 %v153
  %v541 = vunpack.c.l.b16 %v154
  %v542 = vunpack.c.l.b16 %v155
  %v543 = vunpack.c.l.b16 %v156
  %v544 = vunpack.c.l.b16 %v157
  %v545 = vunpack.c.l.b16 %v158
  %v546 = vunpack.c.l.b16 %v159
  %v547 = vunpack.c.l.b16 %v160
  %v548 = vunpack.c.l.b16 %v161
  %v549 = vunpack.c.l.b16 %v162
  %v550 = vunpack.c.l.b16 %v163
  %v551 = vunpack.c.l.b16 %v164
  %v552 = vunpack.c.l.b16 %v165
  %v553 = vunpack.c.l.b16 %v166
  %v554 = vunpack.c.l.b16 %v167
  %v555 = vunpack.c.l.b16 %v168
  %v556 = vunpack.c.l.b16 %v169
  %v557 = vunpack.c.l.b16 %v170
  %v558 = vunpack.c.l.b16 %v171
  %v559 = vunpack.c.l.b16 %v172
  %v560 = vunpack.c.l.b16 %v173
  %v561 = vunpack.c.l.b16 %v174
  %v562 = vunpack.c.l.b16 %v175
  %v563 = vunpack.c.l.b16 %v176
  %v564 = vunpack.c.l.b16 %v177
  %v565 = vunpack.c.l.b16 %v178
  %v566 = vpack.c.b16 %v423, %v422
  %v567 = vpack.c.b16 %v425, %v424
  %v568 = vpack.c.b16 %v427, %v426
  %v569 = vpack.c.b16 %v429, %v428
  %v570 = vpack.c.b16 %v431, %v430
  %v571 = vpack.c.b16 %v433, %v432
  %v572 = vpack.c.b16 %v435, %v434
  %v573 = vpack.c.b16 %v437, %v436
  %v574 = vpack.c.b16 %v439, %v438
  %v575 = vpack.c.b16 %v441, %v440
  %v576 = vpack.c.b16 %v443, %v442
  %v577 = vpack.c.b16 %v445, %v444
  %v578 = vpack.c.b16 %v447, %v446
  %v579 = vpack.c.b16 %v449, %v448
  %v580 = vpack.c.b16 %v451, %v450
  %v581 = vpack.c.b16 %v453, %v452
  %v582 = vpack.c.b16 %v455, %v454
  %v583 = vpack.c.b16 %v457, %v456
  %v584 = vpack.c.b16 %v459, %v458
  %v585 = vpack.c.b16 %v461, %v460
  %v586 = vpack.c.b16 %v463, %v462
  %v587 = vpack.c.b16 %v465, %v464
  %v588 = vpack.c.b16 %v467, %v466
  %v589 = vpack.c.b16 %v469, %v468
  %v590 = vpack.c.b16 %v471, %v470
  %v591 = vpack.c.b16 %v473, %v472
  %v592 = vpack.c.b16 %v475, %v474
  %v593 = vpack.c.b16 %v477, %v476
  %v594 = vpack.c.b16 %v479, %v478
  %v595 = vpack.c.b16 %v481, %v480
  %v596 = vpack.c.b16 %v483, %v482
  %v597 = vpack.c.b16 %v485, %v484
  %v598 = vpack.c.b16 %v487, %v486
  %v599 = vpack.c.b16 %v489, %v488
  %v600 = vpack.c.b16 %v491, %v490
  %v601 = vpack.c.b16 %v493, %v492
  %v602 = vpack.c.b16 %v495, %v494
  %v603 = vpack.c.b16 %v497, %v496
  %v604 = vpack.c.b16 %v499, %v498
  %v605 = vpack.c.b16 %v501, %v500
  %v606 = vpack.c.b16 %v503, %v502
  %v607 = vpack.c.b16 %v505, %v504
  %v608 = vpack.c.b16 %v507, %v506
  %v609 = vpack.c.b16 %v509, %v508
  %v610 = vpack.c.b16 %v511, %v510
  %v611 = vpack.c.b16 %v513, %v512
  %v612 = vpack.c.b16 %v515, %v514
  %v613 = vpack.c.b16 %v517, %v516
  %v614 = vpack.c.b16 %v519, %v518
  %v615 = vpack.c.b16 %v521, %v520
  %v616 = vpack.c.b16 %v523, %v522
  %v617 = vpack.c.b16 %v525, %v524
  %v618 = vpack.c.b16 %v527, %v526
  %v619 = vpack.c.b16 %v529, %v528
  %v620 = vpack.c.b16 %v531, %v530
  %v621 = vpack.c.b16 %v533, %v532
  %v622 = vpack.c.b16 %v535, %v534
  %v623 = vpack.c.b16 %v537, %v536
  %v624 = vpack.c.b16 %v539, %v538
  %v625 = vpack.c.b16 %v541, %v540
  %v626 = vpack.c.b16 %v543, %v542
  %v627 = vpack.c.b16 %v545, %v544
  %v628 = vpack.c.b16 %v547, %v546
  %v629 = vpack.c.b16 %v549, %v548
  %v630 = vpack.c.b16 %v551, %v550
  %v631 = vpack.c.b16 %v553, %v552
  %v632 = vpack.c.b16 %v555, %v554
  %v633 = vpack.c.b16 %v557, %v556
  %v634 = vpack.c.b16 %v559, %v558
  %v635 = vpack.c.b16 %v561, %v560
  %v636 = vpack.c.b16 %v563, %v562
  %v637 = vpack.c.b16 %v565, %v564
  %710 = vmatprep.subr.bf16.mxu0 0
  %711 = vmatpush1.bf16.msra.mxu0 %v566
  %712 = vmatprep.subr.bf16.mxu0 0
  %713 = vmatpush1.bf16.msra.mxu0 %v567
  %714 = vmatprep.subr.bf16.mxu0 0
  %715 = vmatpush1.bf16.msra.mxu0 %v568
  %716 = vmatprep.subr.bf16.mxu0 0
  %717 = vmatpush1.bf16.msra.mxu0 %v569
  %718 = vmatprep.subr.bf16.mxu0 0
  %719 = vmatpush1.bf16.msra.mxu0 %v570
  %720 = vmatprep.subr.bf16.mxu0 0
  %721 = vmatpush1.bf16.msra.mxu0 %v571
  %722 = vmatprep.subr.bf16.mxu0 0
  %723 = vmatpush1.bf16.msra.mxu0 %v572
  %724 = vmatprep.subr.bf16.mxu0 0
  %725 = vmatpush1.bf16.msra.mxu0 %v573
  %726 = vmatprep.subr.bf16.mxu0 0
  %727 = vmatpush1.bf16.msra.mxu0 %v574
  %728 = vmatprep.subr.bf16.mxu0 0
  %729 = vmatpush1.bf16.msra.mxu0 %v575
  %730 = vmatprep.subr.bf16.mxu0 0
  %731 = vmatpush1.bf16.msra.mxu0 %v576
  %732 = vmatprep.subr.bf16.mxu0 0
  %733 = vmatpush1.bf16.msra.mxu0 %v577
  %734 = vmatprep.subr.bf16.mxu0 0
  %735 = vmatpush1.bf16.msra.mxu0 %v578
  %736 = vmatprep.subr.bf16.mxu0 0
  %737 = vmatpush1.bf16.msra.mxu0 %v579
  %738 = vmatprep.subr.bf16.mxu0 0
  %739 = vmatpush1.bf16.msra.mxu0 %v580
  %740 = vmatprep.subr.bf16.mxu0 0
  %741 = vmatpush1.bf16.msra.mxu0 %v581
  %742 = vmatprep.mubr.bf16.mxu0 %v243
  %743 = vmatmul.mubr.bf16.gmra.mrb[0].mxu0 %v242
  %v744 = vpop.f32.mrb[0].mxu0
  %v745 = vadd.f32 %v184, %v744
  %v746 = vpop.f32.mrb[0].mxu0
  %v747 = vpop.f32.mrb[0].mxu0
  %v748 = vadd.f32 %v184, %v747
  %v749 = vpop.f32.mrb[0].mxu0
  %750 = vmatprep.mubr.bf16.mxu0 %v252
  %751 = vmatmul.mubr.bf16.gmra.mrb[0].mxu0 %v251
  %v752 = vpop.f32.mrb[0].mxu0
  %v753 = vadd.f32 %v184, %v752
  %v754 = vpop.f32.mrb[0].mxu0
  %v755 = vpop.f32.mrb[0].mxu0
  %v756 = vadd.f32 %v184, %v755
  %v757 = vpop.f32.mrb[0].mxu0
  %758 = vdwg.mxu0
  %759 = vmatprep.subr.bf16.mxu0 0
  %760 = vmatpush1.bf16.msra.mxu0 %v582
  %761 = vmatprep.subr.bf16.mxu0 0
  %762 = vmatpush1.bf16.msra.mxu0 %v583
  %763 = vmatprep.subr.bf16.mxu0 0
  %764 = vmatpush1.bf16.msra.mxu0 %v584
  %765 = vmatprep.subr.bf16.mxu0 0
  %766 = vmatpush1.bf16.msra.mxu0 %v585
  %767 = vmatprep.subr.bf16.mxu0 0
  %768 = vmatpush1.bf16.msra.mxu0 %v586
  %769 = vmatprep.subr.bf16.mxu0 0
  %770 = vmatpush1.bf16.msra.mxu0 %v587
  %771 = vmatprep.subr.bf16.mxu0 0
  %772 = vmatpush1.bf16.msra.mxu0 %v588
  %773 = vmatprep.subr.bf16.mxu0 0
  %774 = vmatpush1.bf16.msra.mxu0 %v589
  %775 = vmatprep.subr.bf16.mxu0 0
  %776 = vmatpush1.bf16.msra.mxu0 %v590
  %777 = vmatprep.subr.bf16.mxu0 0
  %778 = vmatpush1.bf16.msra.mxu0 %v591
  %779 = vmatprep.subr.bf16.mxu0 0
  %780 = vmatpush1.bf16.msra.mxu0 %v592
  %781 = vmatprep.subr.bf16.mxu0 0
  %782 = vmatpush1.bf16.msra.mxu0 %v593
  %783 = vmatprep.subr.bf16.mxu0 0
  %784 = vmatpush1.bf16.msra.mxu0 %v594
  %785 = vmatprep.subr.bf16.mxu0 0
  %786 = vmatpush1.bf16.msra.mxu0 %v595
  %787 = vmatprep.subr.bf16.mxu0 0
  %788 = vmatpush1.bf16.msra.mxu0 %v596
  %789 = vmatprep.subr.bf16.mxu0 0
  %790 = vmatpush1.bf16.msra.mxu0 %v597
  %791 = vmatprep.mubr.bf16.mxu0 %v245
  %792 = vmatmul.mubr.bf16.gmra.mrb[0].mxu0 %v244
  %v793 = vpop.f32.mrb[0].mxu0
  %v794 = vadd.f32 %v745, %v793
  %v795 = vpop.f32.mrb[0].mxu0
  %v796 = vpop.f32.mrb[0].mxu0
  %v797 = vadd.f32 %v748, %v796
  %v798 = vpop.f32.mrb[0].mxu0
  %799 = vmatprep.mubr.bf16.mxu0 %v254
  %800 = vmatmul.mubr.bf16.gmra.mrb[0].mxu0 %v253
  %v801 = vpop.f32.mrb[0].mxu0
  %v802 = vadd.f32 %v753, %v801
  %v803 = vpop.f32.mrb[0].mxu0
  %v804 = vpop.f32.mrb[0].mxu0
  %v805 = vadd.f32 %v756, %v804
  %v806 = vpop.f32.mrb[0].mxu0
  %807 = vdwg.mxu0
  %808 = vmatprep.subr.bf16.mxu0 0
  %809 = vmatpush1.bf16.msra.mxu0 %v598
  %810 = vmatprep.subr.bf16.mxu0 0
  %811 = vmatpush1.bf16.msra.mxu0 %v599
  %812 = vmatprep.subr.bf16.mxu0 0
  %813 = vmatpush1.bf16.msra.mxu0 %v600
  %814 = vmatprep.subr.bf16.mxu0 0
  %815 = vmatpush1.bf16.msra.mxu0 %v601
  %816 = vmatprep.subr.bf16.mxu0 0
  %817 = vmatpush1.bf16.msra.mxu0 %v602
  %818 = vmatprep.subr.bf16.mxu0 0
  %819 = vmatpush1.bf16.msra.mxu0 %v603
  %820 = vmatprep.subr.bf16.mxu0 0
  %821 = vmatpush1.bf16.msra.mxu0 %v604
  %822 = vmatprep.subr.bf16.mxu0 0
  %823 = vmatpush1.bf16.msra.mxu0 %v605
  %824 = vmatprep.subr.bf16.mxu0 0
  %825 = vmatpush1.bf16.msra.mxu0 %v606
  %826 = vmatprep.subr.bf16.mxu0 0
  %827 = vmatpush1.bf16.msra.mxu0 %v607
  %828 = vmatprep.subr.bf16.mxu0 0
  %829 = vmatpush1.bf16.msra.mxu0 %v608
  %830 = vmatprep.subr.bf16.mxu0 0
  %831 = vmatpush1.bf16.msra.mxu0 %v609
  %832 = vmatprep.subr.bf16.mxu0 0
  %833 = vmatpush1.bf16.msra.mxu0 %v610
  %834 = vmatprep.subr.bf16.mxu0 0
  %835 = vmatpush1.bf16.msra.mxu0 %v611
  %836 = vmatprep.subr.bf16.mxu0 0
  %837 = vmatpush1.bf16.msra.mxu0 %v612
  %838 = vmatprep.subr.bf16.mxu0 0
  %839 = vmatpush1.bf16.msra.mxu0 %v613
  %840 = vmatprep.mubr.bf16.mxu0 %v247
  %841 = vmatmul.mubr.bf16.gmra.mrb[0].mxu0 %v246
  %v842 = vpop.f32.mrb[0].mxu0
  %v843 = vadd.f32 %v794, %v842
  %v844 = vpop.f32.mrb[0].mxu0
  %v845 = vpop.f32.mrb[0].mxu0
  %v846 = vadd.f32 %v797, %v845
  %v847 = vpop.f32.mrb[0].mxu0
  %848 = vmatprep.mubr.bf16.mxu0 %v256
  %849 = vmatmul.mubr.bf16.gmra.mrb[0].mxu0 %v255
  %v850 = vpop.f32.mrb[0].mxu0
  %v851 = vadd.f32 %v802, %v850
  %v852 = vpop.f32.mrb[0].mxu0
  %v853 = vpop.f32.mrb[0].mxu0
  %v854 = vadd.f32 %v805, %v853
  %v855 = vpop.f32.mrb[0].mxu0
  %856 = vdwg.mxu0
  %857 = vmatprep.subr.bf16.mxu0 0
  %858 = vmatpush1.bf16.msra.mxu0 %v614
  %859 = vmatprep.subr.bf16.mxu0 0
  %860 = vmatpush1.bf16.msra.mxu0 %v615
  %861 = vmatprep.subr.bf16.mxu0 0
  %862 = vmatpush1.bf16.msra.mxu0 %v616
  %863 = vmatprep.subr.bf16.mxu0 0
  %864 = vmatpush1.bf16.msra.mxu0 %v617
  %865 = vmatprep.subr.bf16.mxu0 0
  %866 = vmatpush1.bf16.msra.mxu0 %v618
  %867 = vmatprep.subr.bf16.mxu0 0
  %868 = vmatpush1.bf16.msra.mxu0 %v619
  %869 = vmatprep.subr.bf16.mxu0 0
  %870 = vmatpush1.bf16.msra.mxu0 %v620
  %871 = vmatprep.subr.bf16.mxu0 0
  %872 = vmatpush1.bf16.msra.mxu0 %v621
  %873 = vmatprep.subr.bf16.mxu0 0
  %874 = vmatpush1.bf16.msra.mxu0 %v622
  %875 = vmatprep.subr.bf16.mxu0 0
  %876 = vmatpush1.bf16.msra.mxu0 %v623
  %877 = vmatprep.subr.bf16.mxu0 0
  %878 = vmatpush1.bf16.msra.mxu0 %v624
  %879 = vmatprep.subr.bf16.mxu0 0
  %880 = vmatpush1.bf16.msra.mxu0 %v625
  %881 = vmatprep.subr.bf16.mxu0 0
  %882 = vmatpush1.bf16.msra.mxu0 %v626
  %883 = vmatprep.subr.bf16.mxu0 0
  %884 = vmatpush1.bf16.msra.mxu0 %v627
  %885 = vmatprep.subr.bf16.mxu0 0
  %886 = vmatpush1.bf16.msra.mxu0 %v628
  %887 = vmatprep.subr.bf16.mxu0 0
  %888 = vmatpush1.bf16.msra.mxu0 %v629
  %889 = vmatprep.mubr.bf16.mxu0 %v249
  %890 = vmatmul.mubr.bf16.gmra.mrb[0].mxu0 %v248
  %v891 = vpop.f32.mrb[0].mxu0
  %v892 = vadd.f32 %v843, %v891
  %v893 = vpop.f32.mrb[0].mxu0
  %v894 = vpop.f32.mrb[0].mxu0
  %v895 = vadd.f32 %v846, %v894
  %v896 = vpop.f32.mrb[0].mxu0
  %897 = vmatprep.mubr.bf16.mxu0 %v258
  %898 = vmatmul.mubr.bf16.gmra.mrb[0].mxu0 %v257
  %v899 = vpop.f32.mrb[0].mxu0
  %v900 = vadd.f32 %v851, %v899
  %v901 = vpop.f32.mrb[0].mxu0
  %v902 = vpop.f32.mrb[0].mxu0
  %v903 = vadd.f32 %v854, %v902
  %v904 = vpop.f32.mrb[0].mxu0
  %905 = vdwg.mxu0
  %906 = vmatprep.subr.bf16.mxu0 0
  %907 = vmatpush1.bf16.msra.mxu0 %v630
  %908 = vmatprep.subr.bf16.mxu0 0
  %909 = vmatpush1.bf16.msra.mxu0 %v631
  %910 = vmatprep.subr.bf16.mxu0 0
  %911 = vmatpush1.bf16.msra.mxu0 %v632
  %912 = vmatprep.subr.bf16.mxu0 0
  %913 = vmatpush1.bf16.msra.mxu0 %v633
  %914 = vmatprep.subr.bf16.mxu0 0
  %915 = vmatpush1.bf16.msra.mxu0 %v634
  %916 = vmatprep.subr.bf16.mxu0 0
  %917 = vmatpush1.bf16.msra.mxu0 %v635
  %918 = vmatprep.subr.bf16.mxu0 0
  %919 = vmatpush1.bf16.msra.mxu0 %v636
  %920 = vmatprep.subr.bf16.mxu0 0
  %921 = vmatpush1.bf16.msra.mxu0 %v637
  %922 = vmatprep.subr.bf16.mxu0 0
  %923 = vmatpush1.bf16.msra.mxu0 0
  %924 = vmatprep.subr.bf16.mxu0 0
  %925 = vmatpush1.bf16.msra.mxu0 0
  %926 = vmatprep.subr.bf16.mxu0 0
  %927 = vmatpush1.bf16.msra.mxu0 0
  %928 = vmatprep.subr.bf16.mxu0 0
  %929 = vmatpush1.bf16.msra.mxu0 0
  %930 = vmatprep.subr.bf16.mxu0 0
  %931 = vmatpush1.bf16.msra.mxu0 0
  %932 = vmatprep.subr.bf16.mxu0 0
  %933 = vmatpush1.bf16.msra.mxu0 0
  %934 = vmatprep.subr.bf16.mxu0 0
  %935 = vmatpush1.bf16.msra.mxu0 0
  %936 = vmatprep.subr.bf16.mxu0 0
  %937 = vmatpush1.bf16.msra.mxu0 0
  %938 = vmatprep.mubr.bf16.mxu0 0
  %939 = vmatmul.mubr.bf16.gmra.mrb[0].mxu0 %v250
  %v940 = vpop.f32.mrb[0].mxu0
  %v941 = vadd.f32 %v892, %v940
  %v942 = vpop.f32.mrb[0].mxu0
  %v943 = vpop.f32.mrb[0].mxu0
  %v944 = vadd.f32 %v895, %v943
  %v945 = vpop.f32.mrb[0].mxu0
  %946 = vmatprep.mubr.bf16.mxu0 0
  %947 = vmatmul.mubr.bf16.gmra.mrb[0].mxu0 %v259
  %v948 = vpop.f32.mrb[0].mxu0
  %v949 = vadd.f32 %v900, %v948
  %v950 = vpop.f32.mrb[0].mxu0
  %v951 = vpop.f32.mrb[0].mxu0
  %v952 = vadd.f32 %v903, %v951
  %v953 = vpop.f32.mrb[0].mxu0
  %954 = vdwg.mxu0
  %v955 = vmax.f32 %v941, 0.0
  %v956 = vmax.f32 %v944, 0.0
  %v957 = vmax.f32 %v949, 0.0
  %v958 = vmax.f32 %v952, 0.0
  %v959 = vpack.c.bf16 %v956, %v955
  %v960 = vpack.c.bf16 %v958, %v957
  %v963 = vunpack.c.l.b16 %v959
  %v964 = vunpack.c.h.b16 %v959
  %v965 = vunpack.c.l.b16 %v960
  %v966 = vunpack.c.h.b16 %v960
  %v967 = vpack.c.b16 %v963, %v963
  %v968 = vpack.c.b16 %v964, %v964
  %v969 = vpack.c.b16 %v965, %v965
  %v970 = vpack.c.b16 %v966, %v966
  %975 = vst [vmem:[%s3] sm:$0xf] %v967
  %976 = vst [vmem:[%s3 + $0x4] sm:$0xf] %v968
  %977 = vst [vmem:[%s3 + $0x8] sm:$0xf] %v969
  %978 = vst [vmem:[%s3 + $0xc] sm:$0xf] %v970
  // Predicated region
  $region14: #{vae_forward.6} parent=0 // pred_check
    _
  $region15: #{vae_forward.6} parent=0 // pred_check_branch
    %980 = sbr.rel (0) target = $region17
  $region16: #{vae_forward.6} parent=0 // pred_region
    _
  $region17: #{vae_forward.6} parent=0 // pred_fallthru
    _
  // Predicated region
  $region18: #{vae_forward.6} parent=0 // pred_check
    _
  $region19: #{vae_forward.6} parent=0 // pred_check_branch
    %982 = sbr.rel (0) target = $region21
  $region20: #{vae_forward.6} parent=0 // pred_region
    _
  $region21: #{vae_forward.6} parent=0 // pred_fallthru
    _

// kernel: vae_forward.8
$region0: #{vae_forward.8}
  #allocation0 [shape = 'u32[]', space=smem, size = 0x4, offset = 0x4, fixed_abs, tag = 'smem constant byte address 0x4 - core index']
  #allocation1 [shape = 'u32[144,128]{1,0:T(1,128)}', space=vmem, size = 0x12000, scoped, tag = 'internal scratch']
  %s0 = inlined_call_operand.vmem [shape: bf16[32,512], index: 0, kind: input, shape index: {}]
  %s1 = inlined_call_operand.vmem [shape: bf16[512,512], index: 1, kind: input, shape index: {}]
  %s2 = inlined_call_operand.vmem [shape: f32[1,512], index: 2, kind: input, shape index: {}]
  %s3 = inlined_call_operand.vmem [shape: bf16[32,512], index: 3, kind: output, shape index: {}]
  %s4 = sld [smem:[#allocation0]]
  $region22: #{vae_forward.8} parent=0
    _
  %s6 = ssub.s32 1, %s4
  %s7 = scalar_select 0, %s6, %s4
  // Predicated region
  $region2: #{vae_forward.8} parent=0 // pred_check
    _
  $region3: #{vae_forward.8} parent=0 // pred_check_branch
    %9 = sbr.rel (0) target = $region5
  $region4: #{vae_forward.8} parent=0 // pred_region
    _
  $region5: #{vae_forward.8} parent=0 // pred_fallthru
    _
  // Predicated region
  $region6: #{vae_forward.8} parent=0 // pred_check
    _
  $region7: #{vae_forward.8} parent=0 // pred_check_branch
    %11 = sbr.rel (0) target = $region9
  $region8: #{vae_forward.8} parent=0 // pred_region
    _
  $region9: #{vae_forward.8} parent=0 // pred_fallthru
    _
  // Predicated region
  $region10: #{vae_forward.8} parent=0 // pred_check
    _
  $region11: #{vae_forward.8} parent=0 // pred_check_branch
    %13 = sbr.rel (0) target = $region13
  $region12: #{vae_forward.8} parent=0 // pred_region
    _
  $region13: #{vae_forward.8} parent=0 // pred_fallthru
    _
  %v14 = vld [vmem:[%s0] sm:$0xff]
  %v15 = vld [vmem:[%s0 + $0x8] sm:$0xff]
  %v16 = vld [vmem:[%s0 + $0x10] sm:$0xff]
  %v17 = vld [vmem:[%s0 + $0x18] sm:$0xff]
  %v18 = vld [vmem:[%s0 + $0x20] sm:$0xff]
  %v19 = vld [vmem:[%s0 + $0x28] sm:$0xff]
  %v20 = vld [vmem:[%s0 + $0x30] sm:$0xff]
  %v21 = vld [vmem:[%s0 + $0x38] sm:$0xff]
  %v22 = vld [vmem:[%s1] sm:$0xff]
  %v23 = vld [vmem:[%s1 + $0x8] sm:$0xff]
  %v24 = vld [vmem:[%s1 + $0x10] sm:$0xff]
  %v25 = vld [vmem:[%s1 + $0x18] sm:$0xff]
  %v26 = vld [vmem:[%s1 + $0x20] sm:$0xff]
  %v27 = vld [vmem:[%s1 + $0x28] sm:$0xff]
  %v28 = vld [vmem:[%s1 + $0x30] sm:$0xff]
  %v29 = vld [vmem:[%s1 + $0x38] sm:$0xff]
  %v30 = vld [vmem:[%s1 + $0x40] sm:$0xff]
  %v31 = vld [vmem:[%s1 + $0x48] sm:$0xff]
  %v32 = vld [vmem:[%s1 + $0x50] sm:$0xff]
  %v33 = vld [vmem:[%s1 + $0x58] sm:$0xff]
  %v34 = vld [vmem:[%s1 + $0x60] sm:$0xff]
  %v35 = vld [vmem:[%s1 + $0x68] sm:$0xff]
  %v36 = vld [vmem:[%s1 + $0x70] sm:$0xff]
  %v37 = vld [vmem:[%s1 + $0x78] sm:$0xff]
  %v38 = vld [vmem:[%s1 + $0x80] sm:$0xff]
  %v39 = vld [vmem:[%s1 + $0x88] sm:$0xff]
  %v40 = vld [vmem:[%s1 + $0x90] sm:$0xff]
  %v41 = vld [vmem:[%s1 + $0x98] sm:$0xff]
  %v42 = vld [vmem:[%s1 + $0xa0] sm:$0xff]
  %v43 = vld [vmem:[%s1 + $0xa8] sm:$0xff]
  %v44 = vld [vmem:[%s1 + $0xb0] sm:$0xff]
  %v45 = vld [vmem:[%s1 + $0xb8] sm:$0xff]
  %v46 = vld [vmem:[%s1 + $0xc0] sm:$0xff]
  %v47 = vld [vmem:[%s1 + $0xc8] sm:$0xff]
  %v48 = vld [vmem:[%s1 + $0xd0] sm:$0xff]
  %v49 = vld [vmem:[%s1 + $0xd8] sm:$0xff]
  %v50 = vld [vmem:[%s1 + $0xe0] sm:$0xff]
  %v51 = vld [vmem:[%s1 + $0xe8] sm:$0xff]
  %v52 = vld [vmem:[%s1 + $0xf0] sm:$0xff]
  %v53 = vld [vmem:[%s1 + $0xf8] sm:$0xff]
  %v54 = vld [vmem:[%s1 + $0x100] sm:$0xff]
  %v55 = vld [vmem:[%s1 + $0x108] sm:$0xff]
  %v56 = vld [vmem:[%s1 + $0x110] sm:$0xff]
  %v57 = vld [vmem:[%s1 + $0x118] sm:$0xff]
  %v58 = vld [vmem:[%s1 + $0x120] sm:$0xff]
  %v59 = vld [vmem:[%s1 + $0x128] sm:$0xff]
  %v60 = vld [vmem:[%s1 + $0x130] sm:$0xff]
  %v61 = vld [vmem:[%s1 + $0x138] sm:$0xff]
  %v62 = vld [vmem:[%s1 + $0x140] sm:$0xff]
  %v63 = vld [vmem:[%s1 + $0x148] sm:$0xff]
  %v64 = vld [vmem:[%s1 + $0x150] sm:$0xff]
  %v65 = vld [vmem:[%s1 + $0x158] sm:$0xff]
  %v66 = vld [vmem:[%s1 + $0x160] sm:$0xff]
  %v67 = vld [vmem:[%s1 + $0x168] sm:$0xff]
  %v68 = vld [vmem:[%s1 + $0x170] sm:$0xff]
  %v69 = vld [vmem:[%s1 + $0x178] sm:$0xff]
  %v70 = vld [vmem:[%s1 + $0x180] sm:$0xff]
  %v71 = vld [vmem:[%s1 + $0x188] sm:$0xff]
  %v72 = vld [vmem:[%s1 + $0x190] sm:$0xff]
  %v73 = vld [vmem:[%s1 + $0x198] sm:$0xff]
  %v74 = vld [vmem:[%s1 + $0x1a0] sm:$0xff]
  %v75 = vld [vmem:[%s1 + $0x1a8] sm:$0xff]
  %v76 = vld [vmem:[%s1 + $0x1b0] sm:$0xff]
  %v77 = vld [vmem:[%s1 + $0x1b8] sm:$0xff]
  %v78 = vld [vmem:[%s1 + $0x1c0] sm:$0xff]
  %v79 = vld [vmem:[%s1 + $0x1c8] sm:$0xff]
  %v80 = vld [vmem:[%s1 + $0x1d0] sm:$0xff]
  %v81 = vld [vmem:[%s1 + $0x1d8] sm:$0xff]
  %v82 = vld [vmem:[%s1 + $0x1e0] sm:$0xff]
  %v83 = vld [vmem:[%s1 + $0x1e8] sm:$0xff]
  %v84 = vld [vmem:[%s1 + $0x1f0] sm:$0xff]
  %v85 = vld [vmem:[%s1 + $0x1f8] sm:$0xff]
  %v86 = vld [vmem:[%s1 + $0x200] sm:$0xff]
  %v87 = vld [vmem:[%s1 + $0x208] sm:$0xff]
  %v88 = vld [vmem:[%s1 + $0x210] sm:$0xff]
  %v89 = vld [vmem:[%s1 + $0x218] sm:$0xff]
  %v90 = vld [vmem:[%s1 + $0x220] sm:$0xff]
  %v91 = vld [vmem:[%s1 + $0x228] sm:$0xff]
  %v92 = vld [vmem:[%s1 + $0x230] sm:$0xff]
  %v93 = vld [vmem:[%s1 + $0x238] sm:$0xff]
  %v94 = vld [vmem:[%s1 + $0x240] sm:$0xff]
  %v95 = vld [vmem:[%s1 + $0x248] sm:$0xff]
  %v96 = vld [vmem:[%s1 + $0x250] sm:$0xff]
  %v97 = vld [vmem:[%s1 + $0x258] sm:$0xff]
  %v98 = vld [vmem:[%s1 + $0x260] sm:$0xff]
  %v99 = vld [vmem:[%s1 + $0x268] sm:$0xff]
  %v100 = vld [vmem:[%s1 + $0x270] sm:$0xff]
  %v101 = vld [vmem:[%s1 + $0x278] sm:$0xff]
  %v102 = vld [vmem:[%s1 + $0x280] sm:$0xff]
  %v103 = vld [vmem:[%s1 + $0x288] sm:$0xff]
  %v104 = vld [vmem:[%s1 + $0x290] sm:$0xff]
  %v105 = vld [vmem:[%s1 + $0x298] sm:$0xff]
  %v106 = vld [vmem:[%s1 + $0x2a0] sm:$0xff]
  %v107 = vld [vmem:[%s1 + $0x2a8] sm:$0xff]
  %v108 = vld [vmem:[%s1 + $0x2b0] sm:$0xff]
  %v109 = vld [vmem:[%s1 + $0x2b8] sm:$0xff]
  %v110 = vld [vmem:[%s1 + $0x2c0] sm:$0xff]
  %v111 = vld [vmem:[%s1 + $0x2c8] sm:$0xff]
  %v112 = vld [vmem:[%s1 + $0x2d0] sm:$0xff]
  %v113 = vld [vmem:[%s1 + $0x2d8] sm:$0xff]
  %v114 = vld [vmem:[%s1 + $0x2e0] sm:$0xff]
  %v115 = vld [vmem:[%s1 + $0x2e8] sm:$0xff]
  %v116 = vld [vmem:[%s1 + $0x2f0] sm:$0xff]
  %v117 = vld [vmem:[%s1 + $0x2f8] sm:$0xff]
  %v118 = vld [vmem:[%s1 + $0x300] sm:$0xff]
  %v119 = vld [vmem:[%s1 + $0x308] sm:$0xff]
  %v120 = vld [vmem:[%s1 + $0x310] sm:$0xff]
  %v121 = vld [vmem:[%s1 + $0x318] sm:$0xff]
  %v122 = vld [vmem:[%s1 + $0x320] sm:$0xff]
  %v123 = vld [vmem:[%s1 + $0x328] sm:$0xff]
  %v124 = vld [vmem:[%s1 + $0x330] sm:$0xff]
  %v125 = vld [vmem:[%s1 + $0x338] sm:$0xff]
  %v126 = vld [vmem:[%s1 + $0x340] sm:$0xff]
  %v127 = vld [vmem:[%s1 + $0x348] sm:$0xff]
  %v128 = vld [vmem:[%s1 + $0x350] sm:$0xff]
  %v129 = vld [vmem:[%s1 + $0x358] sm:$0xff]
  %v130 = vld [vmem:[%s1 + $0x360] sm:$0xff]
  %v131 = vld [vmem:[%s1 + $0x368] sm:$0xff]
  %v132 = vld [vmem:[%s1 + $0x370] sm:$0xff]
  %v133 = vld [vmem:[%s1 + $0x378] sm:$0xff]
  %v134 = vld [vmem:[%s1 + $0x380] sm:$0xff]
  %v135 = vld [vmem:[%s1 + $0x388] sm:$0xff]
  %v136 = vld [vmem:[%s1 + $0x390] sm:$0xff]
  %v137 = vld [vmem:[%s1 + $0x398] sm:$0xff]
  %v138 = vld [vmem:[%s1 + $0x3a0] sm:$0xff]
  %v139 = vld [vmem:[%s1 + $0x3a8] sm:$0xff]
  %v140 = vld [vmem:[%s1 + $0x3b0] sm:$0xff]
  %v141 = vld [vmem:[%s1 + $0x3b8] sm:$0xff]
  %v142 = vld [vmem:[%s1 + $0x3c0] sm:$0xff]
  %v143 = vld [vmem:[%s1 + $0x3c8] sm:$0xff]
  %v144 = vld [vmem:[%s1 + $0x3d0] sm:$0xff]
  %v145 = vld [vmem:[%s1 + $0x3d8] sm:$0xff]
  %v146 = vld [vmem:[%s1 + $0x3e0] sm:$0xff]
  %v147 = vld [vmem:[%s1 + $0x3e8] sm:$0xff]
  %v148 = vld [vmem:[%s1 + $0x3f0] sm:$0xff]
  %v149 = vld [vmem:[%s1 + $0x3f8] sm:$0xff]
  %v150 = vld [vmem:[%s2] sm:$0xf]
  %v152 = vlaneseq
  %v153 = vshrl.u32 %v152, 7
  %v154 = vsub.s32 0, %v153
  %v155 = vrot.slane %v150, %v154
  %v156 = vlaneseq
  %v157 = vshrl.u32 %v156, 7
  %v158 = vsub.s32 1, %v157
  %v159 = vrot.slane %v150, %v158
  %v160 = vlaneseq
  %v161 = vshrl.u32 %v160, 7
  %v162 = vsub.s32 2, %v161
  %v163 = vrot.slane %v150, %v162
  %v164 = vlaneseq
  %v165 = vshrl.u32 %v164, 7
  %v166 = vsub.s32 3, %v165
  %v167 = vrot.slane %v150, %v166
  %v180 = vunpack.c.l.b16 %v14
  %v181 = vunpack.c.h.b16 %v14
  %v182 = vunpack.c.l.b16 %v15
  %v183 = vunpack.c.h.b16 %v15
  %v184 = vunpack.c.l.b16 %v16
  %v185 = vunpack.c.h.b16 %v16
  %v186 = vunpack.c.l.b16 %v17
  %v187 = vunpack.c.h.b16 %v17
  %v188 = vunpack.c.l.b16 %v18
  %v189 = vunpack.c.h.b16 %v18
  %v190 = vunpack.c.l.b16 %v19
  %v191 = vunpack.c.h.b16 %v19
  %v192 = vunpack.c.l.b16 %v20
  %v193 = vunpack.c.h.b16 %v20
  %v194 = vunpack.c.l.b16 %v21
  %v195 = vunpack.c.h.b16 %v21
  %v196 = vpack.c.b16 %v184, %v180
  %v197 = vpack.c.b16 %v185, %v181
  %v198 = vpack.c.b16 %v186, %v182
  %v199 = vpack.c.b16 %v187, %v183
  %v200 = vpack.c.b16 %v192, %v188
  %v201 = vpack.c.b16 %v193, %v189
  %v202 = vpack.c.b16 %v194, %v190
  %v203 = vpack.c.b16 %v195, %v191
  %v340 = vunpack.c.l.b16 %v22
  %v341 = vunpack.c.h.b16 %v22
  %v342 = vunpack.c.l.b16 %v23
  %v343 = vunpack.c.h.b16 %v23
  %v344 = vunpack.c.l.b16 %v24
  %v345 = vunpack.c.h.b16 %v24
  %v346 = vunpack.c.l.b16 %v25
  %v347 = vunpack.c.h.b16 %v25
  %v348 = vunpack.c.l.b16 %v26
  %v349 = vunpack.c.h.b16 %v26
  %v350 = vunpack.c.l.b16 %v27
  %v351 = vunpack.c.h.b16 %v27
  %v352 = vunpack.c.l.b16 %v28
  %v353 = vunpack.c.h.b16 %v28
  %v354 = vunpack.c.l.b16 %v29
  %v355 = vunpack.c.h.b16 %v29
  %v356 = vunpack.c.l.b16 %v30
  %v357 = vunpack.c.h.b16 %v30
  %v358 = vunpack.c.l.b16 %v31
  %v359 = vunpack.c.h.b16 %v31
  %v360 = vunpack.c.l.b16 %v32
  %v361 = vunpack.c.h.b16 %v32
  %v362 = vunpack.c.l.b16 %v33
  %v363 = vunpack.c.h.b16 %v33
  %v364 = vunpack.c.l.b16 %v34
  %v365 = vunpack.c.h.b16 %v34
  %v366 = vunpack.c.l.b16 %v35
  %v367 = vunpack.c.h.b16 %v35
  %v368 = vunpack.c.l.b16 %v36
  %v369 = vunpack.c.h.b16 %v36
  %v370 = vunpack.c.l.b16 %v37
  %v371 = vunpack.c.h.b16 %v37
  %v372 = vunpack.c.l.b16 %v38
  %v373 = vunpack.c.h.b16 %v38
  %v374 = vunpack.c.l.b16 %v39
  %v375 = vunpack.c.h.b16 %v39
  %v376 = vunpack.c.l.b16 %v40
  %v377 = vunpack.c.h.b16 %v40
  %v378 = vunpack.c.l.b16 %v41
  %v379 = vunpack.c.h.b16 %v41
  %v380 = vunpack.c.l.b16 %v42
  %v381 = vunpack.c.h.b16 %v42
  %v382 = vunpack.c.l.b16 %v43
  %v383 = vunpack.c.h.b16 %v43
  %v384 = vunpack.c.l.b16 %v44
  %v385 = vunpack.c.h.b16 %v44
  %v386 = vunpack.c.l.b16 %v45
  %v387 = vunpack.c.h.b16 %v45
  %v388 = vunpack.c.l.b16 %v46
  %v389 = vunpack.c.h.b16 %v46
  %v390 = vunpack.c.l.b16 %v47
  %v391 = vunpack.c.h.b16 %v47
  %v392 = vunpack.c.l.b16 %v48
  %v393 = vunpack.c.h.b16 %v48
  %v394 = vunpack.c.l.b16 %v49
  %v395 = vunpack.c.h.b16 %v49
  %v396 = vunpack.c.l.b16 %v50
  %v397 = vunpack.c.h.b16 %v50
  %v398 = vunpack.c.l.b16 %v51
  %v399 = vunpack.c.h.b16 %v51
  %v400 = vunpack.c.l.b16 %v52
  %v401 = vunpack.c.h.b16 %v52
  %v402 = vunpack.c.l.b16 %v53
  %v403 = vunpack.c.h.b16 %v53
  %v404 = vunpack.c.l.b16 %v54
  %v405 = vunpack.c.h.b16 %v54
  %v406 = vunpack.c.l.b16 %v55
  %v407 = vunpack.c.h.b16 %v55
  %v408 = vunpack.c.l.b16 %v56
  %v409 = vunpack.c.h.b16 %v56
  %v410 = vunpack.c.l.b16 %v57
  %v411 = vunpack.c.h.b16 %v57
  %v412 = vunpack.c.l.b16 %v58
  %v413 = vunpack.c.h.b16 %v58
  %v414 = vunpack.c.l.b16 %v59
  %v415 = vunpack.c.h.b16 %v59
  %v416 = vunpack.c.l.b16 %v60
  %v417 = vunpack.c.h.b16 %v60
  %v418 = vunpack.c.l.b16 %v61
  %v419 = vunpack.c.h.b16 %v61
  %v420 = vunpack.c.l.b16 %v62
  %v421 = vunpack.c.h.b16 %v62
  %v422 = vunpack.c.l.b16 %v63
  %v423 = vunpack.c.h.b16 %v63
  %v424 = vunpack.c.l.b16 %v64
  %v425 = vunpack.c.h.b16 %v64
  %v426 = vunpack.c.l.b16 %v65
  %v427 = vunpack.c.h.b16 %v65
  %v428 = vunpack.c.l.b16 %v66
  %v429 = vunpack.c.h.b16 %v66
  %v430 = vunpack.c.l.b16 %v67
  %v431 = vunpack.c.h.b16 %v67
  %v432 = vunpack.c.l.b16 %v68
  %v433 = vunpack.c.h.b16 %v68
  %v434 = vunpack.c.l.b16 %v69
  %v435 = vunpack.c.h.b16 %v69
  %v436 = vunpack.c.l.b16 %v70
  %v437 = vunpack.c.h.b16 %v70
  %v438 = vunpack.c.l.b16 %v71
  %v439 = vunpack.c.h.b16 %v71
  %v440 = vunpack.c.l.b16 %v72
  %v441 = vunpack.c.h.b16 %v72
  %v442 = vunpack.c.l.b16 %v73
  %v443 = vunpack.c.h.b16 %v73
  %v444 = vunpack.c.l.b16 %v74
  %v445 = vunpack.c.h.b16 %v74
  %v446 = vunpack.c.l.b16 %v75
  %v447 = vunpack.c.h.b16 %v75
  %v448 = vunpack.c.l.b16 %v76
  %v449 = vunpack.c.h.b16 %v76
  %v450 = vunpack.c.l.b16 %v77
  %v451 = vunpack.c.h.b16 %v77
  %v452 = vunpack.c.l.b16 %v78
  %v453 = vunpack.c.h.b16 %v78
  %v454 = vunpack.c.l.b16 %v79
  %v455 = vunpack.c.h.b16 %v79
  %v456 = vunpack.c.l.b16 %v80
  %v457 = vunpack.c.h.b16 %v80
  %v458 = vunpack.c.l.b16 %v81
  %v459 = vunpack.c.h.b16 %v81
  %v460 = vunpack.c.l.b16 %v82
  %v461 = vunpack.c.h.b16 %v82
  %v462 = vunpack.c.l.b16 %v83
  %v463 = vunpack.c.h.b16 %v83
  %v464 = vunpack.c.l.b16 %v84
  %v465 = vunpack.c.h.b16 %v84
  %v466 = vunpack.c.l.b16 %v85
  %v467 = vunpack.c.h.b16 %v85
  %v468 = vunpack.c.l.b16 %v86
  %v469 = vunpack.c.h.b16 %v86
  %v470 = vunpack.c.l.b16 %v87
  %v471 = vunpack.c.h.b16 %v87
  %v472 = vunpack.c.l.b16 %v88
  %v473 = vunpack.c.h.b16 %v88
  %v474 = vunpack.c.l.b16 %v89
  %v475 = vunpack.c.h.b16 %v89
  %v476 = vunpack.c.l.b16 %v90
  %v477 = vunpack.c.h.b16 %v90
  %v478 = vunpack.c.l.b16 %v91
  %v479 = vunpack.c.h.b16 %v91
  %v480 = vunpack.c.l.b16 %v92
  %v481 = vunpack.c.h.b16 %v92
  %v482 = vunpack.c.l.b16 %v93
  %v483 = vunpack.c.h.b16 %v93
  %v484 = vunpack.c.l.b16 %v94
  %v485 = vunpack.c.h.b16 %v94
  %v486 = vunpack.c.l.b16 %v95
  %v487 = vunpack.c.h.b16 %v95
  %v488 = vunpack.c.l.b16 %v96
  %v489 = vunpack.c.h.b16 %v96
  %v490 = vunpack.c.l.b16 %v97
  %v491 = vunpack.c.h.b16 %v97
  %v492 = vunpack.c.l.b16 %v98
  %v493 = vunpack.c.h.b16 %v98
  %v494 = vunpack.c.l.b16 %v99
  %v495 = vunpack.c.h.b16 %v99
  %v496 = vunpack.c.l.b16 %v100
  %v497 = vunpack.c.h.b16 %v100
  %v498 = vunpack.c.l.b16 %v101
  %v499 = vunpack.c.h.b16 %v101
  %v500 = vunpack.c.l.b16 %v102
  %v501 = vunpack.c.h.b16 %v102
  %v502 = vunpack.c.l.b16 %v103
  %v503 = vunpack.c.h.b16 %v103
  %v504 = vunpack.c.l.b16 %v104
  %v505 = vunpack.c.h.b16 %v104
  %v506 = vunpack.c.l.b16 %v105
  %v507 = vunpack.c.h.b16 %v105
  %v508 = vunpack.c.l.b16 %v106
  %v509 = vunpack.c.h.b16 %v106
  %v510 = vunpack.c.l.b16 %v107
  %v511 = vunpack.c.h.b16 %v107
  %v512 = vunpack.c.l.b16 %v108
  %v513 = vunpack.c.h.b16 %v108
  %v514 = vunpack.c.l.b16 %v109
  %v515 = vunpack.c.h.b16 %v109
  %v516 = vunpack.c.l.b16 %v110
  %v517 = vunpack.c.h.b16 %v110
  %v518 = vunpack.c.l.b16 %v111
  %v519 = vunpack.c.h.b16 %v111
  %v520 = vunpack.c.l.b16 %v112
  %v521 = vunpack.c.h.b16 %v112
  %v522 = vunpack.c.l.b16 %v113
  %v523 = vunpack.c.h.b16 %v113
  %v524 = vunpack.c.l.b16 %v114
  %v525 = vunpack.c.h.b16 %v114
  %v526 = vunpack.c.l.b16 %v115
  %v527 = vunpack.c.h.b16 %v115
  %v528 = vunpack.c.l.b16 %v116
  %v529 = vunpack.c.h.b16 %v116
  %v530 = vunpack.c.l.b16 %v117
  %v531 = vunpack.c.h.b16 %v117
  %v532 = vunpack.c.l.b16 %v118
  %v533 = vunpack.c.h.b16 %v118
  %v534 = vunpack.c.l.b16 %v119
  %v535 = vunpack.c.h.b16 %v119
  %v536 = vunpack.c.l.b16 %v120
  %v537 = vunpack.c.h.b16 %v120
  %v538 = vunpack.c.l.b16 %v121
  %v539 = vunpack.c.h.b16 %v121
  %v540 = vunpack.c.l.b16 %v122
  %v541 = vunpack.c.h.b16 %v122
  %v542 = vunpack.c.l.b16 %v123
  %v543 = vunpack.c.h.b16 %v123
  %v544 = vunpack.c.l.b16 %v124
  %v545 = vunpack.c.h.b16 %v124
  %v546 = vunpack.c.l.b16 %v125
  %v547 = vunpack.c.h.b16 %v125
  %v548 = vunpack.c.l.b16 %v126
  %v549 = vunpack.c.h.b16 %v126
  %v550 = vunpack.c.l.b16 %v127
  %v551 = vunpack.c.h.b16 %v127
  %v552 = vunpack.c.l.b16 %v128
  %v553 = vunpack.c.h.b16 %v128
  %v554 = vunpack.c.l.b16 %v129
  %v555 = vunpack.c.h.b16 %v129
  %v556 = vunpack.c.l.b16 %v130
  %v557 = vunpack.c.h.b16 %v130
  %v558 = vunpack.c.l.b16 %v131
  %v559 = vunpack.c.h.b16 %v131
  %v560 = vunpack.c.l.b16 %v132
  %v561 = vunpack.c.h.b16 %v132
  %v562 = vunpack.c.l.b16 %v133
  %v563 = vunpack.c.h.b16 %v133
  %v564 = vunpack.c.l.b16 %v134
  %v565 = vunpack.c.h.b16 %v134
  %v566 = vunpack.c.l.b16 %v135
  %v567 = vunpack.c.h.b16 %v135
  %v568 = vunpack.c.l.b16 %v136
  %v569 = vunpack.c.h.b16 %v136
  %v570 = vunpack.c.l.b16 %v137
  %v571 = vunpack.c.h.b16 %v137
  %v572 = vunpack.c.l.b16 %v138
  %v573 = vunpack.c.h.b16 %v138
  %v574 = vunpack.c.l.b16 %v139
  %v575 = vunpack.c.h.b16 %v139
  %v576 = vunpack.c.l.b16 %v140
  %v577 = vunpack.c.h.b16 %v140
  %v578 = vunpack.c.l.b16 %v141
  %v579 = vunpack.c.h.b16 %v141
  %v580 = vunpack.c.l.b16 %v142
  %v581 = vunpack.c.h.b16 %v142
  %v582 = vunpack.c.l.b16 %v143
  %v583 = vunpack.c.h.b16 %v143
  %v584 = vunpack.c.l.b16 %v144
  %v585 = vunpack.c.h.b16 %v144
  %v586 = vunpack.c.l.b16 %v145
  %v587 = vunpack.c.h.b16 %v145
  %v588 = vunpack.c.l.b16 %v146
  %v589 = vunpack.c.h.b16 %v146
  %v590 = vunpack.c.l.b16 %v147
  %v591 = vunpack.c.h.b16 %v147
  %v592 = vunpack.c.l.b16 %v148
  %v593 = vunpack.c.h.b16 %v148
  %v594 = vunpack.c.l.b16 %v149
  %v595 = vunpack.c.h.b16 %v149
  %v596 = vpack.c.b16 %v344, %v340
  %v597 = vpack.c.b16 %v345, %v341
  %v598 = vpack.c.b16 %v346, %v342
  %v599 = vpack.c.b16 %v347, %v343
  %v600 = vpack.c.b16 %v352, %v348
  %v601 = vpack.c.b16 %v353, %v349
  %v602 = vpack.c.b16 %v354, %v350
  %v603 = vpack.c.b16 %v355, %v351
  %v604 = vpack.c.b16 %v360, %v356
  %v605 = vpack.c.b16 %v361, %v357
  %v606 = vpack.c.b16 %v362, %v358
  %v607 = vpack.c.b16 %v363, %v359
  %v608 = vpack.c.b16 %v368, %v364
  %v609 = vpack.c.b16 %v369, %v365
  %v610 = vpack.c.b16 %v370, %v366
  %v611 = vpack.c.b16 %v371, %v367
  %v612 = vpack.c.b16 %v376, %v372
  %v613 = vpack.c.b16 %v377, %v373
  %v614 = vpack.c.b16 %v378, %v374
  %v615 = vpack.c.b16 %v379, %v375
  %v616 = vpack.c.b16 %v384, %v380
  %v617 = vpack.c.b16 %v385, %v381
  %v618 = vpack.c.b16 %v386, %v382
  %v619 = vpack.c.b16 %v387, %v383
  %v620 = vpack.c.b16 %v392, %v388
  %v621 = vpack.c.b16 %v393, %v389
  %v622 = vpack.c.b16 %v394, %v390
  %v623 = vpack.c.b16 %v395, %v391
  %v624 = vpack.c.b16 %v400, %v396
  %v625 = vpack.c.b16 %v401, %v397
  %v626 = vpack.c.b16 %v402, %v398
  %v627 = vpack.c.b16 %v403, %v399
  %v628 = vpack.c.b16 %v408, %v404
  %v629 = vpack.c.b16 %v409, %v405
  %v630 = vpack.c.b16 %v410, %v406
  %v631 = vpack.c.b16 %v411, %v407
  %v632 = vpack.c.b16 %v416, %v412
  %v633 = vpack.c.b16 %v417, %v413
  %v634 = vpack.c.b16 %v418, %v414
  %v635 = vpack.c.b16 %v419, %v415
  %v636 = vpack.c.b16 %v424, %v420
  %v637 = vpack.c.b16 %v425, %v421
  %v638 = vpack.c.b16 %v426, %v422
  %v639 = vpack.c.b16 %v427, %v423
  %v640 = vpack.c.b16 %v432, %v428
  %v641 = vpack.c.b16 %v433, %v429
  %v642 = vpack.c.b16 %v434, %v430
  %v643 = vpack.c.b16 %v435, %v431
  %v644 = vpack.c.b16 %v440, %v436
  %v645 = vpack.c.b16 %v441, %v437
  %v646 = vpack.c.b16 %v442, %v438
  %v647 = vpack.c.b16 %v443, %v439
  %v648 = vpack.c.b16 %v448, %v444
  %v649 = vpack.c.b16 %v449, %v445
  %v650 = vpack.c.b16 %v450, %v446
  %v651 = vpack.c.b16 %v451, %v447
  %v652 = vpack.c.b16 %v456, %v452
  %v653 = vpack.c.b16 %v457, %v453
  %v654 = vpack.c.b16 %v458, %v454
  %v655 = vpack.c.b16 %v459, %v455
  %v656 = vpack.c.b16 %v464, %v460
  %v657 = vpack.c.b16 %v465, %v461
  %v658 = vpack.c.b16 %v466, %v462
  %v659 = vpack.c.b16 %v467, %v463
  %v660 = vpack.c.b16 %v472, %v468
  %v661 = vpack.c.b16 %v473, %v469
  %v662 = vpack.c.b16 %v474, %v470
  %v663 = vpack.c.b16 %v475, %v471
  %v664 = vpack.c.b16 %v480, %v476
  %v665 = vpack.c.b16 %v481, %v477
  %v666 = vpack.c.b16 %v482, %v478
  %v667 = vpack.c.b16 %v483, %v479
  %v668 = vpack.c.b16 %v488, %v484
  %v669 = vpack.c.b16 %v489, %v485
  %v670 = vpack.c.b16 %v490, %v486
  %v671 = vpack.c.b16 %v491, %v487
  %v672 = vpack.c.b16 %v496, %v492
  %v673 = vpack.c.b16 %v497, %v493
  %v674 = vpack.c.b16 %v498, %v494
  %v675 = vpack.c.b16 %v499, %v495
  %v676 = vpack.c.b16 %v504, %v500
  %v677 = vpack.c.b16 %v505, %v501
  %v678 = vpack.c.b16 %v506, %v502
  %v679 = vpack.c.b16 %v507, %v503
  %v680 = vpack.c.b16 %v512, %v508
  %v681 = vpack.c.b16 %v513, %v509
  %v682 = vpack.c.b16 %v514, %v510
  %v683 = vpack.c.b16 %v515, %v511
  %v684 = vpack.c.b16 %v520, %v516
  %v685 = vpack.c.b16 %v521, %v517
  %v686 = vpack.c.b16 %v522, %v518
  %v687 = vpack.c.b16 %v523, %v519
  %v688 = vpack.c.b16 %v528, %v524
  %v689 = vpack.c.b16 %v529, %v525
  %v690 = vpack.c.b16 %v530, %v526
  %v691 = vpack.c.b16 %v531, %v527
  %v692 = vpack.c.b16 %v536, %v532
  %v693 = vpack.c.b16 %v537, %v533
  %v694 = vpack.c.b16 %v538, %v534
  %v695 = vpack.c.b16 %v539, %v535
  %v696 = vpack.c.b16 %v544, %v540
  %v697 = vpack.c.b16 %v545, %v541
  %v698 = vpack.c.b16 %v546, %v542
  %v699 = vpack.c.b16 %v547, %v543
  %v700 = vpack.c.b16 %v552, %v548
  %v701 = vpack.c.b16 %v553, %v549
  %v702 = vpack.c.b16 %v554, %v550
  %v703 = vpack.c.b16 %v555, %v551
  %v704 = vpack.c.b16 %v560, %v556
  %v705 = vpack.c.b16 %v561, %v557
  %v706 = vpack.c.b16 %v562, %v558
  %v707 = vpack.c.b16 %v563, %v559
  %v708 = vpack.c.b16 %v568, %v564
  %v709 = vpack.c.b16 %v569, %v565
  %v710 = vpack.c.b16 %v570, %v566
  %v711 = vpack.c.b16 %v571, %v567
  %v712 = vpack.c.b16 %v576, %v572
  %v713 = vpack.c.b16 %v577, %v573
  %v714 = vpack.c.b16 %v578, %v574
  %v715 = vpack.c.b16 %v579, %v575
  %v716 = vpack.c.b16 %v584, %v580
  %v717 = vpack.c.b16 %v585, %v581
  %v718 = vpack.c.b16 %v586, %v582
  %v719 = vpack.c.b16 %v587, %v583
  %v720 = vpack.c.b16 %v592, %v588
  %v721 = vpack.c.b16 %v593, %v589
  %v722 = vpack.c.b16 %v594, %v590
  %v723 = vpack.c.b16 %v595, %v591
  %852 = vmatprep.subr.bf16.mxu0 %v597
  %853 = vmatpush1.bf16.msra.mxu0 %v596
  %854 = vmatprep.subr.bf16.mxu0 %v601
  %855 = vmatpush1.bf16.msra.mxu0 %v600
  %856 = vmatprep.subr.bf16.mxu0 %v605
  %857 = vmatpush1.bf16.msra.mxu0 %v604
  %858 = vmatprep.subr.bf16.mxu0 %v609
  %859 = vmatpush1.bf16.msra.mxu0 %v608
  %860 = vmatprep.subr.bf16.mxu0 %v613
  %861 = vmatpush1.bf16.msra.mxu0 %v612
  %862 = vmatprep.subr.bf16.mxu0 %v617
  %863 = vmatpush1.bf16.msra.mxu0 %v616
  %864 = vmatprep.subr.bf16.mxu0 %v621
  %865 = vmatpush1.bf16.msra.mxu0 %v620
  %866 = vmatprep.subr.bf16.mxu0 %v625
  %867 = vmatpush1.bf16.msra.mxu0 %v624
  %868 = vmatprep.subr.bf16.mxu0 %v629
  %869 = vmatpush1.bf16.msra.mxu0 %v628
  %870 = vmatprep.subr.bf16.mxu0 %v633
  %871 = vmatpush1.bf16.msra.mxu0 %v632
  %872 = vmatprep.subr.bf16.mxu0 %v637
  %873 = vmatpush1.bf16.msra.mxu0 %v636
  %874 = vmatprep.subr.bf16.mxu0 %v641
  %875 = vmatpush1.bf16.msra.mxu0 %v640
  %876 = vmatprep.subr.bf16.mxu0 %v645
  %877 = vmatpush1.bf16.msra.mxu0 %v644
  %878 = vmatprep.subr.bf16.mxu0 %v649
  %879 = vmatpush1.bf16.msra.mxu0 %v648
  %880 = vmatprep.subr.bf16.mxu0 %v653
  %881 = vmatpush1.bf16.msra.mxu0 %v652
  %882 = vmatprep.subr.bf16.mxu0 %v657
  %883 = vmatpush1.bf16.msra.mxu0 %v656
  %884 = vmatprep.mubr.bf16.mxu0 %v197
  %885 = vmatmul.mubr.bf16.gmra.mrb[0].mxu0 %v196
  %v886 = vpop.f32.mrb[0].mxu0
  %v887 = vadd.f32 %v155, %v886
  %v888 = vpop.f32.mrb[0].mxu0
  %v889 = vadd.f32 %v159, %v888
  %v890 = vpop.f32.mrb[0].mxu0
  %v891 = vadd.f32 %v155, %v890
  %v892 = vpop.f32.mrb[0].mxu0
  %v893 = vadd.f32 %v159, %v892
  %894 = vmatprep.mubr.bf16.mxu0 %v201
  %895 = vmatmul.mubr.bf16.gmra.mrb[0].mxu0 %v200
  %v896 = vpop.f32.mrb[0].mxu0
  %v897 = vadd.f32 %v155, %v896
  %v898 = vpop.f32.mrb[0].mxu0
  %v899 = vadd.f32 %v159, %v898
  %v900 = vpop.f32.mrb[0].mxu0
  %v901 = vadd.f32 %v155, %v900
  %v902 = vpop.f32.mrb[0].mxu0
  %v903 = vadd.f32 %v159, %v902
  %904 = vdwg.mxu0
  %905 = vmatprep.subr.bf16.mxu0 %v661
  %906 = vmatpush1.bf16.msra.mxu0 %v660
  %907 = vmatprep.subr.bf16.mxu0 %v665
  %908 = vmatpush1.bf16.msra.mxu0 %v664
  %909 = vmatprep.subr.bf16.mxu0 %v669
  %910 = vmatpush1.bf16.msra.mxu0 %v668
  %911 = vmatprep.subr.bf16.mxu0 %v673
  %912 = vmatpush1.bf16.msra.mxu0 %v672
  %913 = vmatprep.subr.bf16.mxu0 %v677
  %914 = vmatpush1.bf16.msra.mxu0 %v676
  %915 = vmatprep.subr.bf16.mxu0 %v681
  %916 = vmatpush1.bf16.msra.mxu0 %v680
  %917 = vmatprep.subr.bf16.mxu0 %v685
  %918 = vmatpush1.bf16.msra.mxu0 %v684
  %919 = vmatprep.subr.bf16.mxu0 %v689
  %920 = vmatpush1.bf16.msra.mxu0 %v688
  %921 = vmatprep.subr.bf16.mxu0 %v693
  %922 = vmatpush1.bf16.msra.mxu0 %v692
  %923 = vmatprep.subr.bf16.mxu0 %v697
  %924 = vmatpush1.bf16.msra.mxu0 %v696
  %925 = vmatprep.subr.bf16.mxu0 %v701
  %926 = vmatpush1.bf16.msra.mxu0 %v700
  %927 = vmatprep.subr.bf16.mxu0 %v705
  %928 = vmatpush1.bf16.msra.mxu0 %v704
  %929 = vmatprep.subr.bf16.mxu0 %v709
  %930 = vmatpush1.bf16.msra.mxu0 %v708
  %931 = vmatprep.subr.bf16.mxu0 %v713
  %932 = vmatpush1.bf16.msra.mxu0 %v712
  %933 = vmatprep.subr.bf16.mxu0 %v717
  %934 = vmatpush1.bf16.msra.mxu0 %v716
  %935 = vmatprep.subr.bf16.mxu0 %v721
  %936 = vmatpush1.bf16.msra.mxu0 %v720
  %937 = vmatprep.mubr.bf16.mxu0 %v199
  %938 = vmatmul.mubr.bf16.gmra.mrb[0].mxu0 %v198
  %v939 = vpop.f32.mrb[0].mxu0
  %v940 = vadd.f32 %v887, %v939
  %v941 = vpop.f32.mrb[0].mxu0
  %v942 = vadd.f32 %v889, %v941
  %v943 = vpop.f32.mrb[0].mxu0
  %v944 = vadd.f32 %v891, %v943
  %v945 = vpop.f32.mrb[0].mxu0
  %v946 = vadd.f32 %v893, %v945
  %947 = vmatprep.mubr.bf16.mxu0 %v203
  %948 = vmatmul.mubr.bf16.gmra.mrb[0].mxu0 %v202
  %v949 = vpop.f32.mrb[0].mxu0
  %v950 = vadd.f32 %v897, %v949
  %v951 = vpop.f32.mrb[0].mxu0
  %v952 = vadd.f32 %v899, %v951
  %v953 = vpop.f32.mrb[0].mxu0
  %v954 = vadd.f32 %v901, %v953
  %v955 = vpop.f32.mrb[0].mxu0
  %v956 = vadd.f32 %v903, %v955
  %957 = vdwg.mxu0
  %958 = vmatprep.subr.bf16.mxu0 %v599
  %959 = vmatpush1.bf16.msra.mxu0 %v598
  %960 = vmatprep.subr.bf16.mxu0 %v603
  %961 = vmatpush1.bf16.msra.mxu0 %v602
  %962 = vmatprep.subr.bf16.mxu0 %v607
  %963 = vmatpush1.bf16.msra.mxu0 %v606
  %964 = vmatprep.subr.bf16.mxu0 %v611
  %965 = vmatpush1.bf16.msra.mxu0 %v610
  %966 = vmatprep.subr.bf16.mxu0 %v615
  %967 = vmatpush1.bf16.msra.mxu0 %v614
  %968 = vmatprep.subr.bf16.mxu0 %v619
  %969 = vmatpush1.bf16.msra.mxu0 %v618
  %970 = vmatprep.subr.bf16.mxu0 %v623
  %971 = vmatpush1.bf16.msra.mxu0 %v622
  %972 = vmatprep.subr.bf16.mxu0 %v627
  %973 = vmatpush1.bf16.msra.mxu0 %v626
  %974 = vmatprep.subr.bf16.mxu0 %v631
  %975 = vmatpush1.bf16.msra.mxu0 %v630
  %976 = vmatprep.subr.bf16.mxu0 %v635
  %977 = vmatpush1.bf16.msra.mxu0 %v634
  %978 = vmatprep.subr.bf16.mxu0 %v639
  %979 = vmatpush1.bf16.msra.mxu0 %v638
  %980 = vmatprep.subr.bf16.mxu0 %v643
  %981 = vmatpush1.bf16.msra.mxu0 %v642
  %982 = vmatprep.subr.bf16.mxu0 %v647
  %983 = vmatpush1.bf16.msra.mxu0 %v646
  %984 = vmatprep.subr.bf16.mxu0 %v651
  %985 = vmatpush1.bf16.msra.mxu0 %v650
  %986 = vmatprep.subr.bf16.mxu0 %v655
  %987 = vmatpush1.bf16.msra.mxu0 %v654
  %988 = vmatprep.subr.bf16.mxu0 %v659
  %989 = vmatpush1.bf16.msra.mxu0 %v658
  %990 = vmatprep.mubr.bf16.mxu0 %v197
  %991 = vmatmul.mubr.bf16.gmra.mrb[0].mxu0 %v196
  %v992 = vpop.f32.mrb[0].mxu0
  %v993 = vadd.f32 %v163, %v992
  %v994 = vpop.f32.mrb[0].mxu0
  %v995 = vadd.f32 %v167, %v994
  %v996 = vpop.f32.mrb[0].mxu0
  %v997 = vadd.f32 %v163, %v996
  %v998 = vpop.f32.mrb[0].mxu0
  %v999 = vadd.f32 %v167, %v998
  %1000 = vmatprep.mubr.bf16.mxu0 %v201
  %1001 = vmatmul.mubr.bf16.gmra.mrb[0].mxu0 %v200
  %v1002 = vpop.f32.mrb[0].mxu0
  %v1003 = vadd.f32 %v163, %v1002
  %v1004 = vpop.f32.mrb[0].mxu0
  %v1005 = vadd.f32 %v167, %v1004
  %v1006 = vpop.f32.mrb[0].mxu0
  %v1007 = vadd.f32 %v163, %v1006
  %v1008 = vpop.f32.mrb[0].mxu0
  %v1009 = vadd.f32 %v167, %v1008
  %1010 = vdwg.mxu0
  %1011 = vmatprep.subr.bf16.mxu0 %v663
  %1012 = vmatpush1.bf16.msra.mxu0 %v662
  %1013 = vmatprep.subr.bf16.mxu0 %v667
  %1014 = vmatpush1.bf16.msra.mxu0 %v666
  %1015 = vmatprep.subr.bf16.mxu0 %v671
  %1016 = vmatpush1.bf16.msra.mxu0 %v670
  %1017 = vmatprep.subr.bf16.mxu0 %v675
  %1018 = vmatpush1.bf16.msra.mxu0 %v674
  %1019 = vmatprep.subr.bf16.mxu0 %v679
  %1020 = vmatpush1.bf16.msra.mxu0 %v678
  %1021 = vmatprep.subr.bf16.mxu0 %v683
  %1022 = vmatpush1.bf16.msra.mxu0 %v682
  %1023 = vmatprep.subr.bf16.mxu0 %v687
  %1024 = vmatpush1.bf16.msra.mxu0 %v686
  %1025 = vmatprep.subr.bf16.mxu0 %v691
  %1026 = vmatpush1.bf16.msra.mxu0 %v690
  %1027 = vmatprep.subr.bf16.mxu0 %v695
  %1028 = vmatpush1.bf16.msra.mxu0 %v694
  %1029 = vmatprep.subr.bf16.mxu0 %v699
  %1030 = vmatpush1.bf16.msra.mxu0 %v698
  %1031 = vmatprep.subr.bf16.mxu0 %v703
  %1032 = vmatpush1.bf16.msra.mxu0 %v702
  %1033 = vmatprep.subr.bf16.mxu0 %v707
  %1034 = vmatpush1.bf16.msra.mxu0 %v706
  %1035 = vmatprep.subr.bf16.mxu0 %v711
  %1036 = vmatpush1.bf16.msra.mxu0 %v710
  %1037 = vmatprep.subr.bf16.mxu0 %v715
  %1038 = vmatpush1.bf16.msra.mxu0 %v714
  %1039 = vmatprep.subr.bf16.mxu0 %v719
  %1040 = vmatpush1.bf16.msra.mxu0 %v718
  %1041 = vmatprep.subr.bf16.mxu0 %v723
  %1042 = vmatpush1.bf16.msra.mxu0 %v722
  %1043 = vmatprep.mubr.bf16.mxu0 %v199
  %1044 = vmatmul.mubr.bf16.gmra.mrb[0].mxu0 %v198
  %v1045 = vpop.f32.mrb[0].mxu0
  %v1046 = vadd.f32 %v993, %v1045
  %v1047 = vpop.f32.mrb[0].mxu0
  %v1048 = vadd.f32 %v995, %v1047
  %v1049 = vpop.f32.mrb[0].mxu0
  %v1050 = vadd.f32 %v997, %v1049
  %v1051 = vpop.f32.mrb[0].mxu0
  %v1052 = vadd.f32 %v999, %v1051
  %1053 = vmatprep.mubr.bf16.mxu0 %v203
  %1054 = vmatmul.mubr.bf16.gmra.mrb[0].mxu0 %v202
  %v1055 = vpop.f32.mrb[0].mxu0
  %v1056 = vadd.f32 %v1003, %v1055
  %v1057 = vpop.f32.mrb[0].mxu0
  %v1058 = vadd.f32 %v1005, %v1057
  %v1059 = vpop.f32.mrb[0].mxu0
  %v1060 = vadd.f32 %v1007, %v1059
  %v1061 = vpop.f32.mrb[0].mxu0
  %v1062 = vadd.f32 %v1009, %v1061
  %1063 = vdwg.mxu0
  %v1064 = vmax.f32 %v940, 0.0
  %v1065 = vmax.f32 %v942, 0.0
  %v1066 = vmax.f32 %v1046, 0.0
  %v1067 = vmax.f32 %v1048, 0.0
  %v1068 = vmax.f32 %v944, 0.0
  %v1069 = vmax.f32 %v946, 0.0
  %v1070 = vmax.f32 %v1050, 0.0
  %v1071 = vmax.f32 %v1052, 0.0
  %v1072 = vmax.f32 %v950, 0.0
  %v1073 = vmax.f32 %v952, 0.0
  %v1074 = vmax.f32 %v1056, 0.0
  %v1075 = vmax.f32 %v1058, 0.0
  %v1076 = vmax.f32 %v954, 0.0
  %v1077 = vmax.f32 %v956, 0.0
  %v1078 = vmax.f32 %v1060, 0.0
  %v1079 = vmax.f32 %v1062, 0.0
  %v1080 = vpack.c.bf16 %v1068, %v1064
  %v1081 = vpack.c.bf16 %v1069, %v1065
  %v1082 = vpack.c.bf16 %v1070, %v1066
  %v1083 = vpack.c.bf16 %v1071, %v1067
  %v1084 = vpack.c.bf16 %v1076, %v1072
  %v1085 = vpack.c.bf16 %v1077, %v1073
  %v1086 = vpack.c.bf16 %v1078, %v1074
  %v1087 = vpack.c.bf16 %v1079, %v1075
  %v1096 = vunpack.c.l.b16 %v1080
  %v1097 = vunpack.c.l.b16 %v1081
  %v1098 = vunpack.c.l.b16 %v1082
  %v1099 = vunpack.c.l.b16 %v1083
  %v1100 = vunpack.c.h.b16 %v1080
  %v1101 = vunpack.c.h.b16 %v1081
  %v1102 = vunpack.c.h.b16 %v1082
  %v1103 = vunpack.c.h.b16 %v1083
  %v1104 = vunpack.c.l.b16 %v1084
  %v1105 = vunpack.c.l.b16 %v1085
  %v1106 = vunpack.c.l.b16 %v1086
  %v1107 = vunpack.c.l.b16 %v1087
  %v1108 = vunpack.c.h.b16 %v1084
  %v1109 = vunpack.c.h.b16 %v1085
  %v1110 = vunpack.c.h.b16 %v1086
  %v1111 = vunpack.c.h.b16 %v1087
  %v1112 = vpack.c.b16 %v1097, %v1096
  %v1113 = vpack.c.b16 %v1099, %v1098
  %v1114 = vpack.c.b16 %v1101, %v1100
  %v1115 = vpack.c.b16 %v1103, %v1102
  %v1116 = vpack.c.b16 %v1105, %v1104
  %v1117 = vpack.c.b16 %v1107, %v1106
  %v1118 = vpack.c.b16 %v1109, %v1108
  %v1119 = vpack.c.b16 %v1111, %v1110
  %1128 = vst [vmem:[%s3] sm:$0xff] %v1112
  %1129 = vst [vmem:[%s3 + $0x8] sm:$0xff] %v1113
  %1130 = vst [vmem:[%s3 + $0x10] sm:$0xff] %v1114
  %1131 = vst [vmem:[%s3 + $0x18] sm:$0xff] %v1115
  %1132 = vst [vmem:[%s3 + $0x20] sm:$0xff] %v1116
  %1133 = vst [vmem:[%s3 + $0x28] sm:$0xff] %v1117
  %1134 = vst [vmem:[%s3 + $0x30] sm:$0xff] %v1118
  %1135 = vst [vmem:[%s3 + $0x38] sm:$0xff] %v1119
  // Predicated region
  $region14: #{vae_forward.8} parent=0 // pred_check
    _
  $region15: #{vae_forward.8} parent=0 // pred_check_branch
    %1137 = sbr.rel (0) target = $region17
  $region16: #{vae_forward.8} parent=0 // pred_region
    _
  $region17: #{vae_forward.8} parent=0 // pred_fallthru
    _
  // Predicated region
  $region18: #{vae_forward.8} parent=0 // pred_check
    _
  $region19: #{vae_forward.8} parent=0 // pred_check_branch
    %1139 = sbr.rel (0) target = $region21
  $region20: #{vae_forward.8} parent=0 // pred_region
    _
  $region21: #{vae_forward.8} parent=0 // pred_fallthru
    _

// kernel: vae_forward.7
$region0: #{vae_forward.7}
  #allocation0 [shape = 'u32[]', space=smem, size = 0x4, offset = 0x4, fixed_abs, tag = 'smem constant byte address 0x4 - core index']
  #allocation1 [shape = 'u32[144,128]{1,0:T(1,128)}', space=vmem, size = 0x12000, scoped, tag = 'internal scratch']
  %s0 = inlined_call_operand.vmem [shape: bf16[2,2048], index: 0, kind: input, shape index: {}]
  %s1 = inlined_call_operand.vmem [shape: bf16[2048,256], index: 1, kind: input, shape index: {}]
  %s2 = inlined_call_operand.vmem [shape: f32[1,256], index: 2, kind: input, shape index: {}]
  %s3 = inlined_call_operand.vmem [shape: f32[2,128], index: 3, kind: input, shape index: {}]
  %s4 = inlined_call_operand.vmem [shape: bf16[128,2048], index: 4, kind: input, shape index: {}]
  %s5 = inlined_call_operand.vmem [shape: f32[1,2048], index: 5, kind: input, shape index: {}]
  %s6 = inlined_call_operand.vmem [shape: bf16[2,2048], index: 6, kind: output, shape index: {}]
  %s7 = sld [smem:[#allocation0]]
  $region34: #{vae_forward.7} parent=0
    _
  %s9 = ssub.s32 1, %s7
  %s10 = scalar_select 0, %s9, %s7
  // Predicated region
  $region2: #{vae_forward.7} parent=0 // pred_check
    _
  $region3: #{vae_forward.7} parent=0 // pred_check_branch
    %12 = sbr.rel (0) target = $region5
  $region4: #{vae_forward.7} parent=0 // pred_region
    _
  $region5: #{vae_forward.7} parent=0 // pred_fallthru
    _
  // Predicated region
  $region6: #{vae_forward.7} parent=0 // pred_check
    _
  $region7: #{vae_forward.7} parent=0 // pred_check_branch
    %14 = sbr.rel (0) target = $region9
  $region8: #{vae_forward.7} parent=0 // pred_region
    _
  $region9: #{vae_forward.7} parent=0 // pred_fallthru
    _
  // Predicated region
  $region10: #{vae_forward.7} parent=0 // pred_check
    _
  $region11: #{vae_forward.7} parent=0 // pred_check_branch
    %16 = sbr.rel (0) target = $region13
  $region12: #{vae_forward.7} parent=0 // pred_region
    _
  $region13: #{vae_forward.7} parent=0 // pred_fallthru
    _
  // Predicated region
  $region14: #{vae_forward.7} parent=0 // pred_check
    _
  $region15: #{vae_forward.7} parent=0 // pred_check_branch
    %18 = sbr.rel (0) target = $region17
  $region16: #{vae_forward.7} parent=0 // pred_region
    _
  $region17: #{vae_forward.7} parent=0 // pred_fallthru
    _
  // Predicated region
  $region18: #{vae_forward.7} parent=0 // pred_check
    _
  $region19: #{vae_forward.7} parent=0 // pred_check_branch
    %20 = sbr.rel (0) target = $region21
  $region20: #{vae_forward.7} parent=0 // pred_region
    _
  $region21: #{vae_forward.7} parent=0 // pred_fallthru
    _
  // Predicated region
  $region22: #{vae_forward.7} parent=0 // pred_check
    _
  $region23: #{vae_forward.7} parent=0 // pred_check_branch
    %22 = sbr.rel (0) target = $region25
  $region24: #{vae_forward.7} parent=0 // pred_region
    _
  $region25: #{vae_forward.7} parent=0 // pred_fallthru
    _
  %v24 = vld [vmem:[%s0] sm:$0xff]
  %v25 = vld [vmem:[%s0 + $0x8] sm:$0xff]
  %v26 = vld [vmem:[%s1] sm:$0xff]
  %v27 = vld [vmem:[%s1 + $0x8] sm:$0xff]
  %v28 = vld [vmem:[%s1 + $0x10] sm:$0xff]
  %v29 = vld [vmem:[%s1 + $0x18] sm:$0xff]
  %v30 = vld [vmem:[%s1 + $0x20] sm:$0xff]
  %v31 = vld [vmem:[%s1 + $0x28] sm:$0xff]
  %v32 = vld [vmem:[%s1 + $0x30] sm:$0xff]
  %v33 = vld [vmem:[%s1 + $0x38] sm:$0xff]
  %v34 = vld [vmem:[%s1 + $0x40] sm:$0xff]
  %v35 = vld [vmem:[%s1 + $0x48] sm:$0xff]
  %v36 = vld [vmem:[%s1 + $0x50] sm:$0xff]
  %v37 = vld [vmem:[%s1 + $0x58] sm:$0xff]
  %v38 = vld [vmem:[%s1 + $0x60] sm:$0xff]
  %v39 = vld [vmem:[%s1 + $0x68] sm:$0xff]
  %v40 = vld [vmem:[%s1 + $0x70] sm:$0xff]
  %v41 = vld [vmem:[%s1 + $0x78] sm:$0xff]
  %v42 = vld [vmem:[%s1 + $0x80] sm:$0xff]
  %v43 = vld [vmem:[%s1 + $0x88] sm:$0xff]
  %v44 = vld [vmem:[%s1 + $0x90] sm:$0xff]
  %v45 = vld [vmem:[%s1 + $0x98] sm:$0xff]
  %v46 = vld [vmem:[%s1 + $0xa0] sm:$0xff]
  %v47 = vld [vmem:[%s1 + $0xa8] sm:$0xff]
  %v48 = vld [vmem:[%s1 + $0xb0] sm:$0xff]
  %v49 = vld [vmem:[%s1 + $0xb8] sm:$0xff]
  %v50 = vld [vmem:[%s1 + $0xc0] sm:$0xff]
  %v51 = vld [vmem:[%s1 + $0xc8] sm:$0xff]
  %v52 = vld [vmem:[%s1 + $0xd0] sm:$0xff]
  %v53 = vld [vmem:[%s1 + $0xd8] sm:$0xff]
  %v54 = vld [vmem:[%s1 + $0xe0] sm:$0xff]
  %v55 = vld [vmem:[%s1 + $0xe8] sm:$0xff]
  %v56 = vld [vmem:[%s1 + $0xf0] sm:$0xff]
  %v57 = vld [vmem:[%s1 + $0xf8] sm:$0xff]
  %v58 = vld [vmem:[%s1 + $0x100] sm:$0xff]
  %v59 = vld [vmem:[%s1 + $0x108] sm:$0xff]
  %v60 = vld [vmem:[%s1 + $0x110] sm:$0xff]
  %v61 = vld [vmem:[%s1 + $0x118] sm:$0xff]
  %v62 = vld [vmem:[%s1 + $0x120] sm:$0xff]
  %v63 = vld [vmem:[%s1 + $0x128] sm:$0xff]
  %v64 = vld [vmem:[%s1 + $0x130] sm:$0xff]
  %v65 = vld [vmem:[%s1 + $0x138] sm:$0xff]
  %v66 = vld [vmem:[%s1 + $0x140] sm:$0xff]
  %v67 = vld [vmem:[%s1 + $0x148] sm:$0xff]
  %v68 = vld [vmem:[%s1 + $0x150] sm:$0xff]
  %v69 = vld [vmem:[%s1 + $0x158] sm:$0xff]
  %v70 = vld [vmem:[%s1 + $0x160] sm:$0xff]
  %v71 = vld [vmem:[%s1 + $0x168] sm:$0xff]
  %v72 = vld [vmem:[%s1 + $0x170] sm:$0xff]
  %v73 = vld [vmem:[%s1 + $0x178] sm:$0xff]
  %v74 = vld [vmem:[%s1 + $0x180] sm:$0xff]
  %v75 = vld [vmem:[%s1 + $0x188] sm:$0xff]
  %v76 = vld [vmem:[%s1 + $0x190] sm:$0xff]
  %v77 = vld [vmem:[%s1 + $0x198] sm:$0xff]
  %v78 = vld [vmem:[%s1 + $0x1a0] sm:$0xff]
  %v79 = vld [vmem:[%s1 + $0x1a8] sm:$0xff]
  %v80 = vld [vmem:[%s1 + $0x1b0] sm:$0xff]
  %v81 = vld [vmem:[%s1 + $0x1b8] sm:$0xff]
  %v82 = vld [vmem:[%s1 + $0x1c0] sm:$0xff]
  %v83 = vld [vmem:[%s1 + $0x1c8] sm:$0xff]
  %v84 = vld [vmem:[%s1 + $0x1d0] sm:$0xff]
  %v85 = vld [vmem:[%s1 + $0x1d8] sm:$0xff]
  %v86 = vld [vmem:[%s1 + $0x1e0] sm:$0xff]
  %v87 = vld [vmem:[%s1 + $0x1e8] sm:$0xff]
  %v88 = vld [vmem:[%s1 + $0x1f0] sm:$0xff]
  %v89 = vld [vmem:[%s1 + $0x1f8] sm:$0xff]
  %v90 = vld [vmem:[%s1 + $0x200] sm:$0xff]
  %v91 = vld [vmem:[%s1 + $0x208] sm:$0xff]
  %v92 = vld [vmem:[%s1 + $0x210] sm:$0xff]
  %v93 = vld [vmem:[%s1 + $0x218] sm:$0xff]
  %v94 = vld [vmem:[%s1 + $0x220] sm:$0xff]
  %v95 = vld [vmem:[%s1 + $0x228] sm:$0xff]
  %v96 = vld [vmem:[%s1 + $0x230] sm:$0xff]
  %v97 = vld [vmem:[%s1 + $0x238] sm:$0xff]
  %v98 = vld [vmem:[%s1 + $0x240] sm:$0xff]
  %v99 = vld [vmem:[%s1 + $0x248] sm:$0xff]
  %v100 = vld [vmem:[%s1 + $0x250] sm:$0xff]
  %v101 = vld [vmem:[%s1 + $0x258] sm:$0xff]
  %v102 = vld [vmem:[%s1 + $0x260] sm:$0xff]
  %v103 = vld [vmem:[%s1 + $0x268] sm:$0xff]
  %v104 = vld [vmem:[%s1 + $0x270] sm:$0xff]
  %v105 = vld [vmem:[%s1 + $0x278] sm:$0xff]
  %v106 = vld [vmem:[%s1 + $0x280] sm:$0xff]
  %v107 = vld [vmem:[%s1 + $0x288] sm:$0xff]
  %v108 = vld [vmem:[%s1 + $0x290] sm:$0xff]
  %v109 = vld [vmem:[%s1 + $0x298] sm:$0xff]
  %v110 = vld [vmem:[%s1 + $0x2a0] sm:$0xff]
  %v111 = vld [vmem:[%s1 + $0x2a8] sm:$0xff]
  %v112 = vld [vmem:[%s1 + $0x2b0] sm:$0xff]
  %v113 = vld [vmem:[%s1 + $0x2b8] sm:$0xff]
  %v114 = vld [vmem:[%s1 + $0x2c0] sm:$0xff]
  %v115 = vld [vmem:[%s1 + $0x2c8] sm:$0xff]
  %v116 = vld [vmem:[%s1 + $0x2d0] sm:$0xff]
  %v117 = vld [vmem:[%s1 + $0x2d8] sm:$0xff]
  %v118 = vld [vmem:[%s1 + $0x2e0] sm:$0xff]
  %v119 = vld [vmem:[%s1 + $0x2e8] sm:$0xff]
  %v120 = vld [vmem:[%s1 + $0x2f0] sm:$0xff]
  %v121 = vld [vmem:[%s1 + $0x2f8] sm:$0xff]
  %v122 = vld [vmem:[%s1 + $0x300] sm:$0xff]
  %v123 = vld [vmem:[%s1 + $0x308] sm:$0xff]
  %v124 = vld [vmem:[%s1 + $0x310] sm:$0xff]
  %v125 = vld [vmem:[%s1 + $0x318] sm:$0xff]
  %v126 = vld [vmem:[%s1 + $0x320] sm:$0xff]
  %v127 = vld [vmem:[%s1 + $0x328] sm:$0xff]
  %v128 = vld [vmem:[%s1 + $0x330] sm:$0xff]
  %v129 = vld [vmem:[%s1 + $0x338] sm:$0xff]
  %v130 = vld [vmem:[%s1 + $0x340] sm:$0xff]
  %v131 = vld [vmem:[%s1 + $0x348] sm:$0xff]
  %v132 = vld [vmem:[%s1 + $0x350] sm:$0xff]
  %v133 = vld [vmem:[%s1 + $0x358] sm:$0xff]
  %v134 = vld [vmem:[%s1 + $0x360] sm:$0xff]
  %v135 = vld [vmem:[%s1 + $0x368] sm:$0xff]
  %v136 = vld [vmem:[%s1 + $0x370] sm:$0xff]
  %v137 = vld [vmem:[%s1 + $0x378] sm:$0xff]
  %v138 = vld [vmem:[%s1 + $0x380] sm:$0xff]
  %v139 = vld [vmem:[%s1 + $0x388] sm:$0xff]
  %v140 = vld [vmem:[%s1 + $0x390] sm:$0xff]
  %v141 = vld [vmem:[%s1 + $0x398] sm:$0xff]
  %v142 = vld [vmem:[%s1 + $0x3a0] sm:$0xff]
  %v143 = vld [vmem:[%s1 + $0x3a8] sm:$0xff]
  %v144 = vld [vmem:[%s1 + $0x3b0] sm:$0xff]
  %v145 = vld [vmem:[%s1 + $0x3b8] sm:$0xff]
  %v146 = vld [vmem:[%s1 + $0x3c0] sm:$0xff]
  %v147 = vld [vmem:[%s1 + $0x3c8] sm:$0xff]
  %v148 = vld [vmem:[%s1 + $0x3d0] sm:$0xff]
  %v149 = vld [vmem:[%s1 + $0x3d8] sm:$0xff]
  %v150 = vld [vmem:[%s1 + $0x3e0] sm:$0xff]
  %v151 = vld [vmem:[%s1 + $0x3e8] sm:$0xff]
  %v152 = vld [vmem:[%s1 + $0x3f0] sm:$0xff]
  %v153 = vld [vmem:[%s1 + $0x3f8] sm:$0xff]
  %v154 = vld [vmem:[%s1 + $0x400] sm:$0xff]
  %v155 = vld [vmem:[%s1 + $0x408] sm:$0xff]
  %v156 = vld [vmem:[%s1 + $0x410] sm:$0xff]
  %v157 = vld [vmem:[%s1 + $0x418] sm:$0xff]
  %v158 = vld [vmem:[%s1 + $0x420] sm:$0xff]
  %v159 = vld [vmem:[%s1 + $0x428] sm:$0xff]
  %v160 = vld [vmem:[%s1 + $0x430] sm:$0xff]
  %v161 = vld [vmem:[%s1 + $0x438] sm:$0xff]
  %v162 = vld [vmem:[%s1 + $0x440] sm:$0xff]
  %v163 = vld [vmem:[%s1 + $0x448] sm:$0xff]
  %v164 = vld [vmem:[%s1 + $0x450] sm:$0xff]
  %v165 = vld [vmem:[%s1 + $0x458] sm:$0xff]
  %v166 = vld [vmem:[%s1 + $0x460] sm:$0xff]
  %v167 = vld [vmem:[%s1 + $0x468] sm:$0xff]
  %v168 = vld [vmem:[%s1 + $0x470] sm:$0xff]
  %v169 = vld [vmem:[%s1 + $0x478] sm:$0xff]
  %v170 = vld [vmem:[%s1 + $0x480] sm:$0xff]
  %v171 = vld [vmem:[%s1 + $0x488] sm:$0xff]
  %v172 = vld [vmem:[%s1 + $0x490] sm:$0xff]
  %v173 = vld [vmem:[%s1 + $0x498] sm:$0xff]
  %v174 = vld [vmem:[%s1 + $0x4a0] sm:$0xff]
  %v175 = vld [vmem:[%s1 + $0x4a8] sm:$0xff]
  %v176 = vld [vmem:[%s1 + $0x4b0] sm:$0xff]
  %v177 = vld [vmem:[%s1 + $0x4b8] sm:$0xff]
  %v178 = vld [vmem:[%s1 + $0x4c0] sm:$0xff]
  %v179 = vld [vmem:[%s1 + $0x4c8] sm:$0xff]
  %v180 = vld [vmem:[%s1 + $0x4d0] sm:$0xff]
  %v181 = vld [vmem:[%s1 + $0x4d8] sm:$0xff]
  %v182 = vld [vmem:[%s1 + $0x4e0] sm:$0xff]
  %v183 = vld [vmem:[%s1 + $0x4e8] sm:$0xff]
  %v184 = vld [vmem:[%s1 + $0x4f0] sm:$0xff]
  %v185 = vld [vmem:[%s1 + $0x4f8] sm:$0xff]
  %v186 = vld [vmem:[%s1 + $0x500] sm:$0xff]
  %v187 = vld [vmem:[%s1 + $0x508] sm:$0xff]
  %v188 = vld [vmem:[%s1 + $0x510] sm:$0xff]
  %v189 = vld [vmem:[%s1 + $0x518] sm:$0xff]
  %v190 = vld [vmem:[%s1 + $0x520] sm:$0xff]
  %v191 = vld [vmem:[%s1 + $0x528] sm:$0xff]
  %v192 = vld [vmem:[%s1 + $0x530] sm:$0xff]
  %v193 = vld [vmem:[%s1 + $0x538] sm:$0xff]
  %v194 = vld [vmem:[%s1 + $0x540] sm:$0xff]
  %v195 = vld [vmem:[%s1 + $0x548] sm:$0xff]
  %v196 = vld [vmem:[%s1 + $0x550] sm:$0xff]
  %v197 = vld [vmem:[%s1 + $0x558] sm:$0xff]
  %v198 = vld [vmem:[%s1 + $0x560] sm:$0xff]
  %v199 = vld [vmem:[%s1 + $0x568] sm:$0xff]
  %v200 = vld [vmem:[%s1 + $0x570] sm:$0xff]
  %v201 = vld [vmem:[%s1 + $0x578] sm:$0xff]
  %v202 = vld [vmem:[%s1 + $0x580] sm:$0xff]
  %v203 = vld [vmem:[%s1 + $0x588] sm:$0xff]
  %v204 = vld [vmem:[%s1 + $0x590] sm:$0xff]
  %v205 = vld [vmem:[%s1 + $0x598] sm:$0xff]
  %v206 = vld [vmem:[%s1 + $0x5a0] sm:$0xff]
  %v207 = vld [vmem:[%s1 + $0x5a8] sm:$0xff]
  %v208 = vld [vmem:[%s1 + $0x5b0] sm:$0xff]
  %v209 = vld [vmem:[%s1 + $0x5b8] sm:$0xff]
  %v210 = vld [vmem:[%s1 + $0x5c0] sm:$0xff]
  %v211 = vld [vmem:[%s1 + $0x5c8] sm:$0xff]
  %v212 = vld [vmem:[%s1 + $0x5d0] sm:$0xff]
  %v213 = vld [vmem:[%s1 + $0x5d8] sm:$0xff]
  %v214 = vld [vmem:[%s1 + $0x5e0] sm:$0xff]
  %v215 = vld [vmem:[%s1 + $0x5e8] sm:$0xff]
  %v216 = vld [vmem:[%s1 + $0x5f0] sm:$0xff]
  %v217 = vld [vmem:[%s1 + $0x5f8] sm:$0xff]
  %v218 = vld [vmem:[%s1 + $0x600] sm:$0xff]
  %v219 = vld [vmem:[%s1 + $0x608] sm:$0xff]
  %v220 = vld [vmem:[%s1 + $0x610] sm:$0xff]
  %v221 = vld [vmem:[%s1 + $0x618] sm:$0xff]
  %v222 = vld [vmem:[%s1 + $0x620] sm:$0xff]
  %v223 = vld [vmem:[%s1 + $0x628] sm:$0xff]
  %v224 = vld [vmem:[%s1 + $0x630] sm:$0xff]
  %v225 = vld [vmem:[%s1 + $0x638] sm:$0xff]
  %v226 = vld [vmem:[%s1 + $0x640] sm:$0xff]
  %v227 = vld [vmem:[%s1 + $0x648] sm:$0xff]
  %v228 = vld [vmem:[%s1 + $0x650] sm:$0xff]
  %v229 = vld [vmem:[%s1 + $0x658] sm:$0xff]
  %v230 = vld [vmem:[%s1 + $0x660] sm:$0xff]
  %v231 = vld [vmem:[%s1 + $0x668] sm:$0xff]
  %v232 = vld [vmem:[%s1 + $0x670] sm:$0xff]
  %v233 = vld [vmem:[%s1 + $0x678] sm:$0xff]
  %v234 = vld [vmem:[%s1 + $0x680] sm:$0xff]
  %v235 = vld [vmem:[%s1 + $0x688] sm:$0xff]
  %v236 = vld [vmem:[%s1 + $0x690] sm:$0xff]
  %v237 = vld [vmem:[%s1 + $0x698] sm:$0xff]
  %v238 = vld [vmem:[%s1 + $0x6a0] sm:$0xff]
  %v239 = vld [vmem:[%s1 + $0x6a8] sm:$0xff]
  %v240 = vld [vmem:[%s1 + $0x6b0] sm:$0xff]
  %v241 = vld [vmem:[%s1 + $0x6b8] sm:$0xff]
  %v242 = vld [vmem:[%s1 + $0x6c0] sm:$0xff]
  %v243 = vld [vmem:[%s1 + $0x6c8] sm:$0xff]
  %v244 = vld [vmem:[%s1 + $0x6d0] sm:$0xff]
  %v245 = vld [vmem:[%s1 + $0x6d8] sm:$0xff]
  %v246 = vld [vmem:[%s1 + $0x6e0] sm:$0xff]
  %v247 = vld [vmem:[%s1 + $0x6e8] sm:$0xff]
  %v248 = vld [vmem:[%s1 + $0x6f0] sm:$0xff]
  %v249 = vld [vmem:[%s1 + $0x6f8] sm:$0xff]
  %v250 = vld [vmem:[%s1 + $0x700] sm:$0xff]
  %v251 = vld [vmem:[%s1 + $0x708] sm:$0xff]
  %v252 = vld [vmem:[%s1 + $0x710] sm:$0xff]
  %v253 = vld [vmem:[%s1 + $0x718] sm:$0xff]
  %v254 = vld [vmem:[%s1 + $0x720] sm:$0xff]
  %v255 = vld [vmem:[%s1 + $0x728] sm:$0xff]
  %v256 = vld [vmem:[%s1 + $0x730] sm:$0xff]
  %v257 = vld [vmem:[%s1 + $0x738] sm:$0xff]
  %v258 = vld [vmem:[%s1 + $0x740] sm:$0xff]
  %v259 = vld [vmem:[%s1 + $0x748] sm:$0xff]
  %v260 = vld [vmem:[%s1 + $0x750] sm:$0xff]
  %v261 = vld [vmem:[%s1 + $0x758] sm:$0xff]
  %v262 = vld [vmem:[%s1 + $0x760] sm:$0xff]
  %v263 = vld [vmem:[%s1 + $0x768] sm:$0xff]
  %v264 = vld [vmem:[%s1 + $0x770] sm:$0xff]
  %v265 = vld [vmem:[%s1 + $0x778] sm:$0xff]
  %v266 = vld [vmem:[%s1 + $0x780] sm:$0xff]
  %v267 = vld [vmem:[%s1 + $0x788] sm:$0xff]
  %v268 = vld [vmem:[%s1 + $0x790] sm:$0xff]
  %v269 = vld [vmem:[%s1 + $0x798] sm:$0xff]
  %v270 = vld [vmem:[%s1 + $0x7a0] sm:$0xff]
  %v271 = vld [vmem:[%s1 + $0x7a8] sm:$0xff]
  %v272 = vld [vmem:[%s1 + $0x7b0] sm:$0xff]
  %v273 = vld [vmem:[%s1 + $0x7b8] sm:$0xff]
  %v274 = vld [vmem:[%s1 + $0x7c0] sm:$0xff]
  %v275 = vld [vmem:[%s1 + $0x7c8] sm:$0xff]
  %v276 = vld [vmem:[%s1 + $0x7d0] sm:$0xff]
  %v277 = vld [vmem:[%s1 + $0x7d8] sm:$0xff]
  %v278 = vld [vmem:[%s1 + $0x7e0] sm:$0xff]
  %v279 = vld [vmem:[%s1 + $0x7e8] sm:$0xff]
  %v280 = vld [vmem:[%s1 + $0x7f0] sm:$0xff]
  %v281 = vld [vmem:[%s1 + $0x7f8] sm:$0xff]
  %v282 = vld [vmem:[%s2] sm:$0x3]
  %v284 = vlaneseq
  %v285 = vshrl.u32 %v284, 7
  %v286 = vsub.s32 0, %v285
  %v287 = vrot.slane %v282, %v286
  %v288 = vlaneseq
  %v289 = vshrl.u32 %v288, 7
  %v290 = vsub.s32 1, %v289
  %v291 = vrot.slane %v282, %v290
  %v296 = vcombine.high %v24, %v24
  %v298 = vunpack.c.l.s4 1966171168
  %v299 = vunpack.c.0.s8 %v298
  %v300 = vlaneseq
  %v301 = vshrl.u32 %v300, 7
  %v302 = vsub.s32 %v299, %v301
  %v303 = vrot.slane %v24, %v302
  %v305 = vunpack.c.l.s4 1966171168
  %v306 = vunpack.c.0.s8 %v305
  %v307 = vlaneseq
  %v308 = vshrl.u32 %v307, 7
  %v309 = vsub.s32 %v306, %v308
  %v310 = vrot.slane %v296, %v309
  %v311 = vcombine.high %v303, %v303
  %v312 = vcombine.high %v310, %v310
  %v314 = vunpack.c.l.s4 1966171168
  %v315 = vunpack.c.0.s8 %v314
  %v316 = vlaneseq
  %v317 = vshrl.u32 %v316, 7
  %v318 = vsub.s32 %v315, %v317
  %v319 = vrot.slane %v303, %v318
  %v321 = vunpack.c.l.s4 1966171168
  %v322 = vunpack.c.0.s8 %v321
  %v323 = vlaneseq
  %v324 = vshrl.u32 %v323, 7
  %v325 = vsub.s32 %v322, %v324
  %v326 = vrot.slane %v310, %v325
  %v328 = vunpack.c.l.s4 1966171168
  %v329 = vunpack.c.0.s8 %v328
  %v330 = vlaneseq
  %v331 = vshrl.u32 %v330, 7
  %v332 = vsub.s32 %v329, %v331
  %v333 = vrot.slane %v311, %v332
  %v335 = vunpack.c.l.s4 1966171168
  %v336 = vunpack.c.0.s8 %v335
  %v337 = vlaneseq
  %v338 = vshrl.u32 %v337, 7
  %v339 = vsub.s32 %v336, %v338
  %v340 = vrot.slane %v312, %v339
  %v341 = vcombine.high %v319, %v319
  %v342 = vcombine.high %v326, %v326
  %v343 = vcombine.high %v333, %v333
  %v344 = vcombine.high %v340, %v340
  %v345 = vcombine.high %v25, %v25
  %v347 = vunpack.c.l.s4 1966171168
  %v348 = vunpack.c.0.s8 %v347
  %v349 = vlaneseq
  %v350 = vshrl.u32 %v349, 7
  %v351 = vsub.s32 %v348, %v350
  %v352 = vrot.slane %v25, %v351
  %v354 = vunpack.c.l.s4 1966171168
  %v355 = vunpack.c.0.s8 %v354
  %v356 = vlaneseq
  %v357 = vshrl.u32 %v356, 7
  %v358 = vsub.s32 %v355, %v357
  %v359 = vrot.slane %v345, %v358
  %v360 = vcombine.high %v352, %v352
  %v361 = vcombine.high %v359, %v359
  %v363 = vunpack.c.l.s4 1966171168
  %v364 = vunpack.c.0.s8 %v363
  %v365 = vlaneseq
  %v366 = vshrl.u32 %v365, 7
  %v367 = vsub.s32 %v364, %v366
  %v368 = vrot.slane %v352, %v367
  %v370 = vunpack.c.l.s4 1966171168
  %v371 = vunpack.c.0.s8 %v370
  %v372 = vlaneseq
  %v373 = vshrl.u32 %v372, 7
  %v374 = vsub.s32 %v371, %v373
  %v375 = vrot.slane %v359, %v374
  %v377 = vunpack.c.l.s4 1966171168
  %v378 = vunpack.c.0.s8 %v377
  %v379 = vlaneseq
  %v380 = vshrl.u32 %v379, 7
  %v381 = vsub.s32 %v378, %v380
  %v382 = vrot.slane %v360, %v381
  %v384 = vunpack.c.l.s4 1966171168
  %v385 = vunpack.c.0.s8 %v384
  %v386 = vlaneseq
  %v387 = vshrl.u32 %v386, 7
  %v388 = vsub.s32 %v385, %v387
  %v389 = vrot.slane %v361, %v388
  %v390 = vcombine.high %v368, %v368
  %v391 = vcombine.high %v375, %v375
  %v392 = vcombine.high %v382, %v382
  %v393 = vcombine.high %v389, %v389
  %v666 = vunpack.c.l.b16 %v26
  %v667 = vunpack.c.h.b16 %v26
  %v668 = vunpack.c.l.b16 %v27
  %v669 = vunpack.c.h.b16 %v27
  %v670 = vunpack.c.l.b16 %v28
  %v671 = vunpack.c.h.b16 %v28
  %v672 = vunpack.c.l.b16 %v29
  %v673 = vunpack.c.h.b16 %v29
  %v674 = vunpack.c.l.b16 %v30
  %v675 = vunpack.c.h.b16 %v30
  %v676 = vunpack.c.l.b16 %v31
  %v677 = vunpack.c.h.b16 %v31
  %v678 = vunpack.c.l.b16 %v32
  %v679 = vunpack.c.h.b16 %v32
  %v680 = vunpack.c.l.b16 %v33
  %v681 = vunpack.c.h.b16 %v33
  %v682 = vunpack.c.l.b16 %v34
  %v683 = vunpack.c.h.b16 %v34
  %v684 = vunpack.c.l.b16 %v35
  %v685 = vunpack.c.h.b16 %v35
  %v686 = vunpack.c.l.b16 %v36
  %v687 = vunpack.c.h.b16 %v36
  %v688 = vunpack.c.l.b16 %v37
  %v689 = vunpack.c.h.b16 %v37
  %v690 = vunpack.c.l.b16 %v38
  %v691 = vunpack.c.h.b16 %v38
  %v692 = vunpack.c.l.b16 %v39
  %v693 = vunpack.c.h.b16 %v39
  %v694 = vunpack.c.l.b16 %v40
  %v695 = vunpack.c.h.b16 %v40
  %v696 = vunpack.c.l.b16 %v41
  %v697 = vunpack.c.h.b16 %v41
  %v698 = vunpack.c.l.b16 %v42
  %v699 = vunpack.c.h.b16 %v42
  %v700 = vunpack.c.l.b16 %v43
  %v701 = vunpack.c.h.b16 %v43
  %v702 = vunpack.c.l.b16 %v44
  %v703 = vunpack.c.h.b16 %v44
  %v704 = vunpack.c.l.b16 %v45
  %v705 = vunpack.c.h.b16 %v45
  %v706 = vunpack.c.l.b16 %v46
  %v707 = vunpack.c.h.b16 %v46
  %v708 = vunpack.c.l.b16 %v47
  %v709 = vunpack.c.h.b16 %v47
  %v710 = vunpack.c.l.b16 %v48
  %v711 = vunpack.c.h.b16 %v48
  %v712 = vunpack.c.l.b16 %v49
  %v713 = vunpack.c.h.b16 %v49
  %v714 = vunpack.c.l.b16 %v50
  %v715 = vunpack.c.h.b16 %v50
  %v716 = vunpack.c.l.b16 %v51
  %v717 = vunpack.c.h.b16 %v51
  %v718 = vunpack.c.l.b16 %v52
  %v719 = vunpack.c.h.b16 %v52
  %v720 = vunpack.c.l.b16 %v53
  %v721 = vunpack.c.h.b16 %v53
  %v722 = vunpack.c.l.b16 %v54
  %v723 = vunpack.c.h.b16 %v54
  %v724 = vunpack.c.l.b16 %v55
  %v725 = vunpack.c.h.b16 %v55
  %v726 = vunpack.c.l.b16 %v56
  %v727 = vunpack.c.h.b16 %v56
  %v728 = vunpack.c.l.b16 %v57
  %v729 = vunpack.c.h.b16 %v57
  %v730 = vunpack.c.l.b16 %v58
  %v731 = vunpack.c.h.b16 %v58
  %v732 = vunpack.c.l.b16 %v59
  %v733 = vunpack.c.h.b16 %v59
  %v734 = vunpack.c.l.b16 %v60
  %v735 = vunpack.c.h.b16 %v60
  %v736 = vunpack.c.l.b16 %v61
  %v737 = vunpack.c.h.b16 %v61
  %v738 = vunpack.c.l.b16 %v62
  %v739 = vunpack.c.h.b16 %v62
  %v740 = vunpack.c.l.b16 %v63
  %v741 = vunpack.c.h.b16 %v63
  %v742 = vunpack.c.l.b16 %v64
  %v743 = vunpack.c.h.b16 %v64
  %v744 = vunpack.c.l.b16 %v65
  %v745 = vunpack.c.h.b16 %v65
  %v746 = vunpack.c.l.b16 %v66
  %v747 = vunpack.c.h.b16 %v66
  %v748 = vunpack.c.l.b16 %v67
  %v749 = vunpack.c.h.b16 %v67
  %v750 = vunpack.c.l.b16 %v68
  %v751 = vunpack.c.h.b16 %v68
  %v752 = vunpack.c.l.b16 %v69
  %v753 = vunpack.c.h.b16 %v69
  %v754 = vunpack.c.l.b16 %v70
  %v755 = vunpack.c.h.b16 %v70
  %v756 = vunpack.c.l.b16 %v71
  %v757 = vunpack.c.h.b16 %v71
  %v758 = vunpack.c.l.b16 %v72
  %v759 = vunpack.c.h.b16 %v72
  %v760 = vunpack.c.l.b16 %v73
  %v761 = vunpack.c.h.b16 %v73
  %v762 = vunpack.c.l.b16 %v74
  %v763 = vunpack.c.h.b16 %v74
  %v764 = vunpack.c.l.b16 %v75
  %v765 = vunpack.c.h.b16 %v75
  %v766 = vunpack.c.l.b16 %v76
  %v767 = vunpack.c.h.b16 %v76
  %v768 = vunpack.c.l.b16 %v77
  %v769 = vunpack.c.h.b16 %v77
  %v770 = vunpack.c.l.b16 %v78
  %v771 = vunpack.c.h.b16 %v78
  %v772 = vunpack.c.l.b16 %v79
  %v773 = vunpack.c.h.b16 %v79
  %v774 = vunpack.c.l.b16 %v80
  %v775 = vunpack.c.h.b16 %v80
  %v776 = vunpack.c.l.b16 %v81
  %v777 = vunpack.c.h.b16 %v81
  %v778 = vunpack.c.l.b16 %v82
  %v779 = vunpack.c.h.b16 %v82
  %v780 = vunpack.c.l.b16 %v83
  %v781 = vunpack.c.h.b16 %v83
  %v782 = vunpack.c.l.b16 %v84
  %v783 = vunpack.c.h.b16 %v84
  %v784 = vunpack.c.l.b16 %v85
  %v785 = vunpack.c.h.b16 %v85
  %v786 = vunpack.c.l.b16 %v86
  %v787 = vunpack.c.h.b16 %v86
  %v788 = vunpack.c.l.b16 %v87
  %v789 = vunpack.c.h.b16 %v87
  %v790 = vunpack.c.l.b16 %v88
  %v791 = vunpack.c.h.b16 %v88
  %v792 = vunpack.c.l.b16 %v89
  %v793 = vunpack.c.h.b16 %v89
  %v794 = vunpack.c.l.b16 %v90
  %v795 = vunpack.c.h.b16 %v90
  %v796 = vunpack.c.l.b16 %v91
  %v797 = vunpack.c.h.b16 %v91
  %v798 = vunpack.c.l.b16 %v92
  %v799 = vunpack.c.h.b16 %v92
  %v800 = vunpack.c.l.b16 %v93
  %v801 = vunpack.c.h.b16 %v93
  %v802 = vunpack.c.l.b16 %v94
  %v803 = vunpack.c.h.b16 %v94
  %v804 = vunpack.c.l.b16 %v95
  %v805 = vunpack.c.h.b16 %v95
  %v806 = vunpack.c.l.b16 %v96
  %v807 = vunpack.c.h.b16 %v96
  %v808 = vunpack.c.l.b16 %v97
  %v809 = vunpack.c.h.b16 %v97
  %v810 = vunpack.c.l.b16 %v98
  %v811 = vunpack.c.h.b16 %v98
  %v812 = vunpack.c.l.b16 %v99
  %v813 = vunpack.c.h.b16 %v99
  %v814 = vunpack.c.l.b16 %v100
  %v815 = vunpack.c.h.b16 %v100
  %v816 = vunpack.c.l.b16 %v101
  %v817 = vunpack.c.h.b16 %v101
  %v818 = vunpack.c.l.b16 %v102
  %v819 = vunpack.c.h.b16 %v102
  %v820 = vunpack.c.l.b16 %v103
  %v821 = vunpack.c.h.b16 %v103
  %v822 = vunpack.c.l.b16 %v104
  %v823 = vunpack.c.h.b16 %v104
  %v824 = vunpack.c.l.b16 %v105
  %v825 = vunpack.c.h.b16 %v105
  %v826 = vunpack.c.l.b16 %v106
  %v827 = vunpack.c.h.b16 %v106
  %v828 = vunpack.c.l.b16 %v107
  %v829 = vunpack.c.h.b16 %v107
  %v830 = vunpack.c.l.b16 %v108
  %v831 = vunpack.c.h.b16 %v108
  %v832 = vunpack.c.l.b16 %v109
  %v833 = vunpack.c.h.b16 %v109
  %v834 = vunpack.c.l.b16 %v110
  %v835 = vunpack.c.h.b16 %v110
  %v836 = vunpack.c.l.b16 %v111
  %v837 = vunpack.c.h.b16 %v111
  %v838 = vunpack.c.l.b16 %v112
  %v839 = vunpack.c.h.b16 %v112
  %v840 = vunpack.c.l.b16 %v113
  %v841 = vunpack.c.h.b16 %v113
  %v842 = vunpack.c.l.b16 %v114
  %v843 = vunpack.c.h.b16 %v114
  %v844 = vunpack.c.l.b16 %v115
  %v845 = vunpack.c.h.b16 %v115
  %v846 = vunpack.c.l.b16 %v116
  %v847 = vunpack.c.h.b16 %v116
  %v848 = vunpack.c.l.b16 %v117
  %v849 = vunpack.c.h.b16 %v117
  %v850 = vunpack.c.l.b16 %v118
  %v851 = vunpack.c.h.b16 %v118
  %v852 = vunpack.c.l.b16 %v119
  %v853 = vunpack.c.h.b16 %v119
  %v854 = vunpack.c.l.b16 %v120
  %v855 = vunpack.c.h.b16 %v120
  %v856 = vunpack.c.l.b16 %v121
  %v857 = vunpack.c.h.b16 %v121
  %v858 = vunpack.c.l.b16 %v122
  %v859 = vunpack.c.h.b16 %v122
  %v860 = vunpack.c.l.b16 %v123
  %v861 = vunpack.c.h.b16 %v123
  %v862 = vunpack.c.l.b16 %v124
  %v863 = vunpack.c.h.b16 %v124
  %v864 = vunpack.c.l.b16 %v125
  %v865 = vunpack.c.h.b16 %v125
  %v866 = vunpack.c.l.b16 %v126
  %v867 = vunpack.c.h.b16 %v126
  %v868 = vunpack.c.l.b16 %v127
  %v869 = vunpack.c.h.b16 %v127
  %v870 = vunpack.c.l.b16 %v128
  %v871 = vunpack.c.h.b16 %v128
  %v872 = vunpack.c.l.b16 %v129
  %v873 = vunpack.c.h.b16 %v129
  %v874 = vunpack.c.l.b16 %v130
  %v875 = vunpack.c.h.b16 %v130
  %v876 = vunpack.c.l.b16 %v131
  %v877 = vunpack.c.h.b16 %v131
  %v878 = vunpack.c.l.b16 %v132
  %v879 = vunpack.c.h.b16 %v132
  %v880 = vunpack.c.l.b16 %v133
  %v881 = vunpack.c.h.b16 %v133
  %v882 = vunpack.c.l.b16 %v134
  %v883 = vunpack.c.h.b16 %v134
  %v884 = vunpack.c.l.b16 %v135
  %v885 = vunpack.c.h.b16 %v135
  %v886 = vunpack.c.l.b16 %v136
  %v887 = vunpack.c.h.b16 %v136
  %v888 = vunpack.c.l.b16 %v137
  %v889 = vunpack.c.h.b16 %v137
  %v890 = vunpack.c.l.b16 %v138
  %v891 = vunpack.c.h.b16 %v138
  %v892 = vunpack.c.l.b16 %v139
  %v893 = vunpack.c.h.b16 %v139
  %v894 = vunpack.c.l.b16 %v140
  %v895 = vunpack.c.h.b16 %v140
  %v896 = vunpack.c.l.b16 %v141
  %v897 = vunpack.c.h.b16 %v141
  %v898 = vunpack.c.l.b16 %v142
  %v899 = vunpack.c.h.b16 %v142
  %v900 = vunpack.c.l.b16 %v143
  %v901 = vunpack.c.h.b16 %v143
  %v902 = vunpack.c.l.b16 %v144
  %v903 = vunpack.c.h.b16 %v144
  %v904 = vunpack.c.l.b16 %v145
  %v905 = vunpack.c.h.b16 %v145
  %v906 = vunpack.c.l.b16 %v146
  %v907 = vunpack.c.h.b16 %v146
  %v908 = vunpack.c.l.b16 %v147
  %v909 = vunpack.c.h.b16 %v147
  %v910 = vunpack.c.l.b16 %v148
  %v911 = vunpack.c.h.b16 %v148
  %v912 = vunpack.c.l.b16 %v149
  %v913 = vunpack.c.h.b16 %v149
  %v914 = vunpack.c.l.b16 %v150
  %v915 = vunpack.c.h.b16 %v150
  %v916 = vunpack.c.l.b16 %v151
  %v917 = vunpack.c.h.b16 %v151
  %v918 = vunpack.c.l.b16 %v152
  %v919 = vunpack.c.h.b16 %v152
  %v920 = vunpack.c.l.b16 %v153
  %v921 = vunpack.c.h.b16 %v153
  %v922 = vunpack.c.l.b16 %v154
  %v923 = vunpack.c.h.b16 %v154
  %v924 = vunpack.c.l.b16 %v155
  %v925 = vunpack.c.h.b16 %v155
  %v926 = vunpack.c.l.b16 %v156
  %v927 = vunpack.c.h.b16 %v156
  %v928 = vunpack.c.l.b16 %v157
  %v929 = vunpack.c.h.b16 %v157
  %v930 = vunpack.c.l.b16 %v158
  %v931 = vunpack.c.h.b16 %v158
  %v932 = vunpack.c.l.b16 %v159
  %v933 = vunpack.c.h.b16 %v159
  %v934 = vunpack.c.l.b16 %v160
  %v935 = vunpack.c.h.b16 %v160
  %v936 = vunpack.c.l.b16 %v161
  %v937 = vunpack.c.h.b16 %v161
  %v938 = vunpack.c.l.b16 %v162
  %v939 = vunpack.c.h.b16 %v162
  %v940 = vunpack.c.l.b16 %v163
  %v941 = vunpack.c.h.b16 %v163
  %v942 = vunpack.c.l.b16 %v164
  %v943 = vunpack.c.h.b16 %v164
  %v944 = vunpack.c.l.b16 %v165
  %v945 = vunpack.c.h.b16 %v165
  %v946 = vunpack.c.l.b16 %v166
  %v947 = vunpack.c.h.b16 %v166
  %v948 = vunpack.c.l.b16 %v167
  %v949 = vunpack.c.h.b16 %v167
  %v950 = vunpack.c.l.b16 %v168
  %v951 = vunpack.c.h.b16 %v168
  %v952 = vunpack.c.l.b16 %v169
  %v953 = vunpack.c.h.b16 %v169
  %v954 = vunpack.c.l.b16 %v170
  %v955 = vunpack.c.h.b16 %v170
  %v956 = vunpack.c.l.b16 %v171
  %v957 = vunpack.c.h.b16 %v171
  %v958 = vunpack.c.l.b16 %v172
  %v959 = vunpack.c.h.b16 %v172
  %v960 = vunpack.c.l.b16 %v173
  %v961 = vunpack.c.h.b16 %v173
  %v962 = vunpack.c.l.b16 %v174
  %v963 = vunpack.c.h.b16 %v174
  %v964 = vunpack.c.l.b16 %v175
  %v965 = vunpack.c.h.b16 %v175
  %v966 = vunpack.c.l.b16 %v176
  %v967 = vunpack.c.h.b16 %v176
  %v968 = vunpack.c.l.b16 %v177
  %v969 = vunpack.c.h.b16 %v177
  %v970 = vunpack.c.l.b16 %v178
  %v971 = vunpack.c.h.b16 %v178
  %v972 = vunpack.c.l.b16 %v179
  %v973 = vunpack.c.h.b16 %v179
  %v974 = vunpack.c.l.b16 %v180
  %v975 = vunpack.c.h.b16 %v180
  %v976 = vunpack.c.l.b16 %v181
  %v977 = vunpack.c.h.b16 %v181
  %v978 = vunpack.c.l.b16 %v182
  %v979 = vunpack.c.h.b16 %v182
  %v980 = vunpack.c.l.b16 %v183
  %v981 = vunpack.c.h.b16 %v183
  %v982 = vunpack.c.l.b16 %v184
  %v983 = vunpack.c.h.b16 %v184
  %v984 = vunpack.c.l.b16 %v185
  %v985 = vunpack.c.h.b16 %v185
  %v986 = vunpack.c.l.b16 %v186
  %v987 = vunpack.c.h.b16 %v186
  %v988 = vunpack.c.l.b16 %v187
  %v989 = vunpack.c.h.b16 %v187
  %v990 = vunpack.c.l.b16 %v188
  %v991 = vunpack.c.h.b16 %v188
  %v992 = vunpack.c.l.b16 %v189
  %v993 = vunpack.c.h.b16 %v189
  %v994 = vunpack.c.l.b16 %v190
  %v995 = vunpack.c.h.b16 %v190
  %v996 = vunpack.c.l.b16 %v191
  %v997 = vunpack.c.h.b16 %v191
  %v998 = vunpack.c.l.b16 %v192
  %v999 = vunpack.c.h.b16 %v192
  %v1000 = vunpack.c.l.b16 %v193
  %v1001 = vunpack.c.h.b16 %v193
  %v1002 = vunpack.c.l.b16 %v194
  %v1003 = vunpack.c.h.b16 %v194
  %v1004 = vunpack.c.l.b16 %v195
  %v1005 = vunpack.c.h.b16 %v195
  %v1006 = vunpack.c.l.b16 %v196
  %v1007 = vunpack.c.h.b16 %v196
  %v1008 = vunpack.c.l.b16 %v197
  %v1009 = vunpack.c.h.b16 %v197
  %v1010 = vunpack.c.l.b16 %v198
  %v1011 = vunpack.c.h.b16 %v198
  %v1012 = vunpack.c.l.b16 %v199
  %v1013 = vunpack.c.h.b16 %v199
  %v1014 = vunpack.c.l.b16 %v200
  %v1015 = vunpack.c.h.b16 %v200
  %v1016 = vunpack.c.l.b16 %v201
  %v1017 = vunpack.c.h.b16 %v201
  %v1018 = vunpack.c.l.b16 %v202
  %v1019 = vunpack.c.h.b16 %v202
  %v1020 = vunpack.c.l.b16 %v203
  %v1021 = vunpack.c.h.b16 %v203
  %v1022 = vunpack.c.l.b16 %v204
  %v1023 = vunpack.c.h.b16 %v204
  %v1024 = vunpack.c.l.b16 %v205
  %v1025 = vunpack.c.h.b16 %v205
  %v1026 = vunpack.c.l.b16 %v206
  %v1027 = vunpack.c.h.b16 %v206
  %v1028 = vunpack.c.l.b16 %v207
  %v1029 = vunpack.c.h.b16 %v207
  %v1030 = vunpack.c.l.b16 %v208
  %v1031 = vunpack.c.h.b16 %v208
  %v1032 = vunpack.c.l.b16 %v209
  %v1033 = vunpack.c.h.b16 %v209
  %v1034 = vunpack.c.l.b16 %v210
  %v1035 = vunpack.c.h.b16 %v210
  %v1036 = vunpack.c.l.b16 %v211
  %v1037 = vunpack.c.h.b16 %v211
  %v1038 = vunpack.c.l.b16 %v212
  %v1039 = vunpack.c.h.b16 %v212
  %v1040 = vunpack.c.l.b16 %v213
  %v1041 = vunpack.c.h.b16 %v213
  %v1042 = vunpack.c.l.b16 %v214
  %v1043 = vunpack.c.h.b16 %v214
  %v1044 = vunpack.c.l.b16 %v215
  %v1045 = vunpack.c.h.b16 %v215
  %v1046 = vunpack.c.l.b16 %v216
  %v1047 = vunpack.c.h.b16 %v216
  %v1048 = vunpack.c.l.b16 %v217
  %v1049 = vunpack.c.h.b16 %v217
  %v1050 = vunpack.c.l.b16 %v218
  %v1051 = vunpack.c.h.b16 %v218
  %v1052 = vunpack.c.l.b16 %v219
  %v1053 = vunpack.c.h.b16 %v219
  %v1054 = vunpack.c.l.b16 %v220
  %v1055 = vunpack.c.h.b16 %v220
  %v1056 = vunpack.c.l.b16 %v221
  %v1057 = vunpack.c.h.b16 %v221
  %v1058 = vunpack.c.l.b16 %v222
  %v1059 = vunpack.c.h.b16 %v222
  %v1060 = vunpack.c.l.b16 %v223
  %v1061 = vunpack.c.h.b16 %v223
  %v1062 = vunpack.c.l.b16 %v224
  %v1063 = vunpack.c.h.b16 %v224
  %v1064 = vunpack.c.l.b16 %v225
  %v1065 = vunpack.c.h.b16 %v225
  %v1066 = vunpack.c.l.b16 %v226
  %v1067 = vunpack.c.h.b16 %v226
  %v1068 = vunpack.c.l.b16 %v227
  %v1069 = vunpack.c.h.b16 %v227
  %v1070 = vunpack.c.l.b16 %v228
  %v1071 = vunpack.c.h.b16 %v228
  %v1072 = vunpack.c.l.b16 %v229
  %v1073 = vunpack.c.h.b16 %v229
  %v1074 = vunpack.c.l.b16 %v230
  %v1075 = vunpack.c.h.b16 %v230
  %v1076 = vunpack.c.l.b16 %v231
  %v1077 = vunpack.c.h.b16 %v231
  %v1078 = vunpack.c.l.b16 %v232
  %v1079 = vunpack.c.h.b16 %v232
  %v1080 = vunpack.c.l.b16 %v233
  %v1081 = vunpack.c.h.b16 %v233
  %v1082 = vunpack.c.l.b16 %v234
  %v1083 = vunpack.c.h.b16 %v234
  %v1084 = vunpack.c.l.b16 %v235
  %v1085 = vunpack.c.h.b16 %v235
  %v1086 = vunpack.c.l.b16 %v236
  %v1087 = vunpack.c.h.b16 %v236
  %v1088 = vunpack.c.l.b16 %v237
  %v1089 = vunpack.c.h.b16 %v237
  %v1090 = vunpack.c.l.b16 %v238
  %v1091 = vunpack.c.h.b16 %v238
  %v1092 = vunpack.c.l.b16 %v239
  %v1093 = vunpack.c.h.b16 %v239
  %v1094 = vunpack.c.l.b16 %v240
  %v1095 = vunpack.c.h.b16 %v240
  %v1096 = vunpack.c.l.b16 %v241
  %v1097 = vunpack.c.h.b16 %v241
  %v1098 = vunpack.c.l.b16 %v242
  %v1099 = vunpack.c.h.b16 %v242
  %v1100 = vunpack.c.l.b16 %v243
  %v1101 = vunpack.c.h.b16 %v243
  %v1102 = vunpack.c.l.b16 %v244
  %v1103 = vunpack.c.h.b16 %v244
  %v1104 = vunpack.c.l.b16 %v245
  %v1105 = vunpack.c.h.b16 %v245
  %v1106 = vunpack.c.l.b16 %v246
  %v1107 = vunpack.c.h.b16 %v246
  %v1108 = vunpack.c.l.b16 %v247
  %v1109 = vunpack.c.h.b16 %v247
  %v1110 = vunpack.c.l.b16 %v248
  %v1111 = vunpack.c.h.b16 %v248
  %v1112 = vunpack.c.l.b16 %v249
  %v1113 = vunpack.c.h.b16 %v249
  %v1114 = vunpack.c.l.b16 %v250
  %v1115 = vunpack.c.h.b16 %v250
  %v1116 = vunpack.c.l.b16 %v251
  %v1117 = vunpack.c.h.b16 %v251
  %v1118 = vunpack.c.l.b16 %v252
  %v1119 = vunpack.c.h.b16 %v252
  %v1120 = vunpack.c.l.b16 %v253
  %v1121 = vunpack.c.h.b16 %v253
  %v1122 = vunpack.c.l.b16 %v254
  %v1123 = vunpack.c.h.b16 %v254
  %v1124 = vunpack.c.l.b16 %v255
  %v1125 = vunpack.c.h.b16 %v255
  %v1126 = vunpack.c.l.b16 %v256
  %v1127 = vunpack.c.h.b16 %v256
  %v1128 = vunpack.c.l.b16 %v257
  %v1129 = vunpack.c.h.b16 %v257
  %v1130 = vunpack.c.l.b16 %v258
  %v1131 = vunpack.c.h.b16 %v258
  %v1132 = vunpack.c.l.b16 %v259
  %v1133 = vunpack.c.h.b16 %v259
  %v1134 = vunpack.c.l.b16 %v260
  %v1135 = vunpack.c.h.b16 %v260
  %v1136 = vunpack.c.l.b16 %v261
  %v1137 = vunpack.c.h.b16 %v261
  %v1138 = vunpack.c.l.b16 %v262
  %v1139 = vunpack.c.h.b16 %v262
  %v1140 = vunpack.c.l.b16 %v263
  %v1141 = vunpack.c.h.b16 %v263
  %v1142 = vunpack.c.l.b16 %v264
  %v1143 = vunpack.c.h.b16 %v264
  %v1144 = vunpack.c.l.b16 %v265
  %v1145 = vunpack.c.h.b16 %v265
  %v1146 = vunpack.c.l.b16 %v266
  %v1147 = vunpack.c.h.b16 %v266
  %v1148 = vunpack.c.l.b16 %v267
  %v1149 = vunpack.c.h.b16 %v267
  %v1150 = vunpack.c.l.b16 %v268
  %v1151 = vunpack.c.h.b16 %v268
  %v1152 = vunpack.c.l.b16 %v269
  %v1153 = vunpack.c.h.b16 %v269
  %v1154 = vunpack.c.l.b16 %v270
  %v1155 = vunpack.c.h.b16 %v270
  %v1156 = vunpack.c.l.b16 %v271
  %v1157 = vunpack.c.h.b16 %v271
  %v1158 = vunpack.c.l.b16 %v272
  %v1159 = vunpack.c.h.b16 %v272
  %v1160 = vunpack.c.l.b16 %v273
  %v1161 = vunpack.c.h.b16 %v273
  %v1162 = vunpack.c.l.b16 %v274
  %v1163 = vunpack.c.h.b16 %v274
  %v1164 = vunpack.c.l.b16 %v275
  %v1165 = vunpack.c.h.b16 %v275
  %v1166 = vunpack.c.l.b16 %v276
  %v1167 = vunpack.c.h.b16 %v276
  %v1168 = vunpack.c.l.b16 %v277
  %v1169 = vunpack.c.h.b16 %v277
  %v1170 = vunpack.c.l.b16 %v278
  %v1171 = vunpack.c.h.b16 %v278
  %v1172 = vunpack.c.l.b16 %v279
  %v1173 = vunpack.c.h.b16 %v279
  %v1174 = vunpack.c.l.b16 %v280
  %v1175 = vunpack.c.h.b16 %v280
  %v1176 = vunpack.c.l.b16 %v281
  %v1177 = vunpack.c.h.b16 %v281
  %v1178 = vpack.c.b16 %v668, %v666
  %v1179 = vpack.c.b16 %v669, %v667
  %v1180 = vpack.c.b16 %v672, %v670
  %v1181 = vpack.c.b16 %v673, %v671
  %v1182 = vpack.c.b16 %v676, %v674
  %v1183 = vpack.c.b16 %v677, %v675
  %v1184 = vpack.c.b16 %v680, %v678
  %v1185 = vpack.c.b16 %v681, %v679
  %v1186 = vpack.c.b16 %v684, %v682
  %v1187 = vpack.c.b16 %v685, %v683
  %v1188 = vpack.c.b16 %v688, %v686
  %v1189 = vpack.c.b16 %v689, %v687
  %v1190 = vpack.c.b16 %v692, %v690
  %v1191 = vpack.c.b16 %v693, %v691
  %v1192 = vpack.c.b16 %v696, %v694
  %v1193 = vpack.c.b16 %v697, %v695
  %v1194 = vpack.c.b16 %v700, %v698
  %v1195 = vpack.c.b16 %v701, %v699
  %v1196 = vpack.c.b16 %v704, %v702
  %v1197 = vpack.c.b16 %v705, %v703
  %v1198 = vpack.c.b16 %v708, %v706
  %v1199 = vpack.c.b16 %v709, %v707
  %v1200 = vpack.c.b16 %v712, %v710
  %v1201 = vpack.c.b16 %v713, %v711
  %v1202 = vpack.c.b16 %v716, %v714
  %v1203 = vpack.c.b16 %v717, %v715
  %v1204 = vpack.c.b16 %v720, %v718
  %v1205 = vpack.c.b16 %v721, %v719
  %v1206 = vpack.c.b16 %v724, %v722
  %v1207 = vpack.c.b16 %v725, %v723
  %v1208 = vpack.c.b16 %v728, %v726
  %v1209 = vpack.c.b16 %v729, %v727
  %v1210 = vpack.c.b16 %v732, %v730
  %v1211 = vpack.c.b16 %v733, %v731
  %v1212 = vpack.c.b16 %v736, %v734
  %v1213 = vpack.c.b16 %v737, %v735
  %v1214 = vpack.c.b16 %v740, %v738
  %v1215 = vpack.c.b16 %v741, %v739
  %v1216 = vpack.c.b16 %v744, %v742
  %v1217 = vpack.c.b16 %v745, %v743
  %v1218 = vpack.c.b16 %v748, %v746
  %v1219 = vpack.c.b16 %v749, %v747
  %v1220 = vpack.c.b16 %v752, %v750
  %v1221 = vpack.c.b16 %v753, %v751
  %v1222 = vpack.c.b16 %v756, %v754
  %v1223 = vpack.c.b16 %v757, %v755
  %v1224 = vpack.c.b16 %v760, %v758
  %v1225 = vpack.c.b16 %v761, %v759
  %v1226 = vpack.c.b16 %v764, %v762
  %v1227 = vpack.c.b16 %v765, %v763
  %v1228 = vpack.c.b16 %v768, %v766
  %v1229 = vpack.c.b16 %v769, %v767
  %v1230 = vpack.c.b16 %v772, %v770
  %v1231 = vpack.c.b16 %v773, %v771
  %v1232 = vpack.c.b16 %v776, %v774
  %v1233 = vpack.c.b16 %v777, %v775
  %v1234 = vpack.c.b16 %v780, %v778
  %v1235 = vpack.c.b16 %v781, %v779
  %v1236 = vpack.c.b16 %v784, %v782
  %v1237 = vpack.c.b16 %v785, %v783
  %v1238 = vpack.c.b16 %v788, %v786
  %v1239 = vpack.c.b16 %v789, %v787
  %v1240 = vpack.c.b16 %v792, %v790
  %v1241 = vpack.c.b16 %v793, %v791
  %v1242 = vpack.c.b16 %v796, %v794
  %v1243 = vpack.c.b16 %v797, %v795
  %v1244 = vpack.c.b16 %v800, %v798
  %v1245 = vpack.c.b16 %v801, %v799
  %v1246 = vpack.c.b16 %v804, %v802
  %v1247 = vpack.c.b16 %v805, %v803
  %v1248 = vpack.c.b16 %v808, %v806
  %v1249 = vpack.c.b16 %v809, %v807
  %v1250 = vpack.c.b16 %v812, %v810
  %v1251 = vpack.c.b16 %v813, %v811
  %v1252 = vpack.c.b16 %v816, %v814
  %v1253 = vpack.c.b16 %v817, %v815
  %v1254 = vpack.c.b16 %v820, %v818
  %v1255 = vpack.c.b16 %v821, %v819
  %v1256 = vpack.c.b16 %v824, %v822
  %v1257 = vpack.c.b16 %v825, %v823
  %v1258 = vpack.c.b16 %v828, %v826
  %v1259 = vpack.c.b16 %v829, %v827
  %v1260 = vpack.c.b16 %v832, %v830
  %v1261 = vpack.c.b16 %v833, %v831
  %v1262 = vpack.c.b16 %v836, %v834
  %v1263 = vpack.c.b16 %v837, %v835
  %v1264 = vpack.c.b16 %v840, %v838
  %v1265 = vpack.c.b16 %v841, %v839
  %v1266 = vpack.c.b16 %v844, %v842
  %v1267 = vpack.c.b16 %v845, %v843
  %v1268 = vpack.c.b16 %v848, %v846
  %v1269 = vpack.c.b16 %v849, %v847
  %v1270 = vpack.c.b16 %v852, %v850
  %v1271 = vpack.c.b16 %v853, %v851
  %v1272 = vpack.c.b16 %v856, %v854
  %v1273 = vpack.c.b16 %v857, %v855
  %v1274 = vpack.c.b16 %v860, %v858
  %v1275 = vpack.c.b16 %v861, %v859
  %v1276 = vpack.c.b16 %v864, %v862
  %v1277 = vpack.c.b16 %v865, %v863
  %v1278 = vpack.c.b16 %v868, %v866
  %v1279 = vpack.c.b16 %v869, %v867
  %v1280 = vpack.c.b16 %v872, %v870
  %v1281 = vpack.c.b16 %v873, %v871
  %v1282 = vpack.c.b16 %v876, %v874
  %v1283 = vpack.c.b16 %v877, %v875
  %v1284 = vpack.c.b16 %v880, %v878
  %v1285 = vpack.c.b16 %v881, %v879
  %v1286 = vpack.c.b16 %v884, %v882
  %v1287 = vpack.c.b16 %v885, %v883
  %v1288 = vpack.c.b16 %v888, %v886
  %v1289 = vpack.c.b16 %v889, %v887
  %v1290 = vpack.c.b16 %v892, %v890
  %v1291 = vpack.c.b16 %v893, %v891
  %v1292 = vpack.c.b16 %v896, %v894
  %v1293 = vpack.c.b16 %v897, %v895
  %v1294 = vpack.c.b16 %v900, %v898
  %v1295 = vpack.c.b16 %v901, %v899
  %v1296 = vpack.c.b16 %v904, %v902
  %v1297 = vpack.c.b16 %v905, %v903
  %v1298 = vpack.c.b16 %v908, %v906
  %v1299 = vpack.c.b16 %v909, %v907
  %v1300 = vpack.c.b16 %v912, %v910
  %v1301 = vpack.c.b16 %v913, %v911
  %v1302 = vpack.c.b16 %v916, %v914
  %v1303 = vpack.c.b16 %v917, %v915
  %v1304 = vpack.c.b16 %v920, %v918
  %v1305 = vpack.c.b16 %v921, %v919
  %v1306 = vpack.c.b16 %v924, %v922
  %v1307 = vpack.c.b16 %v925, %v923
  %v1308 = vpack.c.b16 %v928, %v926
  %v1309 = vpack.c.b16 %v929, %v927
  %v1310 = vpack.c.b16 %v932, %v930
  %v1311 = vpack.c.b16 %v933, %v931
  %v1312 = vpack.c.b16 %v936, %v934
  %v1313 = vpack.c.b16 %v937, %v935
  %v1314 = vpack.c.b16 %v940, %v938
  %v1315 = vpack.c.b16 %v941, %v939
  %v1316 = vpack.c.b16 %v944, %v942
  %v1317 = vpack.c.b16 %v945, %v943
  %v1318 = vpack.c.b16 %v948, %v946
  %v1319 = vpack.c.b16 %v949, %v947
  %v1320 = vpack.c.b16 %v952, %v950
  %v1321 = vpack.c.b16 %v953, %v951
  %v1322 = vpack.c.b16 %v956, %v954
  %v1323 = vpack.c.b16 %v957, %v955
  %v1324 = vpack.c.b16 %v960, %v958
  %v1325 = vpack.c.b16 %v961, %v959
  %v1326 = vpack.c.b16 %v964, %v962
  %v1327 = vpack.c.b16 %v965, %v963
  %v1328 = vpack.c.b16 %v968, %v966
  %v1329 = vpack.c.b16 %v969, %v967
  %v1330 = vpack.c.b16 %v972, %v970
  %v1331 = vpack.c.b16 %v973, %v971
  %v1332 = vpack.c.b16 %v976, %v974
  %v1333 = vpack.c.b16 %v977, %v975
  %v1334 = vpack.c.b16 %v980, %v978
  %v1335 = vpack.c.b16 %v981, %v979
  %v1336 = vpack.c.b16 %v984, %v982
  %v1337 = vpack.c.b16 %v985, %v983
  %v1338 = vpack.c.b16 %v988, %v986
  %v1339 = vpack.c.b16 %v989, %v987
  %v1340 = vpack.c.b16 %v992, %v990
  %v1341 = vpack.c.b16 %v993, %v991
  %v1342 = vpack.c.b16 %v996, %v994
  %v1343 = vpack.c.b16 %v997, %v995
  %v1344 = vpack.c.b16 %v1000, %v998
  %v1345 = vpack.c.b16 %v1001, %v999
  %v1346 = vpack.c.b16 %v1004, %v1002
  %v1347 = vpack.c.b16 %v1005, %v1003
  %v1348 = vpack.c.b16 %v1008, %v1006
  %v1349 = vpack.c.b16 %v1009, %v1007
  %v1350 = vpack.c.b16 %v1012, %v1010
  %v1351 = vpack.c.b16 %v1013, %v1011
  %v1352 = vpack.c.b16 %v1016, %v1014
  %v1353 = vpack.c.b16 %v1017, %v1015
  %v1354 = vpack.c.b16 %v1020, %v1018
  %v1355 = vpack.c.b16 %v1021, %v1019
  %v1356 = vpack.c.b16 %v1024, %v1022
  %v1357 = vpack.c.b16 %v1025, %v1023
  %v1358 = vpack.c.b16 %v1028, %v1026
  %v1359 = vpack.c.b16 %v1029, %v1027
  %v1360 = vpack.c.b16 %v1032, %v1030
  %v1361 = vpack.c.b16 %v1033, %v1031
  %v1362 = vpack.c.b16 %v1036, %v1034
  %v1363 = vpack.c.b16 %v1037, %v1035
  %v1364 = vpack.c.b16 %v1040, %v1038
  %v1365 = vpack.c.b16 %v1041, %v1039
  %v1366 = vpack.c.b16 %v1044, %v1042
  %v1367 = vpack.c.b16 %v1045, %v1043
  %v1368 = vpack.c.b16 %v1048, %v1046
  %v1369 = vpack.c.b16 %v1049, %v1047
  %v1370 = vpack.c.b16 %v1052, %v1050
  %v1371 = vpack.c.b16 %v1053, %v1051
  %v1372 = vpack.c.b16 %v1056, %v1054
  %v1373 = vpack.c.b16 %v1057, %v1055
  %v1374 = vpack.c.b16 %v1060, %v1058
  %v1375 = vpack.c.b16 %v1061, %v1059
  %v1376 = vpack.c.b16 %v1064, %v1062
  %v1377 = vpack.c.b16 %v1065, %v1063
  %v1378 = vpack.c.b16 %v1068, %v1066
  %v1379 = vpack.c.b16 %v1069, %v1067
  %v1380 = vpack.c.b16 %v1072, %v1070
  %v1381 = vpack.c.b16 %v1073, %v1071
  %v1382 = vpack.c.b16 %v1076, %v1074
  %v1383 = vpack.c.b16 %v1077, %v1075
  %v1384 = vpack.c.b16 %v1080, %v1078
  %v1385 = vpack.c.b16 %v1081, %v1079
  %v1386 = vpack.c.b16 %v1084, %v1082
  %v1387 = vpack.c.b16 %v1085, %v1083
  %v1388 = vpack.c.b16 %v1088, %v1086
  %v1389 = vpack.c.b16 %v1089, %v1087
  %v1390 = vpack.c.b16 %v1092, %v1090
  %v1391 = vpack.c.b16 %v1093, %v1091
  %v1392 = vpack.c.b16 %v1096, %v1094
  %v1393 = vpack.c.b16 %v1097, %v1095
  %v1394 = vpack.c.b16 %v1100, %v1098
  %v1395 = vpack.c.b16 %v1101, %v1099
  %v1396 = vpack.c.b16 %v1104, %v1102
  %v1397 = vpack.c.b16 %v1105, %v1103
  %v1398 = vpack.c.b16 %v1108, %v1106
  %v1399 = vpack.c.b16 %v1109, %v1107
  %v1400 = vpack.c.b16 %v1112, %v1110
  %v1401 = vpack.c.b16 %v1113, %v1111
  %v1402 = vpack.c.b16 %v1116, %v1114
  %v1403 = vpack.c.b16 %v1117, %v1115
  %v1404 = vpack.c.b16 %v1120, %v1118
  %v1405 = vpack.c.b16 %v1121, %v1119
  %v1406 = vpack.c.b16 %v1124, %v1122
  %v1407 = vpack.c.b16 %v1125, %v1123
  %v1408 = vpack.c.b16 %v1128, %v1126
  %v1409 = vpack.c.b16 %v1129, %v1127
  %v1410 = vpack.c.b16 %v1132, %v1130
  %v1411 = vpack.c.b16 %v1133, %v1131
  %v1412 = vpack.c.b16 %v1136, %v1134
  %v1413 = vpack.c.b16 %v1137, %v1135
  %v1414 = vpack.c.b16 %v1140, %v1138
  %v1415 = vpack.c.b16 %v1141, %v1139
  %v1416 = vpack.c.b16 %v1144, %v1142
  %v1417 = vpack.c.b16 %v1145, %v1143
  %v1418 = vpack.c.b16 %v1148, %v1146
  %v1419 = vpack.c.b16 %v1149, %v1147
  %v1420 = vpack.c.b16 %v1152, %v1150
  %v1421 = vpack.c.b16 %v1153, %v1151
  %v1422 = vpack.c.b16 %v1156, %v1154
  %v1423 = vpack.c.b16 %v1157, %v1155
  %v1424 = vpack.c.b16 %v1160, %v1158
  %v1425 = vpack.c.b16 %v1161, %v1159
  %v1426 = vpack.c.b16 %v1164, %v1162
  %v1427 = vpack.c.b16 %v1165, %v1163
  %v1428 = vpack.c.b16 %v1168, %v1166
  %v1429 = vpack.c.b16 %v1169, %v1167
  %v1430 = vpack.c.b16 %v1172, %v1170
  %v1431 = vpack.c.b16 %v1173, %v1171
  %v1432 = vpack.c.b16 %v1176, %v1174
  %v1433 = vpack.c.b16 %v1177, %v1175
  %1690 = vmatprep.subr.bf16.mxu0 %v1179
  %1691 = vmatpush1.bf16.msra.mxu0 %v1178
  %1692 = vmatprep.subr.bf16.mxu0 %v1181
  %1693 = vmatpush1.bf16.msra.mxu0 %v1180
  %1694 = vmatprep.subr.bf16.mxu0 %v1183
  %1695 = vmatpush1.bf16.msra.mxu0 %v1182
  %1696 = vmatprep.subr.bf16.mxu0 %v1185
  %1697 = vmatpush1.bf16.msra.mxu0 %v1184
  %1698 = vmatprep.subr.bf16.mxu0 %v1187
  %1699 = vmatpush1.bf16.msra.mxu0 %v1186
  %1700 = vmatprep.subr.bf16.mxu0 %v1189
  %1701 = vmatpush1.bf16.msra.mxu0 %v1188
  %1702 = vmatprep.subr.bf16.mxu0 %v1191
  %1703 = vmatpush1.bf16.msra.mxu0 %v1190
  %1704 = vmatprep.subr.bf16.mxu0 %v1193
  %1705 = vmatpush1.bf16.msra.mxu0 %v1192
  %1706 = vmatprep.subr.bf16.mxu0 %v1195
  %1707 = vmatpush1.bf16.msra.mxu0 %v1194
  %1708 = vmatprep.subr.bf16.mxu0 %v1197
  %1709 = vmatpush1.bf16.msra.mxu0 %v1196
  %1710 = vmatprep.subr.bf16.mxu0 %v1199
  %1711 = vmatpush1.bf16.msra.mxu0 %v1198
  %1712 = vmatprep.subr.bf16.mxu0 %v1201
  %1713 = vmatpush1.bf16.msra.mxu0 %v1200
  %1714 = vmatprep.subr.bf16.mxu0 %v1203
  %1715 = vmatpush1.bf16.msra.mxu0 %v1202
  %1716 = vmatprep.subr.bf16.mxu0 %v1205
  %1717 = vmatpush1.bf16.msra.mxu0 %v1204
  %1718 = vmatprep.subr.bf16.mxu0 %v1207
  %1719 = vmatpush1.bf16.msra.mxu0 %v1206
  %1720 = vmatprep.subr.bf16.mxu0 %v1209
  %1721 = vmatpush1.bf16.msra.mxu0 %v1208
  %1722 = vmatprep.mubr.bf16.mxu0 %v333
  %1723 = vmatmul.mubr.bf16.gmra.mrb[0].mxu0 %v319
  %v1724 = vpop.f32.mrb[0].mxu0
  %v1725 = vadd.f32 %v287, %v1724
  %v1726 = vpop.f32.mrb[0].mxu0
  %v1727 = vadd.f32 %v291, %v1726
  %v1728 = vpop.f32.mrb[0].mxu0
  %v1729 = vpop.f32.mrb[0].mxu0
  %1730 = vdwg.mxu0
  %1731 = vmatprep.subr.bf16.mxu0 %v1211
  %1732 = vmatpush1.bf16.msra.mxu0 %v1210
  %1733 = vmatprep.subr.bf16.mxu0 %v1213
  %1734 = vmatpush1.bf16.msra.mxu0 %v1212
  %1735 = vmatprep.subr.bf16.mxu0 %v1215
  %1736 = vmatpush1.bf16.msra.mxu0 %v1214
  %1737 = vmatprep.subr.bf16.mxu0 %v1217
  %1738 = vmatpush1.bf16.msra.mxu0 %v1216
  %1739 = vmatprep.subr.bf16.mxu0 %v1219
  %1740 = vmatpush1.bf16.msra.mxu0 %v1218
  %1741 = vmatprep.subr.bf16.mxu0 %v1221
  %1742 = vmatpush1.bf16.msra.mxu0 %v1220
  %1743 = vmatprep.subr.bf16.mxu0 %v1223
  %1744 = vmatpush1.bf16.msra.mxu0 %v1222
  %1745 = vmatprep.subr.bf16.mxu0 %v1225
  %1746 = vmatpush1.bf16.msra.mxu0 %v1224
  %1747 = vmatprep.subr.bf16.mxu0 %v1227
  %1748 = vmatpush1.bf16.msra.mxu0 %v1226
  %1749 = vmatprep.subr.bf16.mxu0 %v1229
  %1750 = vmatpush1.bf16.msra.mxu0 %v1228
  %1751 = vmatprep.subr.bf16.mxu0 %v1231
  %1752 = vmatpush1.bf16.msra.mxu0 %v1230
  %1753 = vmatprep.subr.bf16.mxu0 %v1233
  %1754 = vmatpush1.bf16.msra.mxu0 %v1232
  %1755 = vmatprep.subr.bf16.mxu0 %v1235
  %1756 = vmatpush1.bf16.msra.mxu0 %v1234
  %1757 = vmatprep.subr.bf16.mxu0 %v1237
  %1758 = vmatpush1.bf16.msra.mxu0 %v1236
  %1759 = vmatprep.subr.bf16.mxu0 %v1239
  %1760 = vmatpush1.bf16.msra.mxu0 %v1238
  %1761 = vmatprep.subr.bf16.mxu0 %v1241
  %1762 = vmatpush1.bf16.msra.mxu0 %v1240
  %1763 = vmatprep.mubr.bf16.mxu0 %v343
  %1764 = vmatmul.mubr.bf16.gmra.mrb[0].mxu0 %v341
  %v1765 = vpop.f32.mrb[0].mxu0
  %v1766 = vadd.f32 %v1725, %v1765
  %v1767 = vpop.f32.mrb[0].mxu0
  %v1768 = vadd.f32 %v1727, %v1767
  %v1769 = vpop.f32.mrb[0].mxu0
  %v1770 = vpop.f32.mrb[0].mxu0
  %1771 = vdwg.mxu0
  %1772 = vmatprep.subr.bf16.mxu0 %v1243
  %1773 = vmatpush1.bf16.msra.mxu0 %v1242
  %1774 = vmatprep.subr.bf16.mxu0 %v1245
  %1775 = vmatpush1.bf16.msra.mxu0 %v1244
  %1776 = vmatprep.subr.bf16.mxu0 %v1247
  %1777 = vmatpush1.bf16.msra.mxu0 %v1246
  %1778 = vmatprep.subr.bf16.mxu0 %v1249
  %1779 = vmatpush1.bf16.msra.mxu0 %v1248
  %1780 = vmatprep.subr.bf16.mxu0 %v1251
  %1781 = vmatpush1.bf16.msra.mxu0 %v1250
  %1782 = vmatprep.subr.bf16.mxu0 %v1253
  %1783 = vmatpush1.bf16.msra.mxu0 %v1252
  %1784 = vmatprep.subr.bf16.mxu0 %v1255
  %1785 = vmatpush1.bf16.msra.mxu0 %v1254
  %1786 = vmatprep.subr.bf16.mxu0 %v1257
  %1787 = vmatpush1.bf16.msra.mxu0 %v1256
  %1788 = vmatprep.subr.bf16.mxu0 %v1259
  %1789 = vmatpush1.bf16.msra.mxu0 %v1258
  %1790 = vmatprep.subr.bf16.mxu0 %v1261
  %1791 = vmatpush1.bf16.msra.mxu0 %v1260
  %1792 = vmatprep.subr.bf16.mxu0 %v1263
  %1793 = vmatpush1.bf16.msra.mxu0 %v1262
  %1794 = vmatprep.subr.bf16.mxu0 %v1265
  %1795 = vmatpush1.bf16.msra.mxu0 %v1264
  %1796 = vmatprep.subr.bf16.mxu0 %v1267
  %1797 = vmatpush1.bf16.msra.mxu0 %v1266
  %1798 = vmatprep.subr.bf16.mxu0 %v1269
  %1799 = vmatpush1.bf16.msra.mxu0 %v1268
  %1800 = vmatprep.subr.bf16.mxu0 %v1271
  %1801 = vmatpush1.bf16.msra.mxu0 %v1270
  %1802 = vmatprep.subr.bf16.mxu0 %v1273
  %1803 = vmatpush1.bf16.msra.mxu0 %v1272
  %1804 = vmatprep.mubr.bf16.mxu0 %v340
  %1805 = vmatmul.mubr.bf16.gmra.mrb[0].mxu0 %v326
  %v1806 = vpop.f32.mrb[0].mxu0
  %v1807 = vadd.f32 %v1766, %v1806
  %v1808 = vpop.f32.mrb[0].mxu0
  %v1809 = vadd.f32 %v1768, %v1808
  %v1810 = vpop.f32.mrb[0].mxu0
  %v1811 = vpop.f32.mrb[0].mxu0
  %1812 = vdwg.mxu0
  %1813 = vmatprep.subr.bf16.mxu0 %v1275
  %1814 = vmatpush1.bf16.msra.mxu0 %v1274
  %1815 = vmatprep.subr.bf16.mxu0 %v1277
  %1816 = vmatpush1.bf16.msra.mxu0 %v1276
  %1817 = vmatprep.subr.bf16.mxu0 %v1279
  %1818 = vmatpush1.bf16.msra.mxu0 %v1278
  %1819 = vmatprep.subr.bf16.mxu0 %v1281
  %1820 = vmatpush1.bf16.msra.mxu0 %v1280
  %1821 = vmatprep.subr.bf16.mxu0 %v1283
  %1822 = vmatpush1.bf16.msra.mxu0 %v1282
  %1823 = vmatprep.subr.bf16.mxu0 %v1285
  %1824 = vmatpush1.bf16.msra.mxu0 %v1284
  %1825 = vmatprep.subr.bf16.mxu0 %v1287
  %1826 = vmatpush1.bf16.msra.mxu0 %v1286
  %1827 = vmatprep.subr.bf16.mxu0 %v1289
  %1828 = vmatpush1.bf16.msra.mxu0 %v1288
  %1829 = vmatprep.subr.bf16.mxu0 %v1291
  %1830 = vmatpush1.bf16.msra.mxu0 %v1290
  %1831 = vmatprep.subr.bf16.mxu0 %v1293
  %1832 = vmatpush1.bf16.msra.mxu0 %v1292
  %1833 = vmatprep.subr.bf16.mxu0 %v1295
  %1834 = vmatpush1.bf16.msra.mxu0 %v1294
  %1835 = vmatprep.subr.bf16.mxu0 %v1297
  %1836 = vmatpush1.bf16.msra.mxu0 %v1296
  %1837 = vmatprep.subr.bf16.mxu0 %v1299
  %1838 = vmatpush1.bf16.msra.mxu0 %v1298
  %1839 = vmatprep.subr.bf16.mxu0 %v1301
  %1840 = vmatpush1.bf16.msra.mxu0 %v1300
  %1841 = vmatprep.subr.bf16.mxu0 %v1303
  %1842 = vmatpush1.bf16.msra.mxu0 %v1302
  %1843 = vmatprep.subr.bf16.mxu0 %v1305
  %1844 = vmatpush1.bf16.msra.mxu0 %v1304
  %1845 = vmatprep.mubr.bf16.mxu0 %v344
  %1846 = vmatmul.mubr.bf16.gmra.mrb[0].mxu0 %v342
  %v1847 = vpop.f32.mrb[0].mxu0
  %v1848 = vadd.f32 %v1807, %v1847
  %v1849 = vpop.f32.mrb[0].mxu0
  %v1850 = vadd.f32 %v1809, %v1849
  %v1851 = vpop.f32.mrb[0].mxu0
  %v1852 = vpop.f32.mrb[0].mxu0
  %1853 = vdwg.mxu0
  %1854 = vmatprep.subr.bf16.mxu0 %v1307
  %1855 = vmatpush1.bf16.msra.mxu0 %v1306
  %1856 = vmatprep.subr.bf16.mxu0 %v1309
  %1857 = vmatpush1.bf16.msra.mxu0 %v1308
  %1858 = vmatprep.subr.bf16.mxu0 %v1311
  %1859 = vmatpush1.bf16.msra.mxu0 %v1310
  %1860 = vmatprep.subr.bf16.mxu0 %v1313
  %1861 = vmatpush1.bf16.msra.mxu0 %v1312
  %1862 = vmatprep.subr.bf16.mxu0 %v1315
  %1863 = vmatpush1.bf16.msra.mxu0 %v1314
  %1864 = vmatprep.subr.bf16.mxu0 %v1317
  %1865 = vmatpush1.bf16.msra.mxu0 %v1316
  %1866 = vmatprep.subr.bf16.mxu0 %v1319
  %1867 = vmatpush1.bf16.msra.mxu0 %v1318
  %1868 = vmatprep.subr.bf16.mxu0 %v1321
  %1869 = vmatpush1.bf16.msra.mxu0 %v1320
  %1870 = vmatprep.subr.bf16.mxu0 %v1323
  %1871 = vmatpush1.bf16.msra.mxu0 %v1322
  %1872 = vmatprep.subr.bf16.mxu0 %v1325
  %1873 = vmatpush1.bf16.msra.mxu0 %v1324
  %1874 = vmatprep.subr.bf16.mxu0 %v1327
  %1875 = vmatpush1.bf16.msra.mxu0 %v1326
  %1876 = vmatprep.subr.bf16.mxu0 %v1329
  %1877 = vmatpush1.bf16.msra.mxu0 %v1328
  %1878 = vmatprep.subr.bf16.mxu0 %v1331
  %1879 = vmatpush1.bf16.msra.mxu0 %v1330
  %1880 = vmatprep.subr.bf16.mxu0 %v1333
  %1881 = vmatpush1.bf16.msra.mxu0 %v1332
  %1882 = vmatprep.subr.bf16.mxu0 %v1335
  %1883 = vmatpush1.bf16.msra.mxu0 %v1334
  %1884 = vmatprep.subr.bf16.mxu0 %v1337
  %1885 = vmatpush1.bf16.msra.mxu0 %v1336
  %1886 = vmatprep.mubr.bf16.mxu0 %v382
  %1887 = vmatmul.mubr.bf16.gmra.mrb[0].mxu0 %v368
  %v1888 = vpop.f32.mrb[0].mxu0
  %v1889 = vadd.f32 %v1848, %v1888
  %v1890 = vpop.f32.mrb[0].mxu0
  %v1891 = vadd.f32 %v1850, %v1890
  %v1892 = vpop.f32.mrb[0].mxu0
  %v1893 = vpop.f32.mrb[0].mxu0
  %1894 = vdwg.mxu0
  %1895 = vmatprep.subr.bf16.mxu0 %v1339
  %1896 = vmatpush1.bf16.msra.mxu0 %v1338
  %1897 = vmatprep.subr.bf16.mxu0 %v1341
  %1898 = vmatpush1.bf16.msra.mxu0 %v1340
  %1899 = vmatprep.subr.bf16.mxu0 %v1343
  %1900 = vmatpush1.bf16.msra.mxu0 %v1342
  %1901 = vmatprep.subr.bf16.mxu0 %v1345
  %1902 = vmatpush1.bf16.msra.mxu0 %v1344
  %1903 = vmatprep.subr.bf16.mxu0 %v1347
  %1904 = vmatpush1.bf16.msra.mxu0 %v1346
  %1905 = vmatprep.subr.bf16.mxu0 %v1349
  %1906 = vmatpush1.bf16.msra.mxu0 %v1348
  %1907 = vmatprep.subr.bf16.mxu0 %v1351
  %1908 = vmatpush1.bf16.msra.mxu0 %v1350
  %1909 = vmatprep.subr.bf16.mxu0 %v1353
  %1910 = vmatpush1.bf16.msra.mxu0 %v1352
  %1911 = vmatprep.subr.bf16.mxu0 %v1355
  %1912 = vmatpush1.bf16.msra.mxu0 %v1354
  %1913 = vmatprep.subr.bf16.mxu0 %v1357
  %1914 = vmatpush1.bf16.msra.mxu0 %v1356
  %1915 = vmatprep.subr.bf16.mxu0 %v1359
  %1916 = vmatpush1.bf16.msra.mxu0 %v1358
  %1917 = vmatprep.subr.bf16.mxu0 %v1361
  %1918 = vmatpush1.bf16.msra.mxu0 %v1360
  %1919 = vmatprep.subr.bf16.mxu0 %v1363
  %1920 = vmatpush1.bf16.msra.mxu0 %v1362
  %1921 = vmatprep.subr.bf16.mxu0 %v1365
  %1922 = vmatpush1.bf16.msra.mxu0 %v1364
  %1923 = vmatprep.subr.bf16.mxu0 %v1367
  %1924 = vmatpush1.bf16.msra.mxu0 %v1366
  %1925 = vmatprep.subr.bf16.mxu0 %v1369
  %1926 = vmatpush1.bf16.msra.mxu0 %v1368
  %1927 = vmatprep.mubr.bf16.mxu0 %v392
  %1928 = vmatmul.mubr.bf16.gmra.mrb[0].mxu0 %v390
  %v1929 = vpop.f32.mrb[0].mxu0
  %v1930 = vadd.f32 %v1889, %v1929
  %v1931 = vpop.f32.mrb[0].mxu0
  %v1932 = vadd.f32 %v1891, %v1931
  %v1933 = vpop.f32.mrb[0].mxu0
  %v1934 = vpop.f32.mrb[0].mxu0
  %1935 = vdwg.mxu0
  %1936 = vmatprep.subr.bf16.mxu0 %v1371
  %1937 = vmatpush1.bf16.msra.mxu0 %v1370
  %1938 = vmatprep.subr.bf16.mxu0 %v1373
  %1939 = vmatpush1.bf16.msra.mxu0 %v1372
  %1940 = vmatprep.subr.bf16.mxu0 %v1375
  %1941 = vmatpush1.bf16.msra.mxu0 %v1374
  %1942 = vmatprep.subr.bf16.mxu0 %v1377
  %1943 = vmatpush1.bf16.msra.mxu0 %v1376
  %1944 = vmatprep.subr.bf16.mxu0 %v1379
  %1945 = vmatpush1.bf16.msra.mxu0 %v1378
  %1946 = vmatprep.subr.bf16.mxu0 %v1381
  %1947 = vmatpush1.bf16.msra.mxu0 %v1380
  %1948 = vmatprep.subr.bf16.mxu0 %v1383
  %1949 = vmatpush1.bf16.msra.mxu0 %v1382
  %1950 = vmatprep.subr.bf16.mxu0 %v1385
  %1951 = vmatpush1.bf16.msra.mxu0 %v1384
  %1952 = vmatprep.subr.bf16.mxu0 %v1387
  %1953 = vmatpush1.bf16.msra.mxu0 %v1386
  %1954 = vmatprep.subr.bf16.mxu0 %v1389
  %1955 = vmatpush1.bf16.msra.mxu0 %v1388
  %1956 = vmatprep.subr.bf16.mxu0 %v1391
  %1957 = vmatpush1.bf16.msra.mxu0 %v1390
  %1958 = vmatprep.subr.bf16.mxu0 %v1393
  %1959 = vmatpush1.bf16.msra.mxu0 %v1392
  %1960 = vmatprep.subr.bf16.mxu0 %v1395
  %1961 = vmatpush1.bf16.msra.mxu0 %v1394
  %1962 = vmatprep.subr.bf16.mxu0 %v1397
  %1963 = vmatpush1.bf16.msra.mxu0 %v1396
  %1964 = vmatprep.subr.bf16.mxu0 %v1399
  %1965 = vmatpush1.bf16.msra.mxu0 %v1398
  %1966 = vmatprep.subr.bf16.mxu0 %v1401
  %1967 = vmatpush1.bf16.msra.mxu0 %v1400
  %1968 = vmatprep.mubr.bf16.mxu0 %v389
  %1969 = vmatmul.mubr.bf16.gmra.mrb[0].mxu0 %v375
  %v1970 = vpop.f32.mrb[0].mxu0
  %v1971 = vadd.f32 %v1930, %v1970
  %v1972 = vpop.f32.mrb[0].mxu0
  %v1973 = vadd.f32 %v1932, %v1972
  %v1974 = vpop.f32.mrb[0].mxu0
  %v1975 = vpop.f32.mrb[0].mxu0
  %1976 = vdwg.mxu0
  %1977 = vmatprep.subr.bf16.mxu0 %v1403
  %1978 = vmatpush1.bf16.msra.mxu0 %v1402
  %1979 = vmatprep.subr.bf16.mxu0 %v1405
  %1980 = vmatpush1.bf16.msra.mxu0 %v1404
  %1981 = vmatprep.subr.bf16.mxu0 %v1407
  %1982 = vmatpush1.bf16.msra.mxu0 %v1406
  %1983 = vmatprep.subr.bf16.mxu0 %v1409
  %1984 = vmatpush1.bf16.msra.mxu0 %v1408
  %1985 = vmatprep.subr.bf16.mxu0 %v1411
  %1986 = vmatpush1.bf16.msra.mxu0 %v1410
  %1987 = vmatprep.subr.bf16.mxu0 %v1413
  %1988 = vmatpush1.bf16.msra.mxu0 %v1412
  %1989 = vmatprep.subr.bf16.mxu0 %v1415
  %1990 = vmatpush1.bf16.msra.mxu0 %v1414
  %1991 = vmatprep.subr.bf16.mxu0 %v1417
  %1992 = vmatpush1.bf16.msra.mxu0 %v1416
  %1993 = vmatprep.subr.bf16.mxu0 %v1419
  %1994 = vmatpush1.bf16.msra.mxu0 %v1418
  %1995 = vmatprep.subr.bf16.mxu0 %v1421
  %1996 = vmatpush1.bf16.msra.mxu0 %v1420
  %1997 = vmatprep.subr.bf16.mxu0 %v1423
  %1998 = vmatpush1.bf16.msra.mxu0 %v1422
  %1999 = vmatprep.subr.bf16.mxu0 %v1425
  %2000 = vmatpush1.bf16.msra.mxu0 %v1424
  %2001 = vmatprep.subr.bf16.mxu0 %v1427
  %2002 = vmatpush1.bf16.msra.mxu0 %v1426
  %2003 = vmatprep.subr.bf16.mxu0 %v1429
  %2004 = vmatpush1.bf16.msra.mxu0 %v1428
  %2005 = vmatprep.subr.bf16.mxu0 %v1431
  %2006 = vmatpush1.bf16.msra.mxu0 %v1430
  %2007 = vmatprep.subr.bf16.mxu0 %v1433
  %2008 = vmatpush1.bf16.msra.mxu0 %v1432
  %2009 = vmatprep.mubr.bf16.mxu0 %v393
  %2010 = vmatmul.mubr.bf16.gmra.mrb[0].mxu0 %v391
  %v2011 = vpop.f32.mrb[0].mxu0
  %v2012 = vadd.f32 %v1971, %v2011
  %v2013 = vpop.f32.mrb[0].mxu0
  %v2014 = vadd.f32 %v1973, %v2013
  %v2015 = vpop.f32.mrb[0].mxu0
  %v2016 = vpop.f32.mrb[0].mxu0
  %2017 = vdwg.mxu0
  %v2018 = vmul.f32 %v2014, 0.5
  %v2019 = vmul.f32 %v2018, 1.442695
  %v2020 = vpow.pop %v2019
  %v2021 = vld [vmem:[%s3] sm:$0x3]
  %v2022 = vmul.f32 %v2020, %v2021
  %v2023 = vadd.f32 %v2012, %v2022
  %v2024 = vpack.c.bf16 %v2023, %v2023
  %v2025 = vld [vmem:[%s4] sm:$0xff]
  %v2026 = vld [vmem:[%s4 + $0x8] sm:$0xff]
  %v2027 = vld [vmem:[%s4 + $0x10] sm:$0xff]
  %v2028 = vld [vmem:[%s4 + $0x18] sm:$0xff]
  %v2029 = vld [vmem:[%s4 + $0x20] sm:$0xff]
  %v2030 = vld [vmem:[%s4 + $0x28] sm:$0xff]
  %v2031 = vld [vmem:[%s4 + $0x30] sm:$0xff]
  %v2032 = vld [vmem:[%s4 + $0x38] sm:$0xff]
  %v2033 = vld [vmem:[%s4 + $0x40] sm:$0xff]
  %v2034 = vld [vmem:[%s4 + $0x48] sm:$0xff]
  %v2035 = vld [vmem:[%s4 + $0x50] sm:$0xff]
  %v2036 = vld [vmem:[%s4 + $0x58] sm:$0xff]
  %v2037 = vld [vmem:[%s4 + $0x60] sm:$0xff]
  %v2038 = vld [vmem:[%s4 + $0x68] sm:$0xff]
  %v2039 = vld [vmem:[%s4 + $0x70] sm:$0xff]
  %v2040 = vld [vmem:[%s4 + $0x78] sm:$0xff]
  %v2041 = vld [vmem:[%s4 + $0x80] sm:$0xff]
  %v2042 = vld [vmem:[%s4 + $0x88] sm:$0xff]
  %v2043 = vld [vmem:[%s4 + $0x90] sm:$0xff]
  %v2044 = vld [vmem:[%s4 + $0x98] sm:$0xff]
  %v2045 = vld [vmem:[%s4 + $0xa0] sm:$0xff]
  %v2046 = vld [vmem:[%s4 + $0xa8] sm:$0xff]
  %v2047 = vld [vmem:[%s4 + $0xb0] sm:$0xff]
  %v2048 = vld [vmem:[%s4 + $0xb8] sm:$0xff]
  %v2049 = vld [vmem:[%s4 + $0xc0] sm:$0xff]
  %v2050 = vld [vmem:[%s4 + $0xc8] sm:$0xff]
  %v2051 = vld [vmem:[%s4 + $0xd0] sm:$0xff]
  %v2052 = vld [vmem:[%s4 + $0xd8] sm:$0xff]
  %v2053 = vld [vmem:[%s4 + $0xe0] sm:$0xff]
  %v2054 = vld [vmem:[%s4 + $0xe8] sm:$0xff]
  %v2055 = vld [vmem:[%s4 + $0xf0] sm:$0xff]
  %v2056 = vld [vmem:[%s4 + $0xf8] sm:$0xff]
  %v2057 = vld [vmem:[%s4 + $0x100] sm:$0xff]
  %v2058 = vld [vmem:[%s4 + $0x108] sm:$0xff]
  %v2059 = vld [vmem:[%s4 + $0x110] sm:$0xff]
  %v2060 = vld [vmem:[%s4 + $0x118] sm:$0xff]
  %v2061 = vld [vmem:[%s4 + $0x120] sm:$0xff]
  %v2062 = vld [vmem:[%s4 + $0x128] sm:$0xff]
  %v2063 = vld [vmem:[%s4 + $0x130] sm:$0xff]
  %v2064 = vld [vmem:[%s4 + $0x138] sm:$0xff]
  %v2065 = vld [vmem:[%s4 + $0x140] sm:$0xff]
  %v2066 = vld [vmem:[%s4 + $0x148] sm:$0xff]
  %v2067 = vld [vmem:[%s4 + $0x150] sm:$0xff]
  %v2068 = vld [vmem:[%s4 + $0x158] sm:$0xff]
  %v2069 = vld [vmem:[%s4 + $0x160] sm:$0xff]
  %v2070 = vld [vmem:[%s4 + $0x168] sm:$0xff]
  %v2071 = vld [vmem:[%s4 + $0x170] sm:$0xff]
  %v2072 = vld [vmem:[%s4 + $0x178] sm:$0xff]
  %v2073 = vld [vmem:[%s4 + $0x180] sm:$0xff]
  %v2074 = vld [vmem:[%s4 + $0x188] sm:$0xff]
  %v2075 = vld [vmem:[%s4 + $0x190] sm:$0xff]
  %v2076 = vld [vmem:[%s4 + $0x198] sm:$0xff]
  %v2077 = vld [vmem:[%s4 + $0x1a0] sm:$0xff]
  %v2078 = vld [vmem:[%s4 + $0x1a8] sm:$0xff]
  %v2079 = vld [vmem:[%s4 + $0x1b0] sm:$0xff]
  %v2080 = vld [vmem:[%s4 + $0x1b8] sm:$0xff]
  %v2081 = vld [vmem:[%s4 + $0x1c0] sm:$0xff]
  %v2082 = vld [vmem:[%s4 + $0x1c8] sm:$0xff]
  %v2083 = vld [vmem:[%s4 + $0x1d0] sm:$0xff]
  %v2084 = vld [vmem:[%s4 + $0x1d8] sm:$0xff]
  %v2085 = vld [vmem:[%s4 + $0x1e0] sm:$0xff]
  %v2086 = vld [vmem:[%s4 + $0x1e8] sm:$0xff]
  %v2087 = vld [vmem:[%s4 + $0x1f0] sm:$0xff]
  %v2088 = vld [vmem:[%s4 + $0x1f8] sm:$0xff]
  %v2089 = vld [vmem:[%s4 + $0x200] sm:$0xff]
  %v2090 = vld [vmem:[%s4 + $0x208] sm:$0xff]
  %v2091 = vld [vmem:[%s4 + $0x210] sm:$0xff]
  %v2092 = vld [vmem:[%s4 + $0x218] sm:$0xff]
  %v2093 = vld [vmem:[%s4 + $0x220] sm:$0xff]
  %v2094 = vld [vmem:[%s4 + $0x228] sm:$0xff]
  %v2095 = vld [vmem:[%s4 + $0x230] sm:$0xff]
  %v2096 = vld [vmem:[%s4 + $0x238] sm:$0xff]
  %v2097 = vld [vmem:[%s4 + $0x240] sm:$0xff]
  %v2098 = vld [vmem:[%s4 + $0x248] sm:$0xff]
  %v2099 = vld [vmem:[%s4 + $0x250] sm:$0xff]
  %v2100 = vld [vmem:[%s4 + $0x258] sm:$0xff]
  %v2101 = vld [vmem:[%s4 + $0x260] sm:$0xff]
  %v2102 = vld [vmem:[%s4 + $0x268] sm:$0xff]
  %v2103 = vld [vmem:[%s4 + $0x270] sm:$0xff]
  %v2104 = vld [vmem:[%s4 + $0x278] sm:$0xff]
  %v2105 = vld [vmem:[%s4 + $0x280] sm:$0xff]
  %v2106 = vld [vmem:[%s4 + $0x288] sm:$0xff]
  %v2107 = vld [vmem:[%s4 + $0x290] sm:$0xff]
  %v2108 = vld [vmem:[%s4 + $0x298] sm:$0xff]
  %v2109 = vld [vmem:[%s4 + $0x2a0] sm:$0xff]
  %v2110 = vld [vmem:[%s4 + $0x2a8] sm:$0xff]
  %v2111 = vld [vmem:[%s4 + $0x2b0] sm:$0xff]
  %v2112 = vld [vmem:[%s4 + $0x2b8] sm:$0xff]
  %v2113 = vld [vmem:[%s4 + $0x2c0] sm:$0xff]
  %v2114 = vld [vmem:[%s4 + $0x2c8] sm:$0xff]
  %v2115 = vld [vmem:[%s4 + $0x2d0] sm:$0xff]
  %v2116 = vld [vmem:[%s4 + $0x2d8] sm:$0xff]
  %v2117 = vld [vmem:[%s4 + $0x2e0] sm:$0xff]
  %v2118 = vld [vmem:[%s4 + $0x2e8] sm:$0xff]
  %v2119 = vld [vmem:[%s4 + $0x2f0] sm:$0xff]
  %v2120 = vld [vmem:[%s4 + $0x2f8] sm:$0xff]
  %v2121 = vld [vmem:[%s4 + $0x300] sm:$0xff]
  %v2122 = vld [vmem:[%s4 + $0x308] sm:$0xff]
  %v2123 = vld [vmem:[%s4 + $0x310] sm:$0xff]
  %v2124 = vld [vmem:[%s4 + $0x318] sm:$0xff]
  %v2125 = vld [vmem:[%s4 + $0x320] sm:$0xff]
  %v2126 = vld [vmem:[%s4 + $0x328] sm:$0xff]
  %v2127 = vld [vmem:[%s4 + $0x330] sm:$0xff]
  %v2128 = vld [vmem:[%s4 + $0x338] sm:$0xff]
  %v2129 = vld [vmem:[%s4 + $0x340] sm:$0xff]
  %v2130 = vld [vmem:[%s4 + $0x348] sm:$0xff]
  %v2131 = vld [vmem:[%s4 + $0x350] sm:$0xff]
  %v2132 = vld [vmem:[%s4 + $0x358] sm:$0xff]
  %v2133 = vld [vmem:[%s4 + $0x360] sm:$0xff]
  %v2134 = vld [vmem:[%s4 + $0x368] sm:$0xff]
  %v2135 = vld [vmem:[%s4 + $0x370] sm:$0xff]
  %v2136 = vld [vmem:[%s4 + $0x378] sm:$0xff]
  %v2137 = vld [vmem:[%s4 + $0x380] sm:$0xff]
  %v2138 = vld [vmem:[%s4 + $0x388] sm:$0xff]
  %v2139 = vld [vmem:[%s4 + $0x390] sm:$0xff]
  %v2140 = vld [vmem:[%s4 + $0x398] sm:$0xff]
  %v2141 = vld [vmem:[%s4 + $0x3a0] sm:$0xff]
  %v2142 = vld [vmem:[%s4 + $0x3a8] sm:$0xff]
  %v2143 = vld [vmem:[%s4 + $0x3b0] sm:$0xff]
  %v2144 = vld [vmem:[%s4 + $0x3b8] sm:$0xff]
  %v2145 = vld [vmem:[%s4 + $0x3c0] sm:$0xff]
  %v2146 = vld [vmem:[%s4 + $0x3c8] sm:$0xff]
  %v2147 = vld [vmem:[%s4 + $0x3d0] sm:$0xff]
  %v2148 = vld [vmem:[%s4 + $0x3d8] sm:$0xff]
  %v2149 = vld [vmem:[%s4 + $0x3e0] sm:$0xff]
  %v2150 = vld [vmem:[%s4 + $0x3e8] sm:$0xff]
  %v2151 = vld [vmem:[%s4 + $0x3f0] sm:$0xff]
  %v2152 = vld [vmem:[%s4 + $0x3f8] sm:$0xff]
  %v2153 = vld [vmem:[%s5] sm:$0xff]
  %v2154 = vld [vmem:[%s5 + $0x8] sm:$0xff]
  %v2157 = vlaneseq
  %v2158 = vshrl.u32 %v2157, 7
  %v2159 = vsub.s32 0, %v2158
  %v2160 = vrot.slane %v2153, %v2159
  %v2161 = vlaneseq
  %v2162 = vshrl.u32 %v2161, 7
  %v2163 = vsub.s32 1, %v2162
  %v2164 = vrot.slane %v2153, %v2163
  %v2165 = vlaneseq
  %v2166 = vshrl.u32 %v2165, 7
  %v2167 = vsub.s32 2, %v2166
  %v2168 = vrot.slane %v2153, %v2167
  %v2169 = vlaneseq
  %v2170 = vshrl.u32 %v2169, 7
  %v2171 = vsub.s32 3, %v2170
  %v2172 = vrot.slane %v2153, %v2171
  %v2173 = vlaneseq
  %v2174 = vshrl.u32 %v2173, 7
  %v2175 = vsub.s32 4, %v2174
  %v2176 = vrot.slane %v2153, %v2175
  %v2177 = vlaneseq
  %v2178 = vshrl.u32 %v2177, 7
  %v2179 = vsub.s32 5, %v2178
  %v2180 = vrot.slane %v2153, %v2179
  %v2181 = vlaneseq
  %v2182 = vshrl.u32 %v2181, 7
  %v2183 = vsub.s32 6, %v2182
  %v2184 = vrot.slane %v2153, %v2183
  %v2185 = vlaneseq
  %v2186 = vshrl.u32 %v2185, 7
  %v2187 = vsub.s32 7, %v2186
  %v2188 = vrot.slane %v2153, %v2187
  %v2189 = vlaneseq
  %v2190 = vshrl.u32 %v2189, 7
  %v2191 = vsub.s32 0, %v2190
  %v2192 = vrot.slane %v2154, %v2191
  %v2193 = vlaneseq
  %v2194 = vshrl.u32 %v2193, 7
  %v2195 = vsub.s32 1, %v2194
  %v2196 = vrot.slane %v2154, %v2195
  %v2197 = vlaneseq
  %v2198 = vshrl.u32 %v2197, 7
  %v2199 = vsub.s32 2, %v2198
  %v2200 = vrot.slane %v2154, %v2199
  %v2201 = vlaneseq
  %v2202 = vshrl.u32 %v2201, 7
  %v2203 = vsub.s32 3, %v2202
  %v2204 = vrot.slane %v2154, %v2203
  %v2205 = vlaneseq
  %v2206 = vshrl.u32 %v2205, 7
  %v2207 = vsub.s32 4, %v2206
  %v2208 = vrot.slane %v2154, %v2207
  %v2209 = vlaneseq
  %v2210 = vshrl.u32 %v2209, 7
  %v2211 = vsub.s32 5, %v2210
  %v2212 = vrot.slane %v2154, %v2211
  %v2213 = vlaneseq
  %v2214 = vshrl.u32 %v2213, 7
  %v2215 = vsub.s32 6, %v2214
  %v2216 = vrot.slane %v2154, %v2215
  %v2217 = vlaneseq
  %v2218 = vshrl.u32 %v2217, 7
  %v2219 = vsub.s32 7, %v2218
  %v2220 = vrot.slane %v2154, %v2219
  %v2365 = vunpack.c.l.b16 %v2025
  %v2366 = vunpack.c.h.b16 %v2025
  %v2367 = vunpack.c.l.b16 %v2026
  %v2368 = vunpack.c.h.b16 %v2026
  %v2369 = vunpack.c.l.b16 %v2027
  %v2370 = vunpack.c.h.b16 %v2027
  %v2371 = vunpack.c.l.b16 %v2028
  %v2372 = vunpack.c.h.b16 %v2028
  %v2373 = vunpack.c.l.b16 %v2029
  %v2374 = vunpack.c.h.b16 %v2029
  %v2375 = vunpack.c.l.b16 %v2030
  %v2376 = vunpack.c.h.b16 %v2030
  %v2377 = vunpack.c.l.b16 %v2031
  %v2378 = vunpack.c.h.b16 %v2031
  %v2379 = vunpack.c.l.b16 %v2032
  %v2380 = vunpack.c.h.b16 %v2032
  %v2381 = vunpack.c.l.b16 %v2033
  %v2382 = vunpack.c.h.b16 %v2033
  %v2383 = vunpack.c.l.b16 %v2034
  %v2384 = vunpack.c.h.b16 %v2034
  %v2385 = vunpack.c.l.b16 %v2035
  %v2386 = vunpack.c.h.b16 %v2035
  %v2387 = vunpack.c.l.b16 %v2036
  %v2388 = vunpack.c.h.b16 %v2036
  %v2389 = vunpack.c.l.b16 %v2037
  %v2390 = vunpack.c.h.b16 %v2037
  %v2391 = vunpack.c.l.b16 %v2038
  %v2392 = vunpack.c.h.b16 %v2038
  %v2393 = vunpack.c.l.b16 %v2039
  %v2394 = vunpack.c.h.b16 %v2039
  %v2395 = vunpack.c.l.b16 %v2040
  %v2396 = vunpack.c.h.b16 %v2040
  %v2397 = vunpack.c.l.b16 %v2041
  %v2398 = vunpack.c.h.b16 %v2041
  %v2399 = vunpack.c.l.b16 %v2042
  %v2400 = vunpack.c.h.b16 %v2042
  %v2401 = vunpack.c.l.b16 %v2043
  %v2402 = vunpack.c.h.b16 %v2043
  %v2403 = vunpack.c.l.b16 %v2044
  %v2404 = vunpack.c.h.b16 %v2044
  %v2405 = vunpack.c.l.b16 %v2045
  %v2406 = vunpack.c.h.b16 %v2045
  %v2407 = vunpack.c.l.b16 %v2046
  %v2408 = vunpack.c.h.b16 %v2046
  %v2409 = vunpack.c.l.b16 %v2047
  %v2410 = vunpack.c.h.b16 %v2047
  %v2411 = vunpack.c.l.b16 %v2048
  %v2412 = vunpack.c.h.b16 %v2048
  %v2413 = vunpack.c.l.b16 %v2049
  %v2414 = vunpack.c.h.b16 %v2049
  %v2415 = vunpack.c.l.b16 %v2050
  %v2416 = vunpack.c.h.b16 %v2050
  %v2417 = vunpack.c.l.b16 %v2051
  %v2418 = vunpack.c.h.b16 %v2051
  %v2419 = vunpack.c.l.b16 %v2052
  %v2420 = vunpack.c.h.b16 %v2052
  %v2421 = vunpack.c.l.b16 %v2053
  %v2422 = vunpack.c.h.b16 %v2053
  %v2423 = vunpack.c.l.b16 %v2054
  %v2424 = vunpack.c.h.b16 %v2054
  %v2425 = vunpack.c.l.b16 %v2055
  %v2426 = vunpack.c.h.b16 %v2055
  %v2427 = vunpack.c.l.b16 %v2056
  %v2428 = vunpack.c.h.b16 %v2056
  %v2429 = vunpack.c.l.b16 %v2057
  %v2430 = vunpack.c.h.b16 %v2057
  %v2431 = vunpack.c.l.b16 %v2058
  %v2432 = vunpack.c.h.b16 %v2058
  %v2433 = vunpack.c.l.b16 %v2059
  %v2434 = vunpack.c.h.b16 %v2059
  %v2435 = vunpack.c.l.b16 %v2060
  %v2436 = vunpack.c.h.b16 %v2060
  %v2437 = vunpack.c.l.b16 %v2061
  %v2438 = vunpack.c.h.b16 %v2061
  %v2439 = vunpack.c.l.b16 %v2062
  %v2440 = vunpack.c.h.b16 %v2062
  %v2441 = vunpack.c.l.b16 %v2063
  %v2442 = vunpack.c.h.b16 %v2063
  %v2443 = vunpack.c.l.b16 %v2064
  %v2444 = vunpack.c.h.b16 %v2064
  %v2445 = vunpack.c.l.b16 %v2065
  %v2446 = vunpack.c.h.b16 %v2065
  %v2447 = vunpack.c.l.b16 %v2066
  %v2448 = vunpack.c.h.b16 %v2066
  %v2449 = vunpack.c.l.b16 %v2067
  %v2450 = vunpack.c.h.b16 %v2067
  %v2451 = vunpack.c.l.b16 %v2068
  %v2452 = vunpack.c.h.b16 %v2068
  %v2453 = vunpack.c.l.b16 %v2069
  %v2454 = vunpack.c.h.b16 %v2069
  %v2455 = vunpack.c.l.b16 %v2070
  %v2456 = vunpack.c.h.b16 %v2070
  %v2457 = vunpack.c.l.b16 %v2071
  %v2458 = vunpack.c.h.b16 %v2071
  %v2459 = vunpack.c.l.b16 %v2072
  %v2460 = vunpack.c.h.b16 %v2072
  %v2461 = vunpack.c.l.b16 %v2073
  %v2462 = vunpack.c.h.b16 %v2073
  %v2463 = vunpack.c.l.b16 %v2074
  %v2464 = vunpack.c.h.b16 %v2074
  %v2465 = vunpack.c.l.b16 %v2075
  %v2466 = vunpack.c.h.b16 %v2075
  %v2467 = vunpack.c.l.b16 %v2076
  %v2468 = vunpack.c.h.b16 %v2076
  %v2469 = vunpack.c.l.b16 %v2077
  %v2470 = vunpack.c.h.b16 %v2077
  %v2471 = vunpack.c.l.b16 %v2078
  %v2472 = vunpack.c.h.b16 %v2078
  %v2473 = vunpack.c.l.b16 %v2079
  %v2474 = vunpack.c.h.b16 %v2079
  %v2475 = vunpack.c.l.b16 %v2080
  %v2476 = vunpack.c.h.b16 %v2080
  %v2477 = vunpack.c.l.b16 %v2081
  %v2478 = vunpack.c.h.b16 %v2081
  %v2479 = vunpack.c.l.b16 %v2082
  %v2480 = vunpack.c.h.b16 %v2082
  %v2481 = vunpack.c.l.b16 %v2083
  %v2482 = vunpack.c.h.b16 %v2083
  %v2483 = vunpack.c.l.b16 %v2084
  %v2484 = vunpack.c.h.b16 %v2084
  %v2485 = vunpack.c.l.b16 %v2085
  %v2486 = vunpack.c.h.b16 %v2085
  %v2487 = vunpack.c.l.b16 %v2086
  %v2488 = vunpack.c.h.b16 %v2086
  %v2489 = vunpack.c.l.b16 %v2087
  %v2490 = vunpack.c.h.b16 %v2087
  %v2491 = vunpack.c.l.b16 %v2088
  %v2492 = vunpack.c.h.b16 %v2088
  %v2493 = vunpack.c.l.b16 %v2089
  %v2494 = vunpack.c.h.b16 %v2089
  %v2495 = vunpack.c.l.b16 %v2090
  %v2496 = vunpack.c.h.b16 %v2090
  %v2497 = vunpack.c.l.b16 %v2091
  %v2498 = vunpack.c.h.b16 %v2091
  %v2499 = vunpack.c.l.b16 %v2092
  %v2500 = vunpack.c.h.b16 %v2092
  %v2501 = vunpack.c.l.b16 %v2093
  %v2502 = vunpack.c.h.b16 %v2093
  %v2503 = vunpack.c.l.b16 %v2094
  %v2504 = vunpack.c.h.b16 %v2094
  %v2505 = vunpack.c.l.b16 %v2095
  %v2506 = vunpack.c.h.b16 %v2095
  %v2507 = vunpack.c.l.b16 %v2096
  %v2508 = vunpack.c.h.b16 %v2096
  %v2509 = vunpack.c.l.b16 %v2097
  %v2510 = vunpack.c.h.b16 %v2097
  %v2511 = vunpack.c.l.b16 %v2098
  %v2512 = vunpack.c.h.b16 %v2098
  %v2513 = vunpack.c.l.b16 %v2099
  %v2514 = vunpack.c.h.b16 %v2099
  %v2515 = vunpack.c.l.b16 %v2100
  %v2516 = vunpack.c.h.b16 %v2100
  %v2517 = vunpack.c.l.b16 %v2101
  %v2518 = vunpack.c.h.b16 %v2101
  %v2519 = vunpack.c.l.b16 %v2102
  %v2520 = vunpack.c.h.b16 %v2102
  %v2521 = vunpack.c.l.b16 %v2103
  %v2522 = vunpack.c.h.b16 %v2103
  %v2523 = vunpack.c.l.b16 %v2104
  %v2524 = vunpack.c.h.b16 %v2104
  %v2525 = vunpack.c.l.b16 %v2105
  %v2526 = vunpack.c.h.b16 %v2105
  %v2527 = vunpack.c.l.b16 %v2106
  %v2528 = vunpack.c.h.b16 %v2106
  %v2529 = vunpack.c.l.b16 %v2107
  %v2530 = vunpack.c.h.b16 %v2107
  %v2531 = vunpack.c.l.b16 %v2108
  %v2532 = vunpack.c.h.b16 %v2108
  %v2533 = vunpack.c.l.b16 %v2109
  %v2534 = vunpack.c.h.b16 %v2109
  %v2535 = vunpack.c.l.b16 %v2110
  %v2536 = vunpack.c.h.b16 %v2110
  %v2537 = vunpack.c.l.b16 %v2111
  %v2538 = vunpack.c.h.b16 %v2111
  %v2539 = vunpack.c.l.b16 %v2112
  %v2540 = vunpack.c.h.b16 %v2112
  %v2541 = vunpack.c.l.b16 %v2113
  %v2542 = vunpack.c.h.b16 %v2113
  %v2543 = vunpack.c.l.b16 %v2114
  %v2544 = vunpack.c.h.b16 %v2114
  %v2545 = vunpack.c.l.b16 %v2115
  %v2546 = vunpack.c.h.b16 %v2115
  %v2547 = vunpack.c.l.b16 %v2116
  %v2548 = vunpack.c.h.b16 %v2116
  %v2549 = vunpack.c.l.b16 %v2117
  %v2550 = vunpack.c.h.b16 %v2117
  %v2551 = vunpack.c.l.b16 %v2118
  %v2552 = vunpack.c.h.b16 %v2118
  %v2553 = vunpack.c.l.b16 %v2119
  %v2554 = vunpack.c.h.b16 %v2119
  %v2555 = vunpack.c.l.b16 %v2120
  %v2556 = vunpack.c.h.b16 %v2120
  %v2557 = vunpack.c.l.b16 %v2121
  %v2558 = vunpack.c.h.b16 %v2121
  %v2559 = vunpack.c.l.b16 %v2122
  %v2560 = vunpack.c.h.b16 %v2122
  %v2561 = vunpack.c.l.b16 %v2123
  %v2562 = vunpack.c.h.b16 %v2123
  %v2563 = vunpack.c.l.b16 %v2124
  %v2564 = vunpack.c.h.b16 %v2124
  %v2565 = vunpack.c.l.b16 %v2125
  %v2566 = vunpack.c.h.b16 %v2125
  %v2567 = vunpack.c.l.b16 %v2126
  %v2568 = vunpack.c.h.b16 %v2126
  %v2569 = vunpack.c.l.b16 %v2127
  %v2570 = vunpack.c.h.b16 %v2127
  %v2571 = vunpack.c.l.b16 %v2128
  %v2572 = vunpack.c.h.b16 %v2128
  %v2573 = vunpack.c.l.b16 %v2129
  %v2574 = vunpack.c.h.b16 %v2129
  %v2575 = vunpack.c.l.b16 %v2130
  %v2576 = vunpack.c.h.b16 %v2130
  %v2577 = vunpack.c.l.b16 %v2131
  %v2578 = vunpack.c.h.b16 %v2131
  %v2579 = vunpack.c.l.b16 %v2132
  %v2580 = vunpack.c.h.b16 %v2132
  %v2581 = vunpack.c.l.b16 %v2133
  %v2582 = vunpack.c.h.b16 %v2133
  %v2583 = vunpack.c.l.b16 %v2134
  %v2584 = vunpack.c.h.b16 %v2134
  %v2585 = vunpack.c.l.b16 %v2135
  %v2586 = vunpack.c.h.b16 %v2135
  %v2587 = vunpack.c.l.b16 %v2136
  %v2588 = vunpack.c.h.b16 %v2136
  %v2589 = vunpack.c.l.b16 %v2137
  %v2590 = vunpack.c.h.b16 %v2137
  %v2591 = vunpack.c.l.b16 %v2138
  %v2592 = vunpack.c.h.b16 %v2138
  %v2593 = vunpack.c.l.b16 %v2139
  %v2594 = vunpack.c.h.b16 %v2139
  %v2595 = vunpack.c.l.b16 %v2140
  %v2596 = vunpack.c.h.b16 %v2140
  %v2597 = vunpack.c.l.b16 %v2141
  %v2598 = vunpack.c.h.b16 %v2141
  %v2599 = vunpack.c.l.b16 %v2142
  %v2600 = vunpack.c.h.b16 %v2142
  %v2601 = vunpack.c.l.b16 %v2143
  %v2602 = vunpack.c.h.b16 %v2143
  %v2603 = vunpack.c.l.b16 %v2144
  %v2604 = vunpack.c.h.b16 %v2144
  %v2605 = vunpack.c.l.b16 %v2145
  %v2606 = vunpack.c.h.b16 %v2145
  %v2607 = vunpack.c.l.b16 %v2146
  %v2608 = vunpack.c.h.b16 %v2146
  %v2609 = vunpack.c.l.b16 %v2147
  %v2610 = vunpack.c.h.b16 %v2147
  %v2611 = vunpack.c.l.b16 %v2148
  %v2612 = vunpack.c.h.b16 %v2148
  %v2613 = vunpack.c.l.b16 %v2149
  %v2614 = vunpack.c.h.b16 %v2149
  %v2615 = vunpack.c.l.b16 %v2150
  %v2616 = vunpack.c.h.b16 %v2150
  %v2617 = vunpack.c.l.b16 %v2151
  %v2618 = vunpack.c.h.b16 %v2151
  %v2619 = vunpack.c.l.b16 %v2152
  %v2620 = vunpack.c.h.b16 %v2152
  %v2621 = vpack.c.b16 %v2381, %v2365
  %v2622 = vpack.c.b16 %v2382, %v2366
  %v2623 = vpack.c.b16 %v2383, %v2367
  %v2624 = vpack.c.b16 %v2384, %v2368
  %v2625 = vpack.c.b16 %v2385, %v2369
  %v2626 = vpack.c.b16 %v2386, %v2370
  %v2627 = vpack.c.b16 %v2387, %v2371
  %v2628 = vpack.c.b16 %v2388, %v2372
  %v2629 = vpack.c.b16 %v2389, %v2373
  %v2630 = vpack.c.b16 %v2390, %v2374
  %v2631 = vpack.c.b16 %v2391, %v2375
  %v2632 = vpack.c.b16 %v2392, %v2376
  %v2633 = vpack.c.b16 %v2393, %v2377
  %v2634 = vpack.c.b16 %v2394, %v2378
  %v2635 = vpack.c.b16 %v2395, %v2379
  %v2636 = vpack.c.b16 %v2396, %v2380
  %v2637 = vpack.c.b16 %v2413, %v2397
  %v2638 = vpack.c.b16 %v2414, %v2398
  %v2639 = vpack.c.b16 %v2415, %v2399
  %v2640 = vpack.c.b16 %v2416, %v2400
  %v2641 = vpack.c.b16 %v2417, %v2401
  %v2642 = vpack.c.b16 %v2418, %v2402
  %v2643 = vpack.c.b16 %v2419, %v2403
  %v2644 = vpack.c.b16 %v2420, %v2404
  %v2645 = vpack.c.b16 %v2421, %v2405
  %v2646 = vpack.c.b16 %v2422, %v2406
  %v2647 = vpack.c.b16 %v2423, %v2407
  %v2648 = vpack.c.b16 %v2424, %v2408
  %v2649 = vpack.c.b16 %v2425, %v2409
  %v2650 = vpack.c.b16 %v2426, %v2410
  %v2651 = vpack.c.b16 %v2427, %v2411
  %v2652 = vpack.c.b16 %v2428, %v2412
  %v2653 = vpack.c.b16 %v2445, %v2429
  %v2654 = vpack.c.b16 %v2446, %v2430
  %v2655 = vpack.c.b16 %v2447, %v2431
  %v2656 = vpack.c.b16 %v2448, %v2432
  %v2657 = vpack.c.b16 %v2449, %v2433
  %v2658 = vpack.c.b16 %v2450, %v2434
  %v2659 = vpack.c.b16 %v2451, %v2435
  %v2660 = vpack.c.b16 %v2452, %v2436
  %v2661 = vpack.c.b16 %v2453, %v2437
  %v2662 = vpack.c.b16 %v2454, %v2438
  %v2663 = vpack.c.b16 %v2455, %v2439
  %v2664 = vpack.c.b16 %v2456, %v2440
  %v2665 = vpack.c.b16 %v2457, %v2441
  %v2666 = vpack.c.b16 %v2458, %v2442
  %v2667 = vpack.c.b16 %v2459, %v2443
  %v2668 = vpack.c.b16 %v2460, %v2444
  %v2669 = vpack.c.b16 %v2477, %v2461
  %v2670 = vpack.c.b16 %v2478, %v2462
  %v2671 = vpack.c.b16 %v2479, %v2463
  %v2672 = vpack.c.b16 %v2480, %v2464
  %v2673 = vpack.c.b16 %v2481, %v2465
  %v2674 = vpack.c.b16 %v2482, %v2466
  %v2675 = vpack.c.b16 %v2483, %v2467
  %v2676 = vpack.c.b16 %v2484, %v2468
  %v2677 = vpack.c.b16 %v2485, %v2469
  %v2678 = vpack.c.b16 %v2486, %v2470
  %v2679 = vpack.c.b16 %v2487, %v2471
  %v2680 = vpack.c.b16 %v2488, %v2472
  %v2681 = vpack.c.b16 %v2489, %v2473
  %v2682 = vpack.c.b16 %v2490, %v2474
  %v2683 = vpack.c.b16 %v2491, %v2475
  %v2684 = vpack.c.b16 %v2492, %v2476
  %v2685 = vpack.c.b16 %v2509, %v2493
  %v2686 = vpack.c.b16 %v2510, %v2494
  %v2687 = vpack.c.b16 %v2511, %v2495
  %v2688 = vpack.c.b16 %v2512, %v2496
  %v2689 = vpack.c.b16 %v2513, %v2497
  %v2690 = vpack.c.b16 %v2514, %v2498
  %v2691 = vpack.c.b16 %v2515, %v2499
  %v2692 = vpack.c.b16 %v2516, %v2500
  %v2693 = vpack.c.b16 %v2517, %v2501
  %v2694 = vpack.c.b16 %v2518, %v2502
  %v2695 = vpack.c.b16 %v2519, %v2503
  %v2696 = vpack.c.b16 %v2520, %v2504
  %v2697 = vpack.c.b16 %v2521, %v2505
  %v2698 = vpack.c.b16 %v2522, %v2506
  %v2699 = vpack.c.b16 %v2523, %v2507
  %v2700 = vpack.c.b16 %v2524, %v2508
  %v2701 = vpack.c.b16 %v2541, %v2525
  %v2702 = vpack.c.b16 %v2542, %v2526
  %v2703 = vpack.c.b16 %v2543, %v2527
  %v2704 = vpack.c.b16 %v2544, %v2528
  %v2705 = vpack.c.b16 %v2545, %v2529
  %v2706 = vpack.c.b16 %v2546, %v2530
  %v2707 = vpack.c.b16 %v2547, %v2531
  %v2708 = vpack.c.b16 %v2548, %v2532
  %v2709 = vpack.c.b16 %v2549, %v2533
  %v2710 = vpack.c.b16 %v2550, %v2534
  %v2711 = vpack.c.b16 %v2551, %v2535
  %v2712 = vpack.c.b16 %v2552, %v2536
  %v2713 = vpack.c.b16 %v2553, %v2537
  %v2714 = vpack.c.b16 %v2554, %v2538
  %v2715 = vpack.c.b16 %v2555, %v2539
  %v2716 = vpack.c.b16 %v2556, %v2540
  %v2717 = vpack.c.b16 %v2573, %v2557
  %v2718 = vpack.c.b16 %v2574, %v2558
  %v2719 = vpack.c.b16 %v2575, %v2559
  %v2720 = vpack.c.b16 %v2576, %v2560
  %v2721 = vpack.c.b16 %v2577, %v2561
  %v2722 = vpack.c.b16 %v2578, %v2562
  %v2723 = vpack.c.b16 %v2579, %v2563
  %v2724 = vpack.c.b16 %v2580, %v2564
  %v2725 = vpack.c.b16 %v2581, %v2565
  %v2726 = vpack.c.b16 %v2582, %v2566
  %v2727 = vpack.c.b16 %v2583, %v2567
  %v2728 = vpack.c.b16 %v2584, %v2568
  %v2729 = vpack.c.b16 %v2585, %v2569
  %v2730 = vpack.c.b16 %v2586, %v2570
  %v2731 = vpack.c.b16 %v2587, %v2571
  %v2732 = vpack.c.b16 %v2588, %v2572
  %v2733 = vpack.c.b16 %v2605, %v2589
  %v2734 = vpack.c.b16 %v2606, %v2590
  %v2735 = vpack.c.b16 %v2607, %v2591
  %v2736 = vpack.c.b16 %v2608, %v2592
  %v2737 = vpack.c.b16 %v2609, %v2593
  %v2738 = vpack.c.b16 %v2610, %v2594
  %v2739 = vpack.c.b16 %v2611, %v2595
  %v2740 = vpack.c.b16 %v2612, %v2596
  %v2741 = vpack.c.b16 %v2613, %v2597
  %v2742 = vpack.c.b16 %v2614, %v2598
  %v2743 = vpack.c.b16 %v2615, %v2599
  %v2744 = vpack.c.b16 %v2616, %v2600
  %v2745 = vpack.c.b16 %v2617, %v2601
  %v2746 = vpack.c.b16 %v2618, %v2602
  %v2747 = vpack.c.b16 %v2619, %v2603
  %v2748 = vpack.c.b16 %v2620, %v2604
  %2877 = vmatprep.subr.bf16.mxu0 %v2622
  %2878 = vmatpush1.bf16.msra.mxu0 %v2621
  %2879 = vmatprep.subr.bf16.mxu0 %v2638
  %2880 = vmatpush1.bf16.msra.mxu0 %v2637
  %2881 = vmatprep.subr.bf16.mxu0 %v2654
  %2882 = vmatpush1.bf16.msra.mxu0 %v2653
  %2883 = vmatprep.subr.bf16.mxu0 %v2670
  %2884 = vmatpush1.bf16.msra.mxu0 %v2669
  %2885 = vmatprep.subr.bf16.mxu0 %v2686
  %2886 = vmatpush1.bf16.msra.mxu0 %v2685
  %2887 = vmatprep.subr.bf16.mxu0 %v2702
  %2888 = vmatpush1.bf16.msra.mxu0 %v2701
  %2889 = vmatprep.subr.bf16.mxu0 %v2718
  %2890 = vmatpush1.bf16.msra.mxu0 %v2717
  %2891 = vmatprep.subr.bf16.mxu0 %v2734
  %2892 = vmatpush1.bf16.msra.mxu0 %v2733
  %2893 = vmatprep.subr.bf16.mxu0 0
  %2894 = vmatpush1.bf16.msra.mxu0 0
  %2895 = vmatprep.subr.bf16.mxu0 0
  %2896 = vmatpush1.bf16.msra.mxu0 0
  %2897 = vmatprep.subr.bf16.mxu0 0
  %2898 = vmatpush1.bf16.msra.mxu0 0
  %2899 = vmatprep.subr.bf16.mxu0 0
  %2900 = vmatpush1.bf16.msra.mxu0 0
  %2901 = vmatprep.subr.bf16.mxu0 0
  %2902 = vmatpush1.bf16.msra.mxu0 0
  %2903 = vmatprep.subr.bf16.mxu0 0
  %2904 = vmatpush1.bf16.msra.mxu0 0
  %2905 = vmatprep.subr.bf16.mxu0 0
  %2906 = vmatpush1.bf16.msra.mxu0 0
  %2907 = vmatprep.subr.bf16.mxu0 0
  %2908 = vmatpush1.bf16.msra.mxu0 0
  %2909 = vmatprep.mubr.bf16.mxu0 0
  %2910 = vmatmul.mubr.bf16.gmra.mrb[0].mxu0 %v2024
  %v2911 = vpop.f32.mrb[0].mxu0
  %v2912 = vadd.f32 %v2160, %v2911
  %v2913 = vpop.f32.mrb[0].mxu0
  %v2914 = vadd.f32 %v2164, %v2913
  %v2915 = vpop.f32.mrb[0].mxu0
  %v2916 = vpop.f32.mrb[0].mxu0
  %2917 = vdwg.mxu0
  %2918 = vmatprep.subr.bf16.mxu0 %v2624
  %2919 = vmatpush1.bf16.msra.mxu0 %v2623
  %2920 = vmatprep.subr.bf16.mxu0 %v2640
  %2921 = vmatpush1.bf16.msra.mxu0 %v2639
  %2922 = vmatprep.subr.bf16.mxu0 %v2656
  %2923 = vmatpush1.bf16.msra.mxu0 %v2655
  %2924 = vmatprep.subr.bf16.mxu0 %v2672
  %2925 = vmatpush1.bf16.msra.mxu0 %v2671
  %2926 = vmatprep.subr.bf16.mxu0 %v2688
  %2927 = vmatpush1.bf16.msra.mxu0 %v2687
  %2928 = vmatprep.subr.bf16.mxu0 %v2704
  %2929 = vmatpush1.bf16.msra.mxu0 %v2703
  %2930 = vmatprep.subr.bf16.mxu0 %v2720
  %2931 = vmatpush1.bf16.msra.mxu0 %v2719
  %2932 = vmatprep.subr.bf16.mxu0 %v2736
  %2933 = vmatpush1.bf16.msra.mxu0 %v2735
  %2934 = vmatprep.subr.bf16.mxu0 0
  %2935 = vmatpush1.bf16.msra.mxu0 0
  %2936 = vmatprep.subr.bf16.mxu0 0
  %2937 = vmatpush1.bf16.msra.mxu0 0
  %2938 = vmatprep.subr.bf16.mxu0 0
  %2939 = vmatpush1.bf16.msra.mxu0 0
  %2940 = vmatprep.subr.bf16.mxu0 0
  %2941 = vmatpush1.bf16.msra.mxu0 0
  %2942 = vmatprep.subr.bf16.mxu0 0
  %2943 = vmatpush1.bf16.msra.mxu0 0
  %2944 = vmatprep.subr.bf16.mxu0 0
  %2945 = vmatpush1.bf16.msra.mxu0 0
  %2946 = vmatprep.subr.bf16.mxu0 0
  %2947 = vmatpush1.bf16.msra.mxu0 0
  %2948 = vmatprep.subr.bf16.mxu0 0
  %2949 = vmatpush1.bf16.msra.mxu0 0
  %2950 = vmatprep.mubr.bf16.mxu0 0
  %2951 = vmatmul.mubr.bf16.gmra.mrb[0].mxu0 %v2024
  %v2952 = vpop.f32.mrb[0].mxu0
  %v2953 = vadd.f32 %v2168, %v2952
  %v2954 = vpop.f32.mrb[0].mxu0
  %v2955 = vadd.f32 %v2172, %v2954
  %v2956 = vpop.f32.mrb[0].mxu0
  %v2957 = vpop.f32.mrb[0].mxu0
  %2958 = vdwg.mxu0
  %2959 = vmatprep.subr.bf16.mxu0 %v2626
  %2960 = vmatpush1.bf16.msra.mxu0 %v2625
  %2961 = vmatprep.subr.bf16.mxu0 %v2642
  %2962 = vmatpush1.bf16.msra.mxu0 %v2641
  %2963 = vmatprep.subr.bf16.mxu0 %v2658
  %2964 = vmatpush1.bf16.msra.mxu0 %v2657
  %2965 = vmatprep.subr.bf16.mxu0 %v2674
  %2966 = vmatpush1.bf16.msra.mxu0 %v2673
  %2967 = vmatprep.subr.bf16.mxu0 %v2690
  %2968 = vmatpush1.bf16.msra.mxu0 %v2689
  %2969 = vmatprep.subr.bf16.mxu0 %v2706
  %2970 = vmatpush1.bf16.msra.mxu0 %v2705
  %2971 = vmatprep.subr.bf16.mxu0 %v2722
  %2972 = vmatpush1.bf16.msra.mxu0 %v2721
  %2973 = vmatprep.subr.bf16.mxu0 %v2738
  %2974 = vmatpush1.bf16.msra.mxu0 %v2737
  %2975 = vmatprep.subr.bf16.mxu0 0
  %2976 = vmatpush1.bf16.msra.mxu0 0
  %2977 = vmatprep.subr.bf16.mxu0 0
  %2978 = vmatpush1.bf16.msra.mxu0 0
  %2979 = vmatprep.subr.bf16.mxu0 0
  %2980 = vmatpush1.bf16.msra.mxu0 0
  %2981 = vmatprep.subr.bf16.mxu0 0
  %2982 = vmatpush1.bf16.msra.mxu0 0
  %2983 = vmatprep.subr.bf16.mxu0 0
  %2984 = vmatpush1.bf16.msra.mxu0 0
  %2985 = vmatprep.subr.bf16.mxu0 0
  %2986 = vmatpush1.bf16.msra.mxu0 0
  %2987 = vmatprep.subr.bf16.mxu0 0
  %2988 = vmatpush1.bf16.msra.mxu0 0
  %2989 = vmatprep.subr.bf16.mxu0 0
  %2990 = vmatpush1.bf16.msra.mxu0 0
  %2991 = vmatprep.mubr.bf16.mxu0 0
  %2992 = vmatmul.mubr.bf16.gmra.mrb[0].mxu0 %v2024
  %v2993 = vpop.f32.mrb[0].mxu0
  %v2994 = vadd.f32 %v2176, %v2993
  %v2995 = vpop.f32.mrb[0].mxu0
  %v2996 = vadd.f32 %v2180, %v2995
  %v2997 = vpop.f32.mrb[0].mxu0
  %v2998 = vpop.f32.mrb[0].mxu0
  %2999 = vdwg.mxu0
  %3000 = vmatprep.subr.bf16.mxu0 %v2628
  %3001 = vmatpush1.bf16.msra.mxu0 %v2627
  %3002 = vmatprep.subr.bf16.mxu0 %v2644
  %3003 = vmatpush1.bf16.msra.mxu0 %v2643
  %3004 = vmatprep.subr.bf16.mxu0 %v2660
  %3005 = vmatpush1.bf16.msra.mxu0 %v2659
  %3006 = vmatprep.subr.bf16.mxu0 %v2676
  %3007 = vmatpush1.bf16.msra.mxu0 %v2675
  %3008 = vmatprep.subr.bf16.mxu0 %v2692
  %3009 = vmatpush1.bf16.msra.mxu0 %v2691
  %3010 = vmatprep.subr.bf16.mxu0 %v2708
  %3011 = vmatpush1.bf16.msra.mxu0 %v2707
  %3012 = vmatprep.subr.bf16.mxu0 %v2724
  %3013 = vmatpush1.bf16.msra.mxu0 %v2723
  %3014 = vmatprep.subr.bf16.mxu0 %v2740
  %3015 = vmatpush1.bf16.msra.mxu0 %v2739
  %3016 = vmatprep.subr.bf16.mxu0 0
  %3017 = vmatpush1.bf16.msra.mxu0 0
  %3018 = vmatprep.subr.bf16.mxu0 0
  %3019 = vmatpush1.bf16.msra.mxu0 0
  %3020 = vmatprep.subr.bf16.mxu0 0
  %3021 = vmatpush1.bf16.msra.mxu0 0
  %3022 = vmatprep.subr.bf16.mxu0 0
  %3023 = vmatpush1.bf16.msra.mxu0 0
  %3024 = vmatprep.subr.bf16.mxu0 0
  %3025 = vmatpush1.bf16.msra.mxu0 0
  %3026 = vmatprep.subr.bf16.mxu0 0
  %3027 = vmatpush1.bf16.msra.mxu0 0
  %3028 = vmatprep.subr.bf16.mxu0 0
  %3029 = vmatpush1.bf16.msra.mxu0 0
  %3030 = vmatprep.subr.bf16.mxu0 0
  %3031 = vmatpush1.bf16.msra.mxu0 0
  %3032 = vmatprep.mubr.bf16.mxu0 0
  %3033 = vmatmul.mubr.bf16.gmra.mrb[0].mxu0 %v2024
  %v3034 = vpop.f32.mrb[0].mxu0
  %v3035 = vadd.f32 %v2184, %v3034
  %v3036 = vpop.f32.mrb[0].mxu0
  %v3037 = vadd.f32 %v2188, %v3036
  %v3038 = vpop.f32.mrb[0].mxu0
  %v3039 = vpop.f32.mrb[0].mxu0
  %3040 = vdwg.mxu0
  %3041 = vmatprep.subr.bf16.mxu0 %v2630
  %3042 = vmatpush1.bf16.msra.mxu0 %v2629
  %3043 = vmatprep.subr.bf16.mxu0 %v2646
  %3044 = vmatpush1.bf16.msra.mxu0 %v2645
  %3045 = vmatprep.subr.bf16.mxu0 %v2662
  %3046 = vmatpush1.bf16.msra.mxu0 %v2661
  %3047 = vmatprep.subr.bf16.mxu0 %v2678
  %3048 = vmatpush1.bf16.msra.mxu0 %v2677
  %3049 = vmatprep.subr.bf16.mxu0 %v2694
  %3050 = vmatpush1.bf16.msra.mxu0 %v2693
  %3051 = vmatprep.subr.bf16.mxu0 %v2710
  %3052 = vmatpush1.bf16.msra.mxu0 %v2709
  %3053 = vmatprep.subr.bf16.mxu0 %v2726
  %3054 = vmatpush1.bf16.msra.mxu0 %v2725
  %3055 = vmatprep.subr.bf16.mxu0 %v2742
  %3056 = vmatpush1.bf16.msra.mxu0 %v2741
  %3057 = vmatprep.subr.bf16.mxu0 0
  %3058 = vmatpush1.bf16.msra.mxu0 0
  %3059 = vmatprep.subr.bf16.mxu0 0
  %3060 = vmatpush1.bf16.msra.mxu0 0
  %3061 = vmatprep.subr.bf16.mxu0 0
  %3062 = vmatpush1.bf16.msra.mxu0 0
  %3063 = vmatprep.subr.bf16.mxu0 0
  %3064 = vmatpush1.bf16.msra.mxu0 0
  %3065 = vmatprep.subr.bf16.mxu0 0
  %3066 = vmatpush1.bf16.msra.mxu0 0
  %3067 = vmatprep.subr.bf16.mxu0 0
  %3068 = vmatpush1.bf16.msra.mxu0 0
  %3069 = vmatprep.subr.bf16.mxu0 0
  %3070 = vmatpush1.bf16.msra.mxu0 0
  %3071 = vmatprep.subr.bf16.mxu0 0
  %3072 = vmatpush1.bf16.msra.mxu0 0
  %3073 = vmatprep.mubr.bf16.mxu0 0
  %3074 = vmatmul.mubr.bf16.gmra.mrb[0].mxu0 %v2024
  %v3075 = vpop.f32.mrb[0].mxu0
  %v3076 = vadd.f32 %v2192, %v3075
  %v3077 = vpop.f32.mrb[0].mxu0
  %v3078 = vadd.f32 %v2196, %v3077
  %v3079 = vpop.f32.mrb[0].mxu0
  %v3080 = vpop.f32.mrb[0].mxu0
  %3081 = vdwg.mxu0
  %3082 = vmatprep.subr.bf16.mxu0 %v2632
  %3083 = vmatpush1.bf16.msra.mxu0 %v2631
  %3084 = vmatprep.subr.bf16.mxu0 %v2648
  %3085 = vmatpush1.bf16.msra.mxu0 %v2647
  %3086 = vmatprep.subr.bf16.mxu0 %v2664
  %3087 = vmatpush1.bf16.msra.mxu0 %v2663
  %3088 = vmatprep.subr.bf16.mxu0 %v2680
  %3089 = vmatpush1.bf16.msra.mxu0 %v2679
  %3090 = vmatprep.subr.bf16.mxu0 %v2696
  %3091 = vmatpush1.bf16.msra.mxu0 %v2695
  %3092 = vmatprep.subr.bf16.mxu0 %v2712
  %3093 = vmatpush1.bf16.msra.mxu0 %v2711
  %3094 = vmatprep.subr.bf16.mxu0 %v2728
  %3095 = vmatpush1.bf16.msra.mxu0 %v2727
  %3096 = vmatprep.subr.bf16.mxu0 %v2744
  %3097 = vmatpush1.bf16.msra.mxu0 %v2743
  %3098 = vmatprep.subr.bf16.mxu0 0
  %3099 = vmatpush1.bf16.msra.mxu0 0
  %3100 = vmatprep.subr.bf16.mxu0 0
  %3101 = vmatpush1.bf16.msra.mxu0 0
  %3102 = vmatprep.subr.bf16.mxu0 0
  %3103 = vmatpush1.bf16.msra.mxu0 0
  %3104 = vmatprep.subr.bf16.mxu0 0
  %3105 = vmatpush1.bf16.msra.mxu0 0
  %3106 = vmatprep.subr.bf16.mxu0 0
  %3107 = vmatpush1.bf16.msra.mxu0 0
  %3108 = vmatprep.subr.bf16.mxu0 0
  %3109 = vmatpush1.bf16.msra.mxu0 0
  %3110 = vmatprep.subr.bf16.mxu0 0
  %3111 = vmatpush1.bf16.msra.mxu0 0
  %3112 = vmatprep.subr.bf16.mxu0 0
  %3113 = vmatpush1.bf16.msra.mxu0 0
  %3114 = vmatprep.mubr.bf16.mxu0 0
  %3115 = vmatmul.mubr.bf16.gmra.mrb[0].mxu0 %v2024
  %v3116 = vpop.f32.mrb[0].mxu0
  %v3117 = vadd.f32 %v2200, %v3116
  %v3118 = vpop.f32.mrb[0].mxu0
  %v3119 = vadd.f32 %v2204, %v3118
  %v3120 = vpop.f32.mrb[0].mxu0
  %v3121 = vpop.f32.mrb[0].mxu0
  %3122 = vdwg.mxu0
  %3123 = vmatprep.subr.bf16.mxu0 %v2634
  %3124 = vmatpush1.bf16.msra.mxu0 %v2633
  %3125 = vmatprep.subr.bf16.mxu0 %v2650
  %3126 = vmatpush1.bf16.msra.mxu0 %v2649
  %3127 = vmatprep.subr.bf16.mxu0 %v2666
  %3128 = vmatpush1.bf16.msra.mxu0 %v2665
  %3129 = vmatprep.subr.bf16.mxu0 %v2682
  %3130 = vmatpush1.bf16.msra.mxu0 %v2681
  %3131 = vmatprep.subr.bf16.mxu0 %v2698
  %3132 = vmatpush1.bf16.msra.mxu0 %v2697
  %3133 = vmatprep.subr.bf16.mxu0 %v2714
  %3134 = vmatpush1.bf16.msra.mxu0 %v2713
  %3135 = vmatprep.subr.bf16.mxu0 %v2730
  %3136 = vmatpush1.bf16.msra.mxu0 %v2729
  %3137 = vmatprep.subr.bf16.mxu0 %v2746
  %3138 = vmatpush1.bf16.msra.mxu0 %v2745
  %3139 = vmatprep.subr.bf16.mxu0 0
  %3140 = vmatpush1.bf16.msra.mxu0 0
  %3141 = vmatprep.subr.bf16.mxu0 0
  %3142 = vmatpush1.bf16.msra.mxu0 0
  %3143 = vmatprep.subr.bf16.mxu0 0
  %3144 = vmatpush1.bf16.msra.mxu0 0
  %3145 = vmatprep.subr.bf16.mxu0 0
  %3146 = vmatpush1.bf16.msra.mxu0 0
  %3147 = vmatprep.subr.bf16.mxu0 0
  %3148 = vmatpush1.bf16.msra.mxu0 0
  %3149 = vmatprep.subr.bf16.mxu0 0
  %3150 = vmatpush1.bf16.msra.mxu0 0
  %3151 = vmatprep.subr.bf16.mxu0 0
  %3152 = vmatpush1.bf16.msra.mxu0 0
  %3153 = vmatprep.subr.bf16.mxu0 0
  %3154 = vmatpush1.bf16.msra.mxu0 0
  %3155 = vmatprep.mubr.bf16.mxu0 0
  %3156 = vmatmul.mubr.bf16.gmra.mrb[0].mxu0 %v2024
  %v3157 = vpop.f32.mrb[0].mxu0
  %v3158 = vadd.f32 %v2208, %v3157
  %v3159 = vpop.f32.mrb[0].mxu0
  %v3160 = vadd.f32 %v2212, %v3159
  %v3161 = vpop.f32.mrb[0].mxu0
  %v3162 = vpop.f32.mrb[0].mxu0
  %3163 = vdwg.mxu0
  %3164 = vmatprep.subr.bf16.mxu0 %v2636
  %3165 = vmatpush1.bf16.msra.mxu0 %v2635
  %3166 = vmatprep.subr.bf16.mxu0 %v2652
  %3167 = vmatpush1.bf16.msra.mxu0 %v2651
  %3168 = vmatprep.subr.bf16.mxu0 %v2668
  %3169 = vmatpush1.bf16.msra.mxu0 %v2667
  %3170 = vmatprep.subr.bf16.mxu0 %v2684
  %3171 = vmatpush1.bf16.msra.mxu0 %v2683
  %3172 = vmatprep.subr.bf16.mxu0 %v2700
  %3173 = vmatpush1.bf16.msra.mxu0 %v2699
  %3174 = vmatprep.subr.bf16.mxu0 %v2716
  %3175 = vmatpush1.bf16.msra.mxu0 %v2715
  %3176 = vmatprep.subr.bf16.mxu0 %v2732
  %3177 = vmatpush1.bf16.msra.mxu0 %v2731
  %3178 = vmatprep.subr.bf16.mxu0 %v2748
  %3179 = vmatpush1.bf16.msra.mxu0 %v2747
  %3180 = vmatprep.subr.bf16.mxu0 0
  %3181 = vmatpush1.bf16.msra.mxu0 0
  %3182 = vmatprep.subr.bf16.mxu0 0
  %3183 = vmatpush1.bf16.msra.mxu0 0
  %3184 = vmatprep.subr.bf16.mxu0 0
  %3185 = vmatpush1.bf16.msra.mxu0 0
  %3186 = vmatprep.subr.bf16.mxu0 0
  %3187 = vmatpush1.bf16.msra.mxu0 0
  %3188 = vmatprep.subr.bf16.mxu0 0
  %3189 = vmatpush1.bf16.msra.mxu0 0
  %3190 = vmatprep.subr.bf16.mxu0 0
  %3191 = vmatpush1.bf16.msra.mxu0 0
  %3192 = vmatprep.subr.bf16.mxu0 0
  %3193 = vmatpush1.bf16.msra.mxu0 0
  %3194 = vmatprep.subr.bf16.mxu0 0
  %3195 = vmatpush1.bf16.msra.mxu0 0
  %3196 = vmatprep.mubr.bf16.mxu0 0
  %3197 = vmatmul.mubr.bf16.gmra.mrb[0].mxu0 %v2024
  %v3198 = vpop.f32.mrb[0].mxu0
  %v3199 = vadd.f32 %v2216, %v3198
  %v3200 = vpop.f32.mrb[0].mxu0
  %v3201 = vadd.f32 %v2220, %v3200
  %v3202 = vpop.f32.mrb[0].mxu0
  %v3203 = vpop.f32.mrb[0].mxu0
  %3204 = vdwg.mxu0
  %v3205 = vpack.c.bf16 %v2912, %v2912
  %v3206 = vpack.c.bf16 %v2914, %v2914
  %v3207 = vpack.c.bf16 %v2953, %v2953
  %v3208 = vpack.c.bf16 %v2955, %v2955
  %v3209 = vpack.c.bf16 %v2994, %v2994
  %v3210 = vpack.c.bf16 %v2996, %v2996
  %v3211 = vpack.c.bf16 %v3035, %v3035
  %v3212 = vpack.c.bf16 %v3037, %v3037
  %v3213 = vpack.c.bf16 %v3076, %v3076
  %v3214 = vpack.c.bf16 %v3078, %v3078
  %v3215 = vpack.c.bf16 %v3117, %v3117
  %v3216 = vpack.c.bf16 %v3119, %v3119
  %v3217 = vpack.c.bf16 %v3158, %v3158
  %v3218 = vpack.c.bf16 %v3160, %v3160
  %v3219 = vpack.c.bf16 %v3199, %v3199
  %v3220 = vpack.c.bf16 %v3201, %v3201
  %v3237 = vcombine.low %v3205, %v3206
  %v3238 = vcombine.low %v3207, %v3208
  %v3239 = vcombine.low %v3209, %v3210
  %v3240 = vcombine.low %v3211, %v3212
  %v3242 = vunpack.c.l.s4 1966171168
  %v3243 = vunpack.c.0.s8 %v3242
  %v3244 = vlaneseq
  %v3245 = vshrl.u32 %v3244, 7
  %v3246 = vsub.s32 %v3243, %v3245
  %v3247 = vrot.slane %v3237, %v3246
  %v3249 = vunpack.c.l.s4 1966171168
  %v3250 = vunpack.c.0.s8 %v3249
  %v3251 = vlaneseq
  %v3252 = vshrl.u32 %v3251, 7
  %v3253 = vsub.s32 %v3250, %v3252
  %v3254 = vrot.slane %v3238, %v3253
  %v3256 = vunpack.c.l.s4 1966171168
  %v3257 = vunpack.c.0.s8 %v3256
  %v3258 = vlaneseq
  %v3259 = vshrl.u32 %v3258, 7
  %v3260 = vsub.s32 %v3257, %v3259
  %v3261 = vrot.slane %v3239, %v3260
  %v3263 = vunpack.c.l.s4 1966171168
  %v3264 = vunpack.c.0.s8 %v3263
  %v3265 = vlaneseq
  %v3266 = vshrl.u32 %v3265, 7
  %v3267 = vsub.s32 %v3264, %v3266
  %v3268 = vrot.slane %v3240, %v3267
  %v3269 = vcombine.low %v3247, %v3254
  %v3270 = vcombine.low %v3261, %v3268
  %v3272 = vunpack.c.l.s4 1966171168
  %v3273 = vunpack.c.0.s8 %v3272
  %v3274 = vlaneseq
  %v3275 = vshrl.u32 %v3274, 7
  %v3276 = vsub.s32 %v3273, %v3275
  %v3277 = vrot.slane %v3269, %v3276
  %v3279 = vunpack.c.l.s4 1966171168
  %v3280 = vunpack.c.0.s8 %v3279
  %v3281 = vlaneseq
  %v3282 = vshrl.u32 %v3281, 7
  %v3283 = vsub.s32 %v3280, %v3282
  %v3284 = vrot.slane %v3270, %v3283
  %v3285 = vcombine.low %v3277, %v3284
  %v3286 = vcombine.low %v3213, %v3214
  %v3287 = vcombine.low %v3215, %v3216
  %v3288 = vcombine.low %v3217, %v3218
  %v3289 = vcombine.low %v3219, %v3220
  %v3291 = vunpack.c.l.s4 1966171168
  %v3292 = vunpack.c.0.s8 %v3291
  %v3293 = vlaneseq
  %v3294 = vshrl.u32 %v3293, 7
  %v3295 = vsub.s32 %v3292, %v3294
  %v3296 = vrot.slane %v3286, %v3295
  %v3298 = vunpack.c.l.s4 1966171168
  %v3299 = vunpack.c.0.s8 %v3298
  %v3300 = vlaneseq
  %v3301 = vshrl.u32 %v3300, 7
  %v3302 = vsub.s32 %v3299, %v3301
  %v3303 = vrot.slane %v3287, %v3302
  %v3305 = vunpack.c.l.s4 1966171168
  %v3306 = vunpack.c.0.s8 %v3305
  %v3307 = vlaneseq
  %v3308 = vshrl.u32 %v3307, 7
  %v3309 = vsub.s32 %v3306, %v3308
  %v3310 = vrot.slane %v3288, %v3309
  %v3312 = vunpack.c.l.s4 1966171168
  %v3313 = vunpack.c.0.s8 %v3312
  %v3314 = vlaneseq
  %v3315 = vshrl.u32 %v3314, 7
  %v3316 = vsub.s32 %v3313, %v3315
  %v3317 = vrot.slane %v3289, %v3316
  %v3318 = vcombine.low %v3296, %v3303
  %v3319 = vcombine.low %v3310, %v3317
  %v3321 = vunpack.c.l.s4 1966171168
  %v3322 = vunpack.c.0.s8 %v3321
  %v3323 = vlaneseq
  %v3324 = vshrl.u32 %v3323, 7
  %v3325 = vsub.s32 %v3322, %v3324
  %v3326 = vrot.slane %v3318, %v3325
  %v3328 = vunpack.c.l.s4 1966171168
  %v3329 = vunpack.c.0.s8 %v3328
  %v3330 = vlaneseq
  %v3331 = vshrl.u32 %v3330, 7
  %v3332 = vsub.s32 %v3329, %v3331
  %v3333 = vrot.slane %v3319, %v3332
  %v3334 = vcombine.low %v3326, %v3333
  %3337 = vst [vmem:[%s6] sm:$0xff] %v3285
  %3338 = vst [vmem:[%s6 + $0x8] sm:$0xff] %v3334
  // Predicated region
  $region26: #{vae_forward.7} parent=0 // pred_check
    _
  $region27: #{vae_forward.7} parent=0 // pred_check_branch
    %3340 = sbr.rel (0) target = $region29
  $region28: #{vae_forward.7} parent=0 // pred_region
    _
  $region29: #{vae_forward.7} parent=0 // pred_fallthru
    _
  // Predicated region
  $region30: #{vae_forward.7} parent=0 // pred_check
    _
  $region31: #{vae_forward.7} parent=0 // pred_check_branch
    %3342 = sbr.rel (0) target = $region33
  $region32: #{vae_forward.7} parent=0 // pred_region
    _
  $region33: #{vae_forward.7} parent=0 // pred_fallthru
    _

// kernel: vae_forward.9
$region0: #{vae_forward.9}
  #allocation0 [shape = 'u32[]', space=smem, size = 0x4, offset = 0x4, fixed_abs, tag = 'smem constant byte address 0x4 - core index']
  #allocation1 [shape = 'u32[144,128]{1,0:T(1,128)}', space=vmem, size = 0x12000, scoped, tag = 'internal scratch']
  %s0 = inlined_call_operand.vmem [shape: bf16[128,512], index: 0, kind: input, shape index: {}]
  %s1 = inlined_call_operand.vmem [shape: bf16[512,512], index: 1, kind: input, shape index: {}]
  %s2 = inlined_call_operand.vmem [shape: f32[1,512], index: 2, kind: input, shape index: {}]
  %s3 = inlined_call_operand.vmem [shape: f32[128,512], index: 3, kind: output, shape index: {}]
  %s4 = sld [smem:[#allocation0]]
  $region22: #{vae_forward.9} parent=0
    _
  %s6 = ssub.s32 1, %s4
  %s7 = scalar_select 0, %s6, %s4
  // Predicated region
  $region2: #{vae_forward.9} parent=0 // pred_check
    _
  $region3: #{vae_forward.9} parent=0 // pred_check_branch
    %9 = sbr.rel (0) target = $region5
  $region4: #{vae_forward.9} parent=0 // pred_region
    _
  $region5: #{vae_forward.9} parent=0 // pred_fallthru
    _
  // Predicated region
  $region6: #{vae_forward.9} parent=0 // pred_check
    _
  $region7: #{vae_forward.9} parent=0 // pred_check_branch
    %11 = sbr.rel (0) target = $region9
  $region8: #{vae_forward.9} parent=0 // pred_region
    _
  $region9: #{vae_forward.9} parent=0 // pred_fallthru
    _
  // Predicated region
  $region10: #{vae_forward.9} parent=0 // pred_check
    _
  $region11: #{vae_forward.9} parent=0 // pred_check_branch
    %13 = sbr.rel (0) target = $region13
  $region12: #{vae_forward.9} parent=0 // pred_region
    _
  $region13: #{vae_forward.9} parent=0 // pred_fallthru
    _
  %v14 = vld [vmem:[%s0] sm:$0xff]
  %v15 = vld [vmem:[%s0 + $0x8] sm:$0xff]
  %v16 = vld [vmem:[%s0 + $0x10] sm:$0xff]
  %v17 = vld [vmem:[%s0 + $0x18] sm:$0xff]
  %v18 = vld [vmem:[%s0 + $0x20] sm:$0xff]
  %v19 = vld [vmem:[%s0 + $0x28] sm:$0xff]
  %v20 = vld [vmem:[%s0 + $0x30] sm:$0xff]
  %v21 = vld [vmem:[%s0 + $0x38] sm:$0xff]
  %v22 = vld [vmem:[%s0 + $0x40] sm:$0xff]
  %v23 = vld [vmem:[%s0 + $0x48] sm:$0xff]
  %v24 = vld [vmem:[%s0 + $0x50] sm:$0xff]
  %v25 = vld [vmem:[%s0 + $0x58] sm:$0xff]
  %v26 = vld [vmem:[%s0 + $0x60] sm:$0xff]
  %v27 = vld [vmem:[%s0 + $0x68] sm:$0xff]
  %v28 = vld [vmem:[%s0 + $0x70] sm:$0xff]
  %v29 = vld [vmem:[%s0 + $0x78] sm:$0xff]
  %v30 = vld [vmem:[%s0 + $0x80] sm:$0xff]
  %v31 = vld [vmem:[%s0 + $0x88] sm:$0xff]
  %v32 = vld [vmem:[%s0 + $0x90] sm:$0xff]
  %v33 = vld [vmem:[%s0 + $0x98] sm:$0xff]
  %v34 = vld [vmem:[%s0 + $0xa0] sm:$0xff]
  %v35 = vld [vmem:[%s0 + $0xa8] sm:$0xff]
  %v36 = vld [vmem:[%s0 + $0xb0] sm:$0xff]
  %v37 = vld [vmem:[%s0 + $0xb8] sm:$0xff]
  %v38 = vld [vmem:[%s0 + $0xc0] sm:$0xff]
  %v39 = vld [vmem:[%s0 + $0xc8] sm:$0xff]
  %v40 = vld [vmem:[%s0 + $0xd0] sm:$0xff]
  %v41 = vld [vmem:[%s0 + $0xd8] sm:$0xff]
  %v42 = vld [vmem:[%s0 + $0xe0] sm:$0xff]
  %v43 = vld [vmem:[%s0 + $0xe8] sm:$0xff]
  %v44 = vld [vmem:[%s0 + $0xf0] sm:$0xff]
  %v45 = vld [vmem:[%s0 + $0xf8] sm:$0xff]
  %v46 = vld [vmem:[%s1] sm:$0xff]
  %v47 = vld [vmem:[%s1 + $0x8] sm:$0xff]
  %v48 = vld [vmem:[%s1 + $0x10] sm:$0xff]
  %v49 = vld [vmem:[%s1 + $0x18] sm:$0xff]
  %v50 = vld [vmem:[%s1 + $0x20] sm:$0xff]
  %v51 = vld [vmem:[%s1 + $0x28] sm:$0xff]
  %v52 = vld [vmem:[%s1 + $0x30] sm:$0xff]
  %v53 = vld [vmem:[%s1 + $0x38] sm:$0xff]
  %v54 = vld [vmem:[%s1 + $0x40] sm:$0xff]
  %v55 = vld [vmem:[%s1 + $0x48] sm:$0xff]
  %v56 = vld [vmem:[%s1 + $0x50] sm:$0xff]
  %v57 = vld [vmem:[%s1 + $0x58] sm:$0xff]
  %v58 = vld [vmem:[%s1 + $0x60] sm:$0xff]
  %v59 = vld [vmem:[%s1 + $0x68] sm:$0xff]
  %v60 = vld [vmem:[%s1 + $0x70] sm:$0xff]
  %v61 = vld [vmem:[%s1 + $0x78] sm:$0xff]
  %v62 = vld [vmem:[%s1 + $0x80] sm:$0xff]
  %v63 = vld [vmem:[%s1 + $0x88] sm:$0xff]
  %v64 = vld [vmem:[%s1 + $0x90] sm:$0xff]
  %v65 = vld [vmem:[%s1 + $0x98] sm:$0xff]
  %v66 = vld [vmem:[%s1 + $0xa0] sm:$0xff]
  %v67 = vld [vmem:[%s1 + $0xa8] sm:$0xff]
  %v68 = vld [vmem:[%s1 + $0xb0] sm:$0xff]
  %v69 = vld [vmem:[%s1 + $0xb8] sm:$0xff]
  %v70 = vld [vmem:[%s1 + $0xc0] sm:$0xff]
  %v71 = vld [vmem:[%s1 + $0xc8] sm:$0xff]
  %v72 = vld [vmem:[%s1 + $0xd0] sm:$0xff]
  %v73 = vld [vmem:[%s1 + $0xd8] sm:$0xff]
  %v74 = vld [vmem:[%s1 + $0xe0] sm:$0xff]
  %v75 = vld [vmem:[%s1 + $0xe8] sm:$0xff]
  %v76 = vld [vmem:[%s1 + $0xf0] sm:$0xff]
  %v77 = vld [vmem:[%s1 + $0xf8] sm:$0xff]
  %v78 = vld [vmem:[%s1 + $0x100] sm:$0xff]
  %v79 = vld [vmem:[%s1 + $0x108] sm:$0xff]
  %v80 = vld [vmem:[%s1 + $0x110] sm:$0xff]
  %v81 = vld [vmem:[%s1 + $0x118] sm:$0xff]
  %v82 = vld [vmem:[%s1 + $0x120] sm:$0xff]
  %v83 = vld [vmem:[%s1 + $0x128] sm:$0xff]
  %v84 = vld [vmem:[%s1 + $0x130] sm:$0xff]
  %v85 = vld [vmem:[%s1 + $0x138] sm:$0xff]
  %v86 = vld [vmem:[%s1 + $0x140] sm:$0xff]
  %v87 = vld [vmem:[%s1 + $0x148] sm:$0xff]
  %v88 = vld [vmem:[%s1 + $0x150] sm:$0xff]
  %v89 = vld [vmem:[%s1 + $0x158] sm:$0xff]
  %v90 = vld [vmem:[%s1 + $0x160] sm:$0xff]
  %v91 = vld [vmem:[%s1 + $0x168] sm:$0xff]
  %v92 = vld [vmem:[%s1 + $0x170] sm:$0xff]
  %v93 = vld [vmem:[%s1 + $0x178] sm:$0xff]
  %v94 = vld [vmem:[%s1 + $0x180] sm:$0xff]
  %v95 = vld [vmem:[%s1 + $0x188] sm:$0xff]
  %v96 = vld [vmem:[%s1 + $0x190] sm:$0xff]
  %v97 = vld [vmem:[%s1 + $0x198] sm:$0xff]
  %v98 = vld [vmem:[%s1 + $0x1a0] sm:$0xff]
  %v99 = vld [vmem:[%s1 + $0x1a8] sm:$0xff]
  %v100 = vld [vmem:[%s1 + $0x1b0] sm:$0xff]
  %v101 = vld [vmem:[%s1 + $0x1b8] sm:$0xff]
  %v102 = vld [vmem:[%s1 + $0x1c0] sm:$0xff]
  %v103 = vld [vmem:[%s1 + $0x1c8] sm:$0xff]
  %v104 = vld [vmem:[%s1 + $0x1d0] sm:$0xff]
  %v105 = vld [vmem:[%s1 + $0x1d8] sm:$0xff]
  %v106 = vld [vmem:[%s1 + $0x1e0] sm:$0xff]
  %v107 = vld [vmem:[%s1 + $0x1e8] sm:$0xff]
  %v108 = vld [vmem:[%s1 + $0x1f0] sm:$0xff]
  %v109 = vld [vmem:[%s1 + $0x1f8] sm:$0xff]
  %v110 = vld [vmem:[%s1 + $0x200] sm:$0xff]
  %v111 = vld [vmem:[%s1 + $0x208] sm:$0xff]
  %v112 = vld [vmem:[%s1 + $0x210] sm:$0xff]
  %v113 = vld [vmem:[%s1 + $0x218] sm:$0xff]
  %v114 = vld [vmem:[%s1 + $0x220] sm:$0xff]
  %v115 = vld [vmem:[%s1 + $0x228] sm:$0xff]
  %v116 = vld [vmem:[%s1 + $0x230] sm:$0xff]
  %v117 = vld [vmem:[%s1 + $0x238] sm:$0xff]
  %v118 = vld [vmem:[%s1 + $0x240] sm:$0xff]
  %v119 = vld [vmem:[%s1 + $0x248] sm:$0xff]
  %v120 = vld [vmem:[%s1 + $0x250] sm:$0xff]
  %v121 = vld [vmem:[%s1 + $0x258] sm:$0xff]
  %v122 = vld [vmem:[%s1 + $0x260] sm:$0xff]
  %v123 = vld [vmem:[%s1 + $0x268] sm:$0xff]
  %v124 = vld [vmem:[%s1 + $0x270] sm:$0xff]
  %v125 = vld [vmem:[%s1 + $0x278] sm:$0xff]
  %v126 = vld [vmem:[%s1 + $0x280] sm:$0xff]
  %v127 = vld [vmem:[%s1 + $0x288] sm:$0xff]
  %v128 = vld [vmem:[%s1 + $0x290] sm:$0xff]
  %v129 = vld [vmem:[%s1 + $0x298] sm:$0xff]
  %v130 = vld [vmem:[%s1 + $0x2a0] sm:$0xff]
  %v131 = vld [vmem:[%s1 + $0x2a8] sm:$0xff]
  %v132 = vld [vmem:[%s1 + $0x2b0] sm:$0xff]
  %v133 = vld [vmem:[%s1 + $0x2b8] sm:$0xff]
  %v134 = vld [vmem:[%s1 + $0x2c0] sm:$0xff]
  %v135 = vld [vmem:[%s1 + $0x2c8] sm:$0xff]
  %v136 = vld [vmem:[%s1 + $0x2d0] sm:$0xff]
  %v137 = vld [vmem:[%s1 + $0x2d8] sm:$0xff]
  %v138 = vld [vmem:[%s1 + $0x2e0] sm:$0xff]
  %v139 = vld [vmem:[%s1 + $0x2e8] sm:$0xff]
  %v140 = vld [vmem:[%s1 + $0x2f0] sm:$0xff]
  %v141 = vld [vmem:[%s1 + $0x2f8] sm:$0xff]
  %v142 = vld [vmem:[%s1 + $0x300] sm:$0xff]
  %v143 = vld [vmem:[%s1 + $0x308] sm:$0xff]
  %v144 = vld [vmem:[%s1 + $0x310] sm:$0xff]
  %v145 = vld [vmem:[%s1 + $0x318] sm:$0xff]
  %v146 = vld [vmem:[%s1 + $0x320] sm:$0xff]
  %v147 = vld [vmem:[%s1 + $0x328] sm:$0xff]
  %v148 = vld [vmem:[%s1 + $0x330] sm:$0xff]
  %v149 = vld [vmem:[%s1 + $0x338] sm:$0xff]
  %v150 = vld [vmem:[%s1 + $0x340] sm:$0xff]
  %v151 = vld [vmem:[%s1 + $0x348] sm:$0xff]
  %v152 = vld [vmem:[%s1 + $0x350] sm:$0xff]
  %v153 = vld [vmem:[%s1 + $0x358] sm:$0xff]
  %v154 = vld [vmem:[%s1 + $0x360] sm:$0xff]
  %v155 = vld [vmem:[%s1 + $0x368] sm:$0xff]
  %v156 = vld [vmem:[%s1 + $0x370] sm:$0xff]
  %v157 = vld [vmem:[%s1 + $0x378] sm:$0xff]
  %v158 = vld [vmem:[%s1 + $0x380] sm:$0xff]
  %v159 = vld [vmem:[%s1 + $0x388] sm:$0xff]
  %v160 = vld [vmem:[%s1 + $0x390] sm:$0xff]
  %v161 = vld [vmem:[%s1 + $0x398] sm:$0xff]
  %v162 = vld [vmem:[%s1 + $0x3a0] sm:$0xff]
  %v163 = vld [vmem:[%s1 + $0x3a8] sm:$0xff]
  %v164 = vld [vmem:[%s1 + $0x3b0] sm:$0xff]
  %v165 = vld [vmem:[%s1 + $0x3b8] sm:$0xff]
  %v166 = vld [vmem:[%s1 + $0x3c0] sm:$0xff]
  %v167 = vld [vmem:[%s1 + $0x3c8] sm:$0xff]
  %v168 = vld [vmem:[%s1 + $0x3d0] sm:$0xff]
  %v169 = vld [vmem:[%s1 + $0x3d8] sm:$0xff]
  %v170 = vld [vmem:[%s1 + $0x3e0] sm:$0xff]
  %v171 = vld [vmem:[%s1 + $0x3e8] sm:$0xff]
  %v172 = vld [vmem:[%s1 + $0x3f0] sm:$0xff]
  %v173 = vld [vmem:[%s1 + $0x3f8] sm:$0xff]
  %v174 = vld [vmem:[%s2] sm:$0xf]
  %v176 = vlaneseq
  %v177 = vshrl.u32 %v176, 7
  %v178 = vsub.s32 0, %v177
  %v179 = vrot.slane %v174, %v178
  %v180 = vlaneseq
  %v181 = vshrl.u32 %v180, 7
  %v182 = vsub.s32 1, %v181
  %v183 = vrot.slane %v174, %v182
  %v184 = vlaneseq
  %v185 = vshrl.u32 %v184, 7
  %v186 = vsub.s32 2, %v185
  %v187 = vrot.slane %v174, %v186
  %v188 = vlaneseq
  %v189 = vshrl.u32 %v188, 7
  %v190 = vsub.s32 3, %v189
  %v191 = vrot.slane %v174, %v190
  %v228 = vunpack.c.l.b16 %v14
  %v229 = vunpack.c.h.b16 %v14
  %v230 = vunpack.c.l.b16 %v15
  %v231 = vunpack.c.h.b16 %v15
  %v232 = vunpack.c.l.b16 %v16
  %v233 = vunpack.c.h.b16 %v16
  %v234 = vunpack.c.l.b16 %v17
  %v235 = vunpack.c.h.b16 %v17
  %v236 = vunpack.c.l.b16 %v18
  %v237 = vunpack.c.h.b16 %v18
  %v238 = vunpack.c.l.b16 %v19
  %v239 = vunpack.c.h.b16 %v19
  %v240 = vunpack.c.l.b16 %v20
  %v241 = vunpack.c.h.b16 %v20
  %v242 = vunpack.c.l.b16 %v21
  %v243 = vunpack.c.h.b16 %v21
  %v244 = vunpack.c.l.b16 %v22
  %v245 = vunpack.c.h.b16 %v22
  %v246 = vunpack.c.l.b16 %v23
  %v247 = vunpack.c.h.b16 %v23
  %v248 = vunpack.c.l.b16 %v24
  %v249 = vunpack.c.h.b16 %v24
  %v250 = vunpack.c.l.b16 %v25
  %v251 = vunpack.c.h.b16 %v25
  %v252 = vunpack.c.l.b16 %v26
  %v253 = vunpack.c.h.b16 %v26
  %v254 = vunpack.c.l.b16 %v27
  %v255 = vunpack.c.h.b16 %v27
  %v256 = vunpack.c.l.b16 %v28
  %v257 = vunpack.c.h.b16 %v28
  %v258 = vunpack.c.l.b16 %v29
  %v259 = vunpack.c.h.b16 %v29
  %v260 = vunpack.c.l.b16 %v30
  %v261 = vunpack.c.h.b16 %v30
  %v262 = vunpack.c.l.b16 %v31
  %v263 = vunpack.c.h.b16 %v31
  %v264 = vunpack.c.l.b16 %v32
  %v265 = vunpack.c.h.b16 %v32
  %v266 = vunpack.c.l.b16 %v33
  %v267 = vunpack.c.h.b16 %v33
  %v268 = vunpack.c.l.b16 %v34
  %v269 = vunpack.c.h.b16 %v34
  %v270 = vunpack.c.l.b16 %v35
  %v271 = vunpack.c.h.b16 %v35
  %v272 = vunpack.c.l.b16 %v36
  %v273 = vunpack.c.h.b16 %v36
  %v274 = vunpack.c.l.b16 %v37
  %v275 = vunpack.c.h.b16 %v37
  %v276 = vunpack.c.l.b16 %v38
  %v277 = vunpack.c.h.b16 %v38
  %v278 = vunpack.c.l.b16 %v39
  %v279 = vunpack.c.h.b16 %v39
  %v280 = vunpack.c.l.b16 %v40
  %v281 = vunpack.c.h.b16 %v40
  %v282 = vunpack.c.l.b16 %v41
  %v283 = vunpack.c.h.b16 %v41
  %v284 = vunpack.c.l.b16 %v42
  %v285 = vunpack.c.h.b16 %v42
  %v286 = vunpack.c.l.b16 %v43
  %v287 = vunpack.c.h.b16 %v43
  %v288 = vunpack.c.l.b16 %v44
  %v289 = vunpack.c.h.b16 %v44
  %v290 = vunpack.c.l.b16 %v45
  %v291 = vunpack.c.h.b16 %v45
  %v292 = vpack.c.b16 %v232, %v228
  %v293 = vpack.c.b16 %v233, %v229
  %v294 = vpack.c.b16 %v234, %v230
  %v295 = vpack.c.b16 %v235, %v231
  %v296 = vpack.c.b16 %v240, %v236
  %v297 = vpack.c.b16 %v241, %v237
  %v298 = vpack.c.b16 %v242, %v238
  %v299 = vpack.c.b16 %v243, %v239
  %v300 = vpack.c.b16 %v248, %v244
  %v301 = vpack.c.b16 %v249, %v245
  %v302 = vpack.c.b16 %v250, %v246
  %v303 = vpack.c.b16 %v251, %v247
  %v304 = vpack.c.b16 %v256, %v252
  %v305 = vpack.c.b16 %v257, %v253
  %v306 = vpack.c.b16 %v258, %v254
  %v307 = vpack.c.b16 %v259, %v255
  %v308 = vpack.c.b16 %v264, %v260
  %v309 = vpack.c.b16 %v265, %v261
  %v310 = vpack.c.b16 %v266, %v262
  %v311 = vpack.c.b16 %v267, %v263
  %v312 = vpack.c.b16 %v272, %v268
  %v313 = vpack.c.b16 %v273, %v269
  %v314 = vpack.c.b16 %v274, %v270
  %v315 = vpack.c.b16 %v275, %v271
  %v316 = vpack.c.b16 %v280, %v276
  %v317 = vpack.c.b16 %v281, %v277
  %v318 = vpack.c.b16 %v282, %v278
  %v319 = vpack.c.b16 %v283, %v279
  %v320 = vpack.c.b16 %v288, %v284
  %v321 = vpack.c.b16 %v289, %v285
  %v322 = vpack.c.b16 %v290, %v286
  %v323 = vpack.c.b16 %v291, %v287
  %v484 = vunpack.c.l.b16 %v46
  %v485 = vunpack.c.h.b16 %v46
  %v486 = vunpack.c.l.b16 %v47
  %v487 = vunpack.c.h.b16 %v47
  %v488 = vunpack.c.l.b16 %v48
  %v489 = vunpack.c.h.b16 %v48
  %v490 = vunpack.c.l.b16 %v49
  %v491 = vunpack.c.h.b16 %v49
  %v492 = vunpack.c.l.b16 %v50
  %v493 = vunpack.c.h.b16 %v50
  %v494 = vunpack.c.l.b16 %v51
  %v495 = vunpack.c.h.b16 %v51
  %v496 = vunpack.c.l.b16 %v52
  %v497 = vunpack.c.h.b16 %v52
  %v498 = vunpack.c.l.b16 %v53
  %v499 = vunpack.c.h.b16 %v53
  %v500 = vunpack.c.l.b16 %v54
  %v501 = vunpack.c.h.b16 %v54
  %v502 = vunpack.c.l.b16 %v55
  %v503 = vunpack.c.h.b16 %v55
  %v504 = vunpack.c.l.b16 %v56
  %v505 = vunpack.c.h.b16 %v56
  %v506 = vunpack.c.l.b16 %v57
  %v507 = vunpack.c.h.b16 %v57
  %v508 = vunpack.c.l.b16 %v58
  %v509 = vunpack.c.h.b16 %v58
  %v510 = vunpack.c.l.b16 %v59
  %v511 = vunpack.c.h.b16 %v59
  %v512 = vunpack.c.l.b16 %v60
  %v513 = vunpack.c.h.b16 %v60
  %v514 = vunpack.c.l.b16 %v61
  %v515 = vunpack.c.h.b16 %v61
  %v516 = vunpack.c.l.b16 %v62
  %v517 = vunpack.c.h.b16 %v62
  %v518 = vunpack.c.l.b16 %v63
  %v519 = vunpack.c.h.b16 %v63
  %v520 = vunpack.c.l.b16 %v64
  %v521 = vunpack.c.h.b16 %v64
  %v522 = vunpack.c.l.b16 %v65
  %v523 = vunpack.c.h.b16 %v65
  %v524 = vunpack.c.l.b16 %v66
  %v525 = vunpack.c.h.b16 %v66
  %v526 = vunpack.c.l.b16 %v67
  %v527 = vunpack.c.h.b16 %v67
  %v528 = vunpack.c.l.b16 %v68
  %v529 = vunpack.c.h.b16 %v68
  %v530 = vunpack.c.l.b16 %v69
  %v531 = vunpack.c.h.b16 %v69
  %v532 = vunpack.c.l.b16 %v70
  %v533 = vunpack.c.h.b16 %v70
  %v534 = vunpack.c.l.b16 %v71
  %v535 = vunpack.c.h.b16 %v71
  %v536 = vunpack.c.l.b16 %v72
  %v537 = vunpack.c.h.b16 %v72
  %v538 = vunpack.c.l.b16 %v73
  %v539 = vunpack.c.h.b16 %v73
  %v540 = vunpack.c.l.b16 %v74
  %v541 = vunpack.c.h.b16 %v74
  %v542 = vunpack.c.l.b16 %v75
  %v543 = vunpack.c.h.b16 %v75
  %v544 = vunpack.c.l.b16 %v76
  %v545 = vunpack.c.h.b16 %v76
  %v546 = vunpack.c.l.b16 %v77
  %v547 = vunpack.c.h.b16 %v77
  %v548 = vunpack.c.l.b16 %v78
  %v549 = vunpack.c.h.b16 %v78
  %v550 = vunpack.c.l.b16 %v79
  %v551 = vunpack.c.h.b16 %v79
  %v552 = vunpack.c.l.b16 %v80
  %v553 = vunpack.c.h.b16 %v80
  %v554 = vunpack.c.l.b16 %v81
  %v555 = vunpack.c.h.b16 %v81
  %v556 = vunpack.c.l.b16 %v82
  %v557 = vunpack.c.h.b16 %v82
  %v558 = vunpack.c.l.b16 %v83
  %v559 = vunpack.c.h.b16 %v83
  %v560 = vunpack.c.l.b16 %v84
  %v561 = vunpack.c.h.b16 %v84
  %v562 = vunpack.c.l.b16 %v85
  %v563 = vunpack.c.h.b16 %v85
  %v564 = vunpack.c.l.b16 %v86
  %v565 = vunpack.c.h.b16 %v86
  %v566 = vunpack.c.l.b16 %v87
  %v567 = vunpack.c.h.b16 %v87
  %v568 = vunpack.c.l.b16 %v88
  %v569 = vunpack.c.h.b16 %v88
  %v570 = vunpack.c.l.b16 %v89
  %v571 = vunpack.c.h.b16 %v89
  %v572 = vunpack.c.l.b16 %v90
  %v573 = vunpack.c.h.b16 %v90
  %v574 = vunpack.c.l.b16 %v91
  %v575 = vunpack.c.h.b16 %v91
  %v576 = vunpack.c.l.b16 %v92
  %v577 = vunpack.c.h.b16 %v92
  %v578 = vunpack.c.l.b16 %v93
  %v579 = vunpack.c.h.b16 %v93
  %v580 = vunpack.c.l.b16 %v94
  %v581 = vunpack.c.h.b16 %v94
  %v582 = vunpack.c.l.b16 %v95
  %v583 = vunpack.c.h.b16 %v95
  %v584 = vunpack.c.l.b16 %v96
  %v585 = vunpack.c.h.b16 %v96
  %v586 = vunpack.c.l.b16 %v97
  %v587 = vunpack.c.h.b16 %v97
  %v588 = vunpack.c.l.b16 %v98
  %v589 = vunpack.c.h.b16 %v98
  %v590 = vunpack.c.l.b16 %v99
  %v591 = vunpack.c.h.b16 %v99
  %v592 = vunpack.c.l.b16 %v100
  %v593 = vunpack.c.h.b16 %v100
  %v594 = vunpack.c.l.b16 %v101
  %v595 = vunpack.c.h.b16 %v101
  %v596 = vunpack.c.l.b16 %v102
  %v597 = vunpack.c.h.b16 %v102
  %v598 = vunpack.c.l.b16 %v103
  %v599 = vunpack.c.h.b16 %v103
  %v600 = vunpack.c.l.b16 %v104
  %v601 = vunpack.c.h.b16 %v104
  %v602 = vunpack.c.l.b16 %v105
  %v603 = vunpack.c.h.b16 %v105
  %v604 = vunpack.c.l.b16 %v106
  %v605 = vunpack.c.h.b16 %v106
  %v606 = vunpack.c.l.b16 %v107
  %v607 = vunpack.c.h.b16 %v107
  %v608 = vunpack.c.l.b16 %v108
  %v609 = vunpack.c.h.b16 %v108
  %v610 = vunpack.c.l.b16 %v109
  %v611 = vunpack.c.h.b16 %v109
  %v612 = vunpack.c.l.b16 %v110
  %v613 = vunpack.c.h.b16 %v110
  %v614 = vunpack.c.l.b16 %v111
  %v615 = vunpack.c.h.b16 %v111
  %v616 = vunpack.c.l.b16 %v112
  %v617 = vunpack.c.h.b16 %v112
  %v618 = vunpack.c.l.b16 %v113
  %v619 = vunpack.c.h.b16 %v113
  %v620 = vunpack.c.l.b16 %v114
  %v621 = vunpack.c.h.b16 %v114
  %v622 = vunpack.c.l.b16 %v115
  %v623 = vunpack.c.h.b16 %v115
  %v624 = vunpack.c.l.b16 %v116
  %v625 = vunpack.c.h.b16 %v116
  %v626 = vunpack.c.l.b16 %v117
  %v627 = vunpack.c.h.b16 %v117
  %v628 = vunpack.c.l.b16 %v118
  %v629 = vunpack.c.h.b16 %v118
  %v630 = vunpack.c.l.b16 %v119
  %v631 = vunpack.c.h.b16 %v119
  %v632 = vunpack.c.l.b16 %v120
  %v633 = vunpack.c.h.b16 %v120
  %v634 = vunpack.c.l.b16 %v121
  %v635 = vunpack.c.h.b16 %v121
  %v636 = vunpack.c.l.b16 %v122
  %v637 = vunpack.c.h.b16 %v122
  %v638 = vunpack.c.l.b16 %v123
  %v639 = vunpack.c.h.b16 %v123
  %v640 = vunpack.c.l.b16 %v124
  %v641 = vunpack.c.h.b16 %v124
  %v642 = vunpack.c.l.b16 %v125
  %v643 = vunpack.c.h.b16 %v125
  %v644 = vunpack.c.l.b16 %v126
  %v645 = vunpack.c.h.b16 %v126
  %v646 = vunpack.c.l.b16 %v127
  %v647 = vunpack.c.h.b16 %v127
  %v648 = vunpack.c.l.b16 %v128
  %v649 = vunpack.c.h.b16 %v128
  %v650 = vunpack.c.l.b16 %v129
  %v651 = vunpack.c.h.b16 %v129
  %v652 = vunpack.c.l.b16 %v130
  %v653 = vunpack.c.h.b16 %v130
  %v654 = vunpack.c.l.b16 %v131
  %v655 = vunpack.c.h.b16 %v131
  %v656 = vunpack.c.l.b16 %v132
  %v657 = vunpack.c.h.b16 %v132
  %v658 = vunpack.c.l.b16 %v133
  %v659 = vunpack.c.h.b16 %v133
  %v660 = vunpack.c.l.b16 %v134
  %v661 = vunpack.c.h.b16 %v134
  %v662 = vunpack.c.l.b16 %v135
  %v663 = vunpack.c.h.b16 %v135
  %v664 = vunpack.c.l.b16 %v136
  %v665 = vunpack.c.h.b16 %v136
  %v666 = vunpack.c.l.b16 %v137
  %v667 = vunpack.c.h.b16 %v137
  %v668 = vunpack.c.l.b16 %v138
  %v669 = vunpack.c.h.b16 %v138
  %v670 = vunpack.c.l.b16 %v139
  %v671 = vunpack.c.h.b16 %v139
  %v672 = vunpack.c.l.b16 %v140
  %v673 = vunpack.c.h.b16 %v140
  %v674 = vunpack.c.l.b16 %v141
  %v675 = vunpack.c.h.b16 %v141
  %v676 = vunpack.c.l.b16 %v142
  %v677 = vunpack.c.h.b16 %v142
  %v678 = vunpack.c.l.b16 %v143
  %v679 = vunpack.c.h.b16 %v143
  %v680 = vunpack.c.l.b16 %v144
  %v681 = vunpack.c.h.b16 %v144
  %v682 = vunpack.c.l.b16 %v145
  %v683 = vunpack.c.h.b16 %v145
  %v684 = vunpack.c.l.b16 %v146
  %v685 = vunpack.c.h.b16 %v146
  %v686 = vunpack.c.l.b16 %v147
  %v687 = vunpack.c.h.b16 %v147
  %v688 = vunpack.c.l.b16 %v148
  %v689 = vunpack.c.h.b16 %v148
  %v690 = vunpack.c.l.b16 %v149
  %v691 = vunpack.c.h.b16 %v149
  %v692 = vunpack.c.l.b16 %v150
  %v693 = vunpack.c.h.b16 %v150
  %v694 = vunpack.c.l.b16 %v151
  %v695 = vunpack.c.h.b16 %v151
  %v696 = vunpack.c.l.b16 %v152
  %v697 = vunpack.c.h.b16 %v152
  %v698 = vunpack.c.l.b16 %v153
  %v699 = vunpack.c.h.b16 %v153
  %v700 = vunpack.c.l.b16 %v154
  %v701 = vunpack.c.h.b16 %v154
  %v702 = vunpack.c.l.b16 %v155
  %v703 = vunpack.c.h.b16 %v155
  %v704 = vunpack.c.l.b16 %v156
  %v705 = vunpack.c.h.b16 %v156
  %v706 = vunpack.c.l.b16 %v157
  %v707 = vunpack.c.h.b16 %v157
  %v708 = vunpack.c.l.b16 %v158
  %v709 = vunpack.c.h.b16 %v158
  %v710 = vunpack.c.l.b16 %v159
  %v711 = vunpack.c.h.b16 %v159
  %v712 = vunpack.c.l.b16 %v160
  %v713 = vunpack.c.h.b16 %v160
  %v714 = vunpack.c.l.b16 %v161
  %v715 = vunpack.c.h.b16 %v161
  %v716 = vunpack.c.l.b16 %v162
  %v717 = vunpack.c.h.b16 %v162
  %v718 = vunpack.c.l.b16 %v163
  %v719 = vunpack.c.h.b16 %v163
  %v720 = vunpack.c.l.b16 %v164
  %v721 = vunpack.c.h.b16 %v164
  %v722 = vunpack.c.l.b16 %v165
  %v723 = vunpack.c.h.b16 %v165
  %v724 = vunpack.c.l.b16 %v166
  %v725 = vunpack.c.h.b16 %v166
  %v726 = vunpack.c.l.b16 %v167
  %v727 = vunpack.c.h.b16 %v167
  %v728 = vunpack.c.l.b16 %v168
  %v729 = vunpack.c.h.b16 %v168
  %v730 = vunpack.c.l.b16 %v169
  %v731 = vunpack.c.h.b16 %v169
  %v732 = vunpack.c.l.b16 %v170
  %v733 = vunpack.c.h.b16 %v170
  %v734 = vunpack.c.l.b16 %v171
  %v735 = vunpack.c.h.b16 %v171
  %v736 = vunpack.c.l.b16 %v172
  %v737 = vunpack.c.h.b16 %v172
  %v738 = vunpack.c.l.b16 %v173
  %v739 = vunpack.c.h.b16 %v173
  %v740 = vpack.c.b16 %v488, %v484
  %v741 = vpack.c.b16 %v489, %v485
  %v742 = vpack.c.b16 %v490, %v486
  %v743 = vpack.c.b16 %v491, %v487
  %v744 = vpack.c.b16 %v496, %v492
  %v745 = vpack.c.b16 %v497, %v493
  %v746 = vpack.c.b16 %v498, %v494
  %v747 = vpack.c.b16 %v499, %v495
  %v748 = vpack.c.b16 %v504, %v500
  %v749 = vpack.c.b16 %v505, %v501
  %v750 = vpack.c.b16 %v506, %v502
  %v751 = vpack.c.b16 %v507, %v503
  %v752 = vpack.c.b16 %v512, %v508
  %v753 = vpack.c.b16 %v513, %v509
  %v754 = vpack.c.b16 %v514, %v510
  %v755 = vpack.c.b16 %v515, %v511
  %v756 = vpack.c.b16 %v520, %v516
  %v757 = vpack.c.b16 %v521, %v517
  %v758 = vpack.c.b16 %v522, %v518
  %v759 = vpack.c.b16 %v523, %v519
  %v760 = vpack.c.b16 %v528, %v524
  %v761 = vpack.c.b16 %v529, %v525
  %v762 = vpack.c.b16 %v530, %v526
  %v763 = vpack.c.b16 %v531, %v527
  %v764 = vpack.c.b16 %v536, %v532
  %v765 = vpack.c.b16 %v537, %v533
  %v766 = vpack.c.b16 %v538, %v534
  %v767 = vpack.c.b16 %v539, %v535
  %v768 = vpack.c.b16 %v544, %v540
  %v769 = vpack.c.b16 %v545, %v541
  %v770 = vpack.c.b16 %v546, %v542
  %v771 = vpack.c.b16 %v547, %v543
  %v772 = vpack.c.b16 %v552, %v548
  %v773 = vpack.c.b16 %v553, %v549
  %v774 = vpack.c.b16 %v554, %v550
  %v775 = vpack.c.b16 %v555, %v551
  %v776 = vpack.c.b16 %v560, %v556
  %v777 = vpack.c.b16 %v561, %v557
  %v778 = vpack.c.b16 %v562, %v558
  %v779 = vpack.c.b16 %v563, %v559
  %v780 = vpack.c.b16 %v568, %v564
  %v781 = vpack.c.b16 %v569, %v565
  %v782 = vpack.c.b16 %v570, %v566
  %v783 = vpack.c.b16 %v571, %v567
  %v784 = vpack.c.b16 %v576, %v572
  %v785 = vpack.c.b16 %v577, %v573
  %v786 = vpack.c.b16 %v578, %v574
  %v787 = vpack.c.b16 %v579, %v575
  %v788 = vpack.c.b16 %v584, %v580
  %v789 = vpack.c.b16 %v585, %v581
  %v790 = vpack.c.b16 %v586, %v582
  %v791 = vpack.c.b16 %v587, %v583
  %v792 = vpack.c.b16 %v592, %v588
  %v793 = vpack.c.b16 %v593, %v589
  %v794 = vpack.c.b16 %v594, %v590
  %v795 = vpack.c.b16 %v595, %v591
  %v796 = vpack.c.b16 %v600, %v596
  %v797 = vpack.c.b16 %v601, %v597
  %v798 = vpack.c.b16 %v602, %v598
  %v799 = vpack.c.b16 %v603, %v599
  %v800 = vpack.c.b16 %v608, %v604
  %v801 = vpack.c.b16 %v609, %v605
  %v802 = vpack.c.b16 %v610, %v606
  %v803 = vpack.c.b16 %v611, %v607
  %v804 = vpack.c.b16 %v616, %v612
  %v805 = vpack.c.b16 %v617, %v613
  %v806 = vpack.c.b16 %v618, %v614
  %v807 = vpack.c.b16 %v619, %v615
  %v808 = vpack.c.b16 %v624, %v620
  %v809 = vpack.c.b16 %v625, %v621
  %v810 = vpack.c.b16 %v626, %v622
  %v811 = vpack.c.b16 %v627, %v623
  %v812 = vpack.c.b16 %v632, %v628
  %v813 = vpack.c.b16 %v633, %v629
  %v814 = vpack.c.b16 %v634, %v630
  %v815 = vpack.c.b16 %v635, %v631
  %v816 = vpack.c.b16 %v640, %v636
  %v817 = vpack.c.b16 %v641, %v637
  %v818 = vpack.c.b16 %v642, %v638
  %v819 = vpack.c.b16 %v643, %v639
  %v820 = vpack.c.b16 %v648, %v644
  %v821 = vpack.c.b16 %v649, %v645
  %v822 = vpack.c.b16 %v650, %v646
  %v823 = vpack.c.b16 %v651, %v647
  %v824 = vpack.c.b16 %v656, %v652
  %v825 = vpack.c.b16 %v657, %v653
  %v826 = vpack.c.b16 %v658, %v654
  %v827 = vpack.c.b16 %v659, %v655
  %v828 = vpack.c.b16 %v664, %v660
  %v829 = vpack.c.b16 %v665, %v661
  %v830 = vpack.c.b16 %v666, %v662
  %v831 = vpack.c.b16 %v667, %v663
  %v832 = vpack.c.b16 %v672, %v668
  %v833 = vpack.c.b16 %v673, %v669
  %v834 = vpack.c.b16 %v674, %v670
  %v835 = vpack.c.b16 %v675, %v671
  %v836 = vpack.c.b16 %v680, %v676
  %v837 = vpack.c.b16 %v681, %v677
  %v838 = vpack.c.b16 %v682, %v678
  %v839 = vpack.c.b16 %v683, %v679
  %v840 = vpack.c.b16 %v688, %v684
  %v841 = vpack.c.b16 %v689, %v685
  %v842 = vpack.c.b16 %v690, %v686
  %v843 = vpack.c.b16 %v691, %v687
  %v844 = vpack.c.b16 %v696, %v692
  %v845 = vpack.c.b16 %v697, %v693
  %v846 = vpack.c.b16 %v698, %v694
  %v847 = vpack.c.b16 %v699, %v695
  %v848 = vpack.c.b16 %v704, %v700
  %v849 = vpack.c.b16 %v705, %v701
  %v850 = vpack.c.b16 %v706, %v702
  %v851 = vpack.c.b16 %v707, %v703
  %v852 = vpack.c.b16 %v712, %v708
  %v853 = vpack.c.b16 %v713, %v709
  %v854 = vpack.c.b16 %v714, %v710
  %v855 = vpack.c.b16 %v715, %v711
  %v856 = vpack.c.b16 %v720, %v716
  %v857 = vpack.c.b16 %v721, %v717
  %v858 = vpack.c.b16 %v722, %v718
  %v859 = vpack.c.b16 %v723, %v719
  %v860 = vpack.c.b16 %v728, %v724
  %v861 = vpack.c.b16 %v729, %v725
  %v862 = vpack.c.b16 %v730, %v726
  %v863 = vpack.c.b16 %v731, %v727
  %v864 = vpack.c.b16 %v736, %v732
  %v865 = vpack.c.b16 %v737, %v733
  %v866 = vpack.c.b16 %v738, %v734
  %v867 = vpack.c.b16 %v739, %v735
  %996 = vmatprep.subr.bf16.mxu0 %v741
  %997 = vmatpush1.bf16.msra.mxu0 %v740
  %998 = vmatprep.subr.bf16.mxu0 %v745
  %999 = vmatpush1.bf16.msra.mxu0 %v744
  %1000 = vmatprep.subr.bf16.mxu0 %v749
  %1001 = vmatpush1.bf16.msra.mxu0 %v748
  %1002 = vmatprep.subr.bf16.mxu0 %v753
  %1003 = vmatpush1.bf16.msra.mxu0 %v752
  %1004 = vmatprep.subr.bf16.mxu0 %v757
  %1005 = vmatpush1.bf16.msra.mxu0 %v756
  %1006 = vmatprep.subr.bf16.mxu0 %v761
  %1007 = vmatpush1.bf16.msra.mxu0 %v760
  %1008 = vmatprep.subr.bf16.mxu0 %v765
  %1009 = vmatpush1.bf16.msra.mxu0 %v764
  %1010 = vmatprep.subr.bf16.mxu0 %v769
  %1011 = vmatpush1.bf16.msra.mxu0 %v768
  %1012 = vmatprep.subr.bf16.mxu0 %v773
  %1013 = vmatpush1.bf16.msra.mxu0 %v772
  %1014 = vmatprep.subr.bf16.mxu0 %v777
  %1015 = vmatpush1.bf16.msra.mxu0 %v776
  %1016 = vmatprep.subr.bf16.mxu0 %v781
  %1017 = vmatpush1.bf16.msra.mxu0 %v780
  %1018 = vmatprep.subr.bf16.mxu0 %v785
  %1019 = vmatpush1.bf16.msra.mxu0 %v784
  %1020 = vmatprep.subr.bf16.mxu0 %v789
  %1021 = vmatpush1.bf16.msra.mxu0 %v788
  %1022 = vmatprep.subr.bf16.mxu0 %v793
  %1023 = vmatpush1.bf16.msra.mxu0 %v792
  %1024 = vmatprep.subr.bf16.mxu0 %v797
  %1025 = vmatpush1.bf16.msra.mxu0 %v796
  %1026 = vmatprep.subr.bf16.mxu0 %v801
  %1027 = vmatpush1.bf16.msra.mxu0 %v800
  %1028 = vmatprep.mubr.bf16.mxu0 %v293
  %1029 = vmatmul.mubr.bf16.gmra.mrb[0].mxu0 %v292
  %v1030 = vpop.f32.mrb[0].mxu0
  %v1031 = vadd.f32 %v179, %v1030
  %v1032 = vpop.f32.mrb[0].mxu0
  %v1033 = vadd.f32 %v183, %v1032
  %v1034 = vpop.f32.mrb[0].mxu0
  %v1035 = vadd.f32 %v179, %v1034
  %v1036 = vpop.f32.mrb[0].mxu0
  %v1037 = vadd.f32 %v183, %v1036
  %1038 = vmatprep.mubr.bf16.mxu0 %v297
  %1039 = vmatmul.mubr.bf16.gmra.mrb[0].mxu0 %v296
  %v1040 = vpop.f32.mrb[0].mxu0
  %v1041 = vadd.f32 %v179, %v1040
  %v1042 = vpop.f32.mrb[0].mxu0
  %v1043 = vadd.f32 %v183, %v1042
  %v1044 = vpop.f32.mrb[0].mxu0
  %v1045 = vadd.f32 %v179, %v1044
  %v1046 = vpop.f32.mrb[0].mxu0
  %v1047 = vadd.f32 %v183, %v1046
  %1048 = vmatprep.mubr.bf16.mxu0 %v301
  %1049 = vmatmul.mubr.bf16.gmra.mrb[0].mxu0 %v300
  %v1050 = vpop.f32.mrb[0].mxu0
  %v1051 = vadd.f32 %v179, %v1050
  %v1052 = vpop.f32.mrb[0].mxu0
  %v1053 = vadd.f32 %v183, %v1052
  %v1054 = vpop.f32.mrb[0].mxu0
  %v1055 = vadd.f32 %v179, %v1054
  %v1056 = vpop.f32.mrb[0].mxu0
  %v1057 = vadd.f32 %v183, %v1056
  %1058 = vmatprep.mubr.bf16.mxu0 %v305
  %1059 = vmatmul.mubr.bf16.gmra.mrb[0].mxu0 %v304
  %v1060 = vpop.f32.mrb[0].mxu0
  %v1061 = vadd.f32 %v179, %v1060
  %v1062 = vpop.f32.mrb[0].mxu0
  %v1063 = vadd.f32 %v183, %v1062
  %v1064 = vpop.f32.mrb[0].mxu0
  %v1065 = vadd.f32 %v179, %v1064
  %v1066 = vpop.f32.mrb[0].mxu0
  %v1067 = vadd.f32 %v183, %v1066
  %1068 = vmatprep.mubr.bf16.mxu0 %v309
  %1069 = vmatmul.mubr.bf16.gmra.mrb[0].mxu0 %v308
  %v1070 = vpop.f32.mrb[0].mxu0
  %v1071 = vadd.f32 %v179, %v1070
  %v1072 = vpop.f32.mrb[0].mxu0
  %v1073 = vadd.f32 %v183, %v1072
  %v1074 = vpop.f32.mrb[0].mxu0
  %v1075 = vadd.f32 %v179, %v1074
  %v1076 = vpop.f32.mrb[0].mxu0
  %v1077 = vadd.f32 %v183, %v1076
  %1078 = vmatprep.mubr.bf16.mxu0 %v313
  %1079 = vmatmul.mubr.bf16.gmra.mrb[0].mxu0 %v312
  %v1080 = vpop.f32.mrb[0].mxu0
  %v1081 = vadd.f32 %v179, %v1080
  %v1082 = vpop.f32.mrb[0].mxu0
  %v1083 = vadd.f32 %v183, %v1082
  %v1084 = vpop.f32.mrb[0].mxu0
  %v1085 = vadd.f32 %v179, %v1084
  %v1086 = vpop.f32.mrb[0].mxu0
  %v1087 = vadd.f32 %v183, %v1086
  %1088 = vmatprep.mubr.bf16.mxu0 %v317
  %1089 = vmatmul.mubr.bf16.gmra.mrb[0].mxu0 %v316
  %v1090 = vpop.f32.mrb[0].mxu0
  %v1091 = vadd.f32 %v179, %v1090
  %v1092 = vpop.f32.mrb[0].mxu0
  %v1093 = vadd.f32 %v183, %v1092
  %v1094 = vpop.f32.mrb[0].mxu0
  %v1095 = vadd.f32 %v179, %v1094
  %v1096 = vpop.f32.mrb[0].mxu0
  %v1097 = vadd.f32 %v183, %v1096
  %1098 = vmatprep.mubr.bf16.mxu0 %v321
  %1099 = vmatmul.mubr.bf16.gmra.mrb[0].mxu0 %v320
  %v1100 = vpop.f32.mrb[0].mxu0
  %v1101 = vadd.f32 %v179, %v1100
  %v1102 = vpop.f32.mrb[0].mxu0
  %v1103 = vadd.f32 %v183, %v1102
  %v1104 = vpop.f32.mrb[0].mxu0
  %v1105 = vadd.f32 %v179, %v1104
  %v1106 = vpop.f32.mrb[0].mxu0
  %v1107 = vadd.f32 %v183, %v1106
  %1108 = vdwg.mxu0
  %1109 = vmatprep.subr.bf16.mxu0 %v805
  %1110 = vmatpush1.bf16.msra.mxu0 %v804
  %1111 = vmatprep.subr.bf16.mxu0 %v809
  %1112 = vmatpush1.bf16.msra.mxu0 %v808
  %1113 = vmatprep.subr.bf16.mxu0 %v813
  %1114 = vmatpush1.bf16.msra.mxu0 %v812
  %1115 = vmatprep.subr.bf16.mxu0 %v817
  %1116 = vmatpush1.bf16.msra.mxu0 %v816
  %1117 = vmatprep.subr.bf16.mxu0 %v821
  %1118 = vmatpush1.bf16.msra.mxu0 %v820
  %1119 = vmatprep.subr.bf16.mxu0 %v825
  %1120 = vmatpush1.bf16.msra.mxu0 %v824
  %1121 = vmatprep.subr.bf16.mxu0 %v829
  %1122 = vmatpush1.bf16.msra.mxu0 %v828
  %1123 = vmatprep.subr.bf16.mxu0 %v833
  %1124 = vmatpush1.bf16.msra.mxu0 %v832
  %1125 = vmatprep.subr.bf16.mxu0 %v837
  %1126 = vmatpush1.bf16.msra.mxu0 %v836
  %1127 = vmatprep.subr.bf16.mxu0 %v841
  %1128 = vmatpush1.bf16.msra.mxu0 %v840
  %1129 = vmatprep.subr.bf16.mxu0 %v845
  %1130 = vmatpush1.bf16.msra.mxu0 %v844
  %1131 = vmatprep.subr.bf16.mxu0 %v849
  %1132 = vmatpush1.bf16.msra.mxu0 %v848
  %1133 = vmatprep.subr.bf16.mxu0 %v853
  %1134 = vmatpush1.bf16.msra.mxu0 %v852
  %1135 = vmatprep.subr.bf16.mxu0 %v857
  %1136 = vmatpush1.bf16.msra.mxu0 %v856
  %1137 = vmatprep.subr.bf16.mxu0 %v861
  %1138 = vmatpush1.bf16.msra.mxu0 %v860
  %1139 = vmatprep.subr.bf16.mxu0 %v865
  %1140 = vmatpush1.bf16.msra.mxu0 %v864
  %1141 = vmatprep.mubr.bf16.mxu0 %v295
  %1142 = vmatmul.mubr.bf16.gmra.mrb[0].mxu0 %v294
  %v1143 = vpop.f32.mrb[0].mxu0
  %v1144 = vadd.f32 %v1031, %v1143
  %v1145 = vpop.f32.mrb[0].mxu0
  %v1146 = vadd.f32 %v1033, %v1145
  %v1147 = vpop.f32.mrb[0].mxu0
  %v1148 = vadd.f32 %v1035, %v1147
  %v1149 = vpop.f32.mrb[0].mxu0
  %v1150 = vadd.f32 %v1037, %v1149
  %1151 = vmatprep.mubr.bf16.mxu0 %v299
  %1152 = vmatmul.mubr.bf16.gmra.mrb[0].mxu0 %v298
  %v1153 = vpop.f32.mrb[0].mxu0
  %v1154 = vadd.f32 %v1041, %v1153
  %v1155 = vpop.f32.mrb[0].mxu0
  %v1156 = vadd.f32 %v1043, %v1155
  %v1157 = vpop.f32.mrb[0].mxu0
  %v1158 = vadd.f32 %v1045, %v1157
  %v1159 = vpop.f32.mrb[0].mxu0
  %v1160 = vadd.f32 %v1047, %v1159
  %1161 = vmatprep.mubr.bf16.mxu0 %v303
  %1162 = vmatmul.mubr.bf16.gmra.mrb[0].mxu0 %v302
  %v1163 = vpop.f32.mrb[0].mxu0
  %v1164 = vadd.f32 %v1051, %v1163
  %v1165 = vpop.f32.mrb[0].mxu0
  %v1166 = vadd.f32 %v1053, %v1165
  %v1167 = vpop.f32.mrb[0].mxu0
  %v1168 = vadd.f32 %v1055, %v1167
  %v1169 = vpop.f32.mrb[0].mxu0
  %v1170 = vadd.f32 %v1057, %v1169
  %1171 = vmatprep.mubr.bf16.mxu0 %v307
  %1172 = vmatmul.mubr.bf16.gmra.mrb[0].mxu0 %v306
  %v1173 = vpop.f32.mrb[0].mxu0
  %v1174 = vadd.f32 %v1061, %v1173
  %v1175 = vpop.f32.mrb[0].mxu0
  %v1176 = vadd.f32 %v1063, %v1175
  %v1177 = vpop.f32.mrb[0].mxu0
  %v1178 = vadd.f32 %v1065, %v1177
  %v1179 = vpop.f32.mrb[0].mxu0
  %v1180 = vadd.f32 %v1067, %v1179
  %1181 = vmatprep.mubr.bf16.mxu0 %v311
  %1182 = vmatmul.mubr.bf16.gmra.mrb[0].mxu0 %v310
  %v1183 = vpop.f32.mrb[0].mxu0
  %v1184 = vadd.f32 %v1071, %v1183
  %v1185 = vpop.f32.mrb[0].mxu0
  %v1186 = vadd.f32 %v1073, %v1185
  %v1187 = vpop.f32.mrb[0].mxu0
  %v1188 = vadd.f32 %v1075, %v1187
  %v1189 = vpop.f32.mrb[0].mxu0
  %v1190 = vadd.f32 %v1077, %v1189
  %1191 = vmatprep.mubr.bf16.mxu0 %v315
  %1192 = vmatmul.mubr.bf16.gmra.mrb[0].mxu0 %v314
  %v1193 = vpop.f32.mrb[0].mxu0
  %v1194 = vadd.f32 %v1081, %v1193
  %v1195 = vpop.f32.mrb[0].mxu0
  %v1196 = vadd.f32 %v1083, %v1195
  %v1197 = vpop.f32.mrb[0].mxu0
  %v1198 = vadd.f32 %v1085, %v1197
  %v1199 = vpop.f32.mrb[0].mxu0
  %v1200 = vadd.f32 %v1087, %v1199
  %1201 = vmatprep.mubr.bf16.mxu0 %v319
  %1202 = vmatmul.mubr.bf16.gmra.mrb[0].mxu0 %v318
  %v1203 = vpop.f32.mrb[0].mxu0
  %v1204 = vadd.f32 %v1091, %v1203
  %v1205 = vpop.f32.mrb[0].mxu0
  %v1206 = vadd.f32 %v1093, %v1205
  %v1207 = vpop.f32.mrb[0].mxu0
  %v1208 = vadd.f32 %v1095, %v1207
  %v1209 = vpop.f32.mrb[0].mxu0
  %v1210 = vadd.f32 %v1097, %v1209
  %1211 = vmatprep.mubr.bf16.mxu0 %v323
  %1212 = vmatmul.mubr.bf16.gmra.mrb[0].mxu0 %v322
  %v1213 = vpop.f32.mrb[0].mxu0
  %v1214 = vadd.f32 %v1101, %v1213
  %v1215 = vpop.f32.mrb[0].mxu0
  %v1216 = vadd.f32 %v1103, %v1215
  %v1217 = vpop.f32.mrb[0].mxu0
  %v1218 = vadd.f32 %v1105, %v1217
  %v1219 = vpop.f32.mrb[0].mxu0
  %v1220 = vadd.f32 %v1107, %v1219
  %1221 = vdwg.mxu0
  %1222 = vmatprep.subr.bf16.mxu0 %v743
  %1223 = vmatpush1.bf16.msra.mxu0 %v742
  %1224 = vmatprep.subr.bf16.mxu0 %v747
  %1225 = vmatpush1.bf16.msra.mxu0 %v746
  %1226 = vmatprep.subr.bf16.mxu0 %v751
  %1227 = vmatpush1.bf16.msra.mxu0 %v750
  %1228 = vmatprep.subr.bf16.mxu0 %v755
  %1229 = vmatpush1.bf16.msra.mxu0 %v754
  %1230 = vmatprep.subr.bf16.mxu0 %v759
  %1231 = vmatpush1.bf16.msra.mxu0 %v758
  %1232 = vmatprep.subr.bf16.mxu0 %v763
  %1233 = vmatpush1.bf16.msra.mxu0 %v762
  %1234 = vmatprep.subr.bf16.mxu0 %v767
  %1235 = vmatpush1.bf16.msra.mxu0 %v766
  %1236 = vmatprep.subr.bf16.mxu0 %v771
  %1237 = vmatpush1.bf16.msra.mxu0 %v770
  %1238 = vmatprep.subr.bf16.mxu0 %v775
  %1239 = vmatpush1.bf16.msra.mxu0 %v774
  %1240 = vmatprep.subr.bf16.mxu0 %v779
  %1241 = vmatpush1.bf16.msra.mxu0 %v778
  %1242 = vmatprep.subr.bf16.mxu0 %v783
  %1243 = vmatpush1.bf16.msra.mxu0 %v782
  %1244 = vmatprep.subr.bf16.mxu0 %v787
  %1245 = vmatpush1.bf16.msra.mxu0 %v786
  %1246 = vmatprep.subr.bf16.mxu0 %v791
  %1247 = vmatpush1.bf16.msra.mxu0 %v790
  %1248 = vmatprep.subr.bf16.mxu0 %v795
  %1249 = vmatpush1.bf16.msra.mxu0 %v794
  %1250 = vmatprep.subr.bf16.mxu0 %v799
  %1251 = vmatpush1.bf16.msra.mxu0 %v798
  %1252 = vmatprep.subr.bf16.mxu0 %v803
  %1253 = vmatpush1.bf16.msra.mxu0 %v802
  %1254 = vmatprep.mubr.bf16.mxu0 %v293
  %1255 = vmatmul.mubr.bf16.gmra.mrb[0].mxu0 %v292
  %v1256 = vpop.f32.mrb[0].mxu0
  %v1257 = vadd.f32 %v187, %v1256
  %v1258 = vpop.f32.mrb[0].mxu0
  %v1259 = vadd.f32 %v191, %v1258
  %v1260 = vpop.f32.mrb[0].mxu0
  %v1261 = vadd.f32 %v187, %v1260
  %v1262 = vpop.f32.mrb[0].mxu0
  %v1263 = vadd.f32 %v191, %v1262
  %1264 = vmatprep.mubr.bf16.mxu0 %v297
  %1265 = vmatmul.mubr.bf16.gmra.mrb[0].mxu0 %v296
  %v1266 = vpop.f32.mrb[0].mxu0
  %v1267 = vadd.f32 %v187, %v1266
  %v1268 = vpop.f32.mrb[0].mxu0
  %v1269 = vadd.f32 %v191, %v1268
  %v1270 = vpop.f32.mrb[0].mxu0
  %v1271 = vadd.f32 %v187, %v1270
  %v1272 = vpop.f32.mrb[0].mxu0
  %v1273 = vadd.f32 %v191, %v1272
  %1274 = vmatprep.mubr.bf16.mxu0 %v301
  %1275 = vmatmul.mubr.bf16.gmra.mrb[0].mxu0 %v300
  %v1276 = vpop.f32.mrb[0].mxu0
  %v1277 = vadd.f32 %v187, %v1276
  %v1278 = vpop.f32.mrb[0].mxu0
  %v1279 = vadd.f32 %v191, %v1278
  %v1280 = vpop.f32.mrb[0].mxu0
  %v1281 = vadd.f32 %v187, %v1280
  %v1282 = vpop.f32.mrb[0].mxu0
  %v1283 = vadd.f32 %v191, %v1282
  %1284 = vmatprep.mubr.bf16.mxu0 %v305
  %1285 = vmatmul.mubr.bf16.gmra.mrb[0].mxu0 %v304
  %v1286 = vpop.f32.mrb[0].mxu0
  %v1287 = vadd.f32 %v187, %v1286
  %v1288 = vpop.f32.mrb[0].mxu0
  %v1289 = vadd.f32 %v191, %v1288
  %v1290 = vpop.f32.mrb[0].mxu0
  %v1291 = vadd.f32 %v187, %v1290
  %v1292 = vpop.f32.mrb[0].mxu0
  %v1293 = vadd.f32 %v191, %v1292
  %1294 = vmatprep.mubr.bf16.mxu0 %v309
  %1295 = vmatmul.mubr.bf16.gmra.mrb[0].mxu0 %v308
  %v1296 = vpop.f32.mrb[0].mxu0
  %v1297 = vadd.f32 %v187, %v1296
  %v1298 = vpop.f32.mrb[0].mxu0
  %v1299 = vadd.f32 %v191, %v1298
  %v1300 = vpop.f32.mrb[0].mxu0
  %v1301 = vadd.f32 %v187, %v1300
  %v1302 = vpop.f32.mrb[0].mxu0
  %v1303 = vadd.f32 %v191, %v1302
  %1304 = vmatprep.mubr.bf16.mxu0 %v313
  %1305 = vmatmul.mubr.bf16.gmra.mrb[0].mxu0 %v312
  %v1306 = vpop.f32.mrb[0].mxu0
  %v1307 = vadd.f32 %v187, %v1306
  %v1308 = vpop.f32.mrb[0].mxu0
  %v1309 = vadd.f32 %v191, %v1308
  %v1310 = vpop.f32.mrb[0].mxu0
  %v1311 = vadd.f32 %v187, %v1310
  %v1312 = vpop.f32.mrb[0].mxu0
  %v1313 = vadd.f32 %v191, %v1312
  %1314 = vmatprep.mubr.bf16.mxu0 %v317
  %1315 = vmatmul.mubr.bf16.gmra.mrb[0].mxu0 %v316
  %v1316 = vpop.f32.mrb[0].mxu0
  %v1317 = vadd.f32 %v187, %v1316
  %v1318 = vpop.f32.mrb[0].mxu0
  %v1319 = vadd.f32 %v191, %v1318
  %v1320 = vpop.f32.mrb[0].mxu0
  %v1321 = vadd.f32 %v187, %v1320
  %v1322 = vpop.f32.mrb[0].mxu0
  %v1323 = vadd.f32 %v191, %v1322
  %1324 = vmatprep.mubr.bf16.mxu0 %v321
  %1325 = vmatmul.mubr.bf16.gmra.mrb[0].mxu0 %v320
  %v1326 = vpop.f32.mrb[0].mxu0
  %v1327 = vadd.f32 %v187, %v1326
  %v1328 = vpop.f32.mrb[0].mxu0
  %v1329 = vadd.f32 %v191, %v1328
  %v1330 = vpop.f32.mrb[0].mxu0
  %v1331 = vadd.f32 %v187, %v1330
  %v1332 = vpop.f32.mrb[0].mxu0
  %v1333 = vadd.f32 %v191, %v1332
  %1334 = vdwg.mxu0
  %1335 = vmatprep.subr.bf16.mxu0 %v807
  %1336 = vmatpush1.bf16.msra.mxu0 %v806
  %1337 = vmatprep.subr.bf16.mxu0 %v811
  %1338 = vmatpush1.bf16.msra.mxu0 %v810
  %1339 = vmatprep.subr.bf16.mxu0 %v815
  %1340 = vmatpush1.bf16.msra.mxu0 %v814
  %1341 = vmatprep.subr.bf16.mxu0 %v819
  %1342 = vmatpush1.bf16.msra.mxu0 %v818
  %1343 = vmatprep.subr.bf16.mxu0 %v823
  %1344 = vmatpush1.bf16.msra.mxu0 %v822
  %1345 = vmatprep.subr.bf16.mxu0 %v827
  %1346 = vmatpush1.bf16.msra.mxu0 %v826
  %1347 = vmatprep.subr.bf16.mxu0 %v831
  %1348 = vmatpush1.bf16.msra.mxu0 %v830
  %1349 = vmatprep.subr.bf16.mxu0 %v835
  %1350 = vmatpush1.bf16.msra.mxu0 %v834
  %1351 = vmatprep.subr.bf16.mxu0 %v839
  %1352 = vmatpush1.bf16.msra.mxu0 %v838
  %1353 = vmatprep.subr.bf16.mxu0 %v843
  %1354 = vmatpush1.bf16.msra.mxu0 %v842
  %1355 = vmatprep.subr.bf16.mxu0 %v847
  %1356 = vmatpush1.bf16.msra.mxu0 %v846
  %1357 = vmatprep.subr.bf16.mxu0 %v851
  %1358 = vmatpush1.bf16.msra.mxu0 %v850
  %1359 = vmatprep.subr.bf16.mxu0 %v855
  %1360 = vmatpush1.bf16.msra.mxu0 %v854
  %1361 = vmatprep.subr.bf16.mxu0 %v859
  %1362 = vmatpush1.bf16.msra.mxu0 %v858
  %1363 = vmatprep.subr.bf16.mxu0 %v863
  %1364 = vmatpush1.bf16.msra.mxu0 %v862
  %1365 = vmatprep.subr.bf16.mxu0 %v867
  %1366 = vmatpush1.bf16.msra.mxu0 %v866
  %1367 = vmatprep.mubr.bf16.mxu0 %v295
  %1368 = vmatmul.mubr.bf16.gmra.mrb[0].mxu0 %v294
  %v1369 = vpop.f32.mrb[0].mxu0
  %v1370 = vadd.f32 %v1257, %v1369
  %v1371 = vpop.f32.mrb[0].mxu0
  %v1372 = vadd.f32 %v1259, %v1371
  %v1373 = vpop.f32.mrb[0].mxu0
  %v1374 = vadd.f32 %v1261, %v1373
  %v1375 = vpop.f32.mrb[0].mxu0
  %v1376 = vadd.f32 %v1263, %v1375
  %1377 = vmatprep.mubr.bf16.mxu0 %v299
  %1378 = vmatmul.mubr.bf16.gmra.mrb[0].mxu0 %v298
  %v1379 = vpop.f32.mrb[0].mxu0
  %v1380 = vadd.f32 %v1267, %v1379
  %v1381 = vpop.f32.mrb[0].mxu0
  %v1382 = vadd.f32 %v1269, %v1381
  %v1383 = vpop.f32.mrb[0].mxu0
  %v1384 = vadd.f32 %v1271, %v1383
  %v1385 = vpop.f32.mrb[0].mxu0
  %v1386 = vadd.f32 %v1273, %v1385
  %1387 = vmatprep.mubr.bf16.mxu0 %v303
  %1388 = vmatmul.mubr.bf16.gmra.mrb[0].mxu0 %v302
  %v1389 = vpop.f32.mrb[0].mxu0
  %v1390 = vadd.f32 %v1277, %v1389
  %v1391 = vpop.f32.mrb[0].mxu0
  %v1392 = vadd.f32 %v1279, %v1391
  %v1393 = vpop.f32.mrb[0].mxu0
  %v1394 = vadd.f32 %v1281, %v1393
  %v1395 = vpop.f32.mrb[0].mxu0
  %v1396 = vadd.f32 %v1283, %v1395
  %1397 = vmatprep.mubr.bf16.mxu0 %v307
  %1398 = vmatmul.mubr.bf16.gmra.mrb[0].mxu0 %v306
  %v1399 = vpop.f32.mrb[0].mxu0
  %v1400 = vadd.f32 %v1287, %v1399
  %v1401 = vpop.f32.mrb[0].mxu0
  %v1402 = vadd.f32 %v1289, %v1401
  %v1403 = vpop.f32.mrb[0].mxu0
  %v1404 = vadd.f32 %v1291, %v1403
  %v1405 = vpop.f32.mrb[0].mxu0
  %v1406 = vadd.f32 %v1293, %v1405
  %1407 = vmatprep.mubr.bf16.mxu0 %v311
  %1408 = vmatmul.mubr.bf16.gmra.mrb[0].mxu0 %v310
  %v1409 = vpop.f32.mrb[0].mxu0
  %v1410 = vadd.f32 %v1297, %v1409
  %v1411 = vpop.f32.mrb[0].mxu0
  %v1412 = vadd.f32 %v1299, %v1411
  %v1413 = vpop.f32.mrb[0].mxu0
  %v1414 = vadd.f32 %v1301, %v1413
  %v1415 = vpop.f32.mrb[0].mxu0
  %v1416 = vadd.f32 %v1303, %v1415
  %1417 = vmatprep.mubr.bf16.mxu0 %v315
  %1418 = vmatmul.mubr.bf16.gmra.mrb[0].mxu0 %v314
  %v1419 = vpop.f32.mrb[0].mxu0
  %v1420 = vadd.f32 %v1307, %v1419
  %v1421 = vpop.f32.mrb[0].mxu0
  %v1422 = vadd.f32 %v1309, %v1421
  %v1423 = vpop.f32.mrb[0].mxu0
  %v1424 = vadd.f32 %v1311, %v1423
  %v1425 = vpop.f32.mrb[0].mxu0
  %v1426 = vadd.f32 %v1313, %v1425
  %1427 = vmatprep.mubr.bf16.mxu0 %v319
  %1428 = vmatmul.mubr.bf16.gmra.mrb[0].mxu0 %v318
  %v1429 = vpop.f32.mrb[0].mxu0
  %v1430 = vadd.f32 %v1317, %v1429
  %v1431 = vpop.f32.mrb[0].mxu0
  %v1432 = vadd.f32 %v1319, %v1431
  %v1433 = vpop.f32.mrb[0].mxu0
  %v1434 = vadd.f32 %v1321, %v1433
  %v1435 = vpop.f32.mrb[0].mxu0
  %v1436 = vadd.f32 %v1323, %v1435
  %1437 = vmatprep.mubr.bf16.mxu0 %v323
  %1438 = vmatmul.mubr.bf16.gmra.mrb[0].mxu0 %v322
  %v1439 = vpop.f32.mrb[0].mxu0
  %v1440 = vadd.f32 %v1327, %v1439
  %v1441 = vpop.f32.mrb[0].mxu0
  %v1442 = vadd.f32 %v1329, %v1441
  %v1443 = vpop.f32.mrb[0].mxu0
  %v1444 = vadd.f32 %v1331, %v1443
  %v1445 = vpop.f32.mrb[0].mxu0
  %v1446 = vadd.f32 %v1333, %v1445
  %1447 = vdwg.mxu0
  %v1448 = vxor.u32 %v1144, 2147483648
  %v1449 = vxor.u32 %v1146, 2147483648
  %v1450 = vxor.u32 %v1370, 2147483648
  %v1451 = vxor.u32 %v1372, 2147483648
  %v1452 = vxor.u32 %v1148, 2147483648
  %v1453 = vxor.u32 %v1150, 2147483648
  %v1454 = vxor.u32 %v1374, 2147483648
  %v1455 = vxor.u32 %v1376, 2147483648
  %v1456 = vxor.u32 %v1154, 2147483648
  %v1457 = vxor.u32 %v1156, 2147483648
  %v1458 = vxor.u32 %v1380, 2147483648
  %v1459 = vxor.u32 %v1382, 2147483648
  %v1460 = vxor.u32 %v1158, 2147483648
  %v1461 = vxor.u32 %v1160, 2147483648
  %v1462 = vxor.u32 %v1384, 2147483648
  %v1463 = vxor.u32 %v1386, 2147483648
  %v1464 = vxor.u32 %v1164, 2147483648
  %v1465 = vxor.u32 %v1166, 2147483648
  %v1466 = vxor.u32 %v1390, 2147483648
  %v1467 = vxor.u32 %v1392, 2147483648
  %v1468 = vxor.u32 %v1168, 2147483648
  %v1469 = vxor.u32 %v1170, 2147483648
  %v1470 = vxor.u32 %v1394, 2147483648
  %v1471 = vxor.u32 %v1396, 2147483648
  %v1472 = vxor.u32 %v1174, 2147483648
  %v1473 = vxor.u32 %v1176, 2147483648
  %v1474 = vxor.u32 %v1400, 2147483648
  %v1475 = vxor.u32 %v1402, 2147483648
  %v1476 = vxor.u32 %v1178, 2147483648
  %v1477 = vxor.u32 %v1180, 2147483648
  %v1478 = vxor.u32 %v1404, 2147483648
  %v1479 = vxor.u32 %v1406, 2147483648
  %v1480 = vxor.u32 %v1184, 2147483648
  %v1481 = vxor.u32 %v1186, 2147483648
  %v1482 = vxor.u32 %v1410, 2147483648
  %v1483 = vxor.u32 %v1412, 2147483648
  %v1484 = vxor.u32 %v1188, 2147483648
  %v1485 = vxor.u32 %v1190, 2147483648
  %v1486 = vxor.u32 %v1414, 2147483648
  %v1487 = vxor.u32 %v1416, 2147483648
  %v1488 = vxor.u32 %v1194, 2147483648
  %v1489 = vxor.u32 %v1196, 2147483648
  %v1490 = vxor.u32 %v1420, 2147483648
  %v1491 = vxor.u32 %v1422, 2147483648
  %v1492 = vxor.u32 %v1198, 2147483648
  %v1493 = vxor.u32 %v1200, 2147483648
  %v1494 = vxor.u32 %v1424, 2147483648
  %v1495 = vxor.u32 %v1426, 2147483648
  %v1496 = vxor.u32 %v1204, 2147483648
  %v1497 = vxor.u32 %v1206, 2147483648
  %v1498 = vxor.u32 %v1430, 2147483648
  %v1499 = vxor.u32 %v1432, 2147483648
  %v1500 = vxor.u32 %v1208, 2147483648
  %v1501 = vxor.u32 %v1210, 2147483648
  %v1502 = vxor.u32 %v1434, 2147483648
  %v1503 = vxor.u32 %v1436, 2147483648
  %v1504 = vxor.u32 %v1214, 2147483648
  %v1505 = vxor.u32 %v1216, 2147483648
  %v1506 = vxor.u32 %v1440, 2147483648
  %v1507 = vxor.u32 %v1442, 2147483648
  %v1508 = vxor.u32 %v1218, 2147483648
  %v1509 = vxor.u32 %v1220, 2147483648
  %v1510 = vxor.u32 %v1444, 2147483648
  %v1511 = vxor.u32 %v1446, 2147483648
  %v1512 = vmul.f32 %v1448, 1.442695
  %v1513 = vpow.pop %v1512
  %v1514 = vmul.f32 %v1449, 1.442695
  %v1515 = vpow.pop %v1514
  %v1516 = vmul.f32 %v1450, 1.442695
  %v1517 = vpow.pop %v1516
  %v1518 = vmul.f32 %v1451, 1.442695
  %v1519 = vpow.pop %v1518
  %v1520 = vmul.f32 %v1452, 1.442695
  %v1521 = vpow.pop %v1520
  %v1522 = vmul.f32 %v1453, 1.442695
  %v1523 = vpow.pop %v1522
  %v1524 = vmul.f32 %v1454, 1.442695
  %v1525 = vpow.pop %v1524
  %v1526 = vmul.f32 %v1455, 1.442695
  %v1527 = vpow.pop %v1526
  %v1528 = vmul.f32 %v1456, 1.442695
  %v1529 = vpow.pop %v1528
  %v1530 = vmul.f32 %v1457, 1.442695
  %v1531 = vpow.pop %v1530
  %v1532 = vmul.f32 %v1458, 1.442695
  %v1533 = vpow.pop %v1532
  %v1534 = vmul.f32 %v1459, 1.442695
  %v1535 = vpow.pop %v1534
  %v1536 = vmul.f32 %v1460, 1.442695
  %v1537 = vpow.pop %v1536
  %v1538 = vmul.f32 %v1461, 1.442695
  %v1539 = vpow.pop %v1538
  %v1540 = vmul.f32 %v1462, 1.442695
  %v1541 = vpow.pop %v1540
  %v1542 = vmul.f32 %v1463, 1.442695
  %v1543 = vpow.pop %v1542
  %v1544 = vmul.f32 %v1464, 1.442695
  %v1545 = vpow.pop %v1544
  %v1546 = vmul.f32 %v1465, 1.442695
  %v1547 = vpow.pop %v1546
  %v1548 = vmul.f32 %v1466, 1.442695
  %v1549 = vpow.pop %v1548
  %v1550 = vmul.f32 %v1467, 1.442695
  %v1551 = vpow.pop %v1550
  %v1552 = vmul.f32 %v1468, 1.442695
  %v1553 = vpow.pop %v1552
  %v1554 = vmul.f32 %v1469, 1.442695
  %v1555 = vpow.pop %v1554
  %v1556 = vmul.f32 %v1470, 1.442695
  %v1557 = vpow.pop %v1556
  %v1558 = vmul.f32 %v1471, 1.442695
  %v1559 = vpow.pop %v1558
  %v1560 = vmul.f32 %v1472, 1.442695
  %v1561 = vpow.pop %v1560
  %v1562 = vmul.f32 %v1473, 1.442695
  %v1563 = vpow.pop %v1562
  %v1564 = vmul.f32 %v1474, 1.442695
  %v1565 = vpow.pop %v1564
  %v1566 = vmul.f32 %v1475, 1.442695
  %v1567 = vpow.pop %v1566
  %v1568 = vmul.f32 %v1476, 1.442695
  %v1569 = vpow.pop %v1568
  %v1570 = vmul.f32 %v1477, 1.442695
  %v1571 = vpow.pop %v1570
  %v1572 = vmul.f32 %v1478, 1.442695
  %v1573 = vpow.pop %v1572
  %v1574 = vmul.f32 %v1479, 1.442695
  %v1575 = vpow.pop %v1574
  %v1576 = vmul.f32 %v1480, 1.442695
  %v1577 = vpow.pop %v1576
  %v1578 = vmul.f32 %v1481, 1.442695
  %v1579 = vpow.pop %v1578
  %v1580 = vmul.f32 %v1482, 1.442695
  %v1581 = vpow.pop %v1580
  %v1582 = vmul.f32 %v1483, 1.442695
  %v1583 = vpow.pop %v1582
  %v1584 = vmul.f32 %v1484, 1.442695
  %v1585 = vpow.pop %v1584
  %v1586 = vmul.f32 %v1485, 1.442695
  %v1587 = vpow.pop %v1586
  %v1588 = vmul.f32 %v1486, 1.442695
  %v1589 = vpow.pop %v1588
  %v1590 = vmul.f32 %v1487, 1.442695
  %v1591 = vpow.pop %v1590
  %v1592 = vmul.f32 %v1488, 1.442695
  %v1593 = vpow.pop %v1592
  %v1594 = vmul.f32 %v1489, 1.442695
  %v1595 = vpow.pop %v1594
  %v1596 = vmul.f32 %v1490, 1.442695
  %v1597 = vpow.pop %v1596
  %v1598 = vmul.f32 %v1491, 1.442695
  %v1599 = vpow.pop %v1598
  %v1600 = vmul.f32 %v1492, 1.442695
  %v1601 = vpow.pop %v1600
  %v1602 = vmul.f32 %v1493, 1.442695
  %v1603 = vpow.pop %v1602
  %v1604 = vmul.f32 %v1494, 1.442695
  %v1605 = vpow.pop %v1604
  %v1606 = vmul.f32 %v1495, 1.442695
  %v1607 = vpow.pop %v1606
  %v1608 = vmul.f32 %v1496, 1.442695
  %v1609 = vpow.pop %v1608
  %v1610 = vmul.f32 %v1497, 1.442695
  %v1611 = vpow.pop %v1610
  %v1612 = vmul.f32 %v1498, 1.442695
  %v1613 = vpow.pop %v1612
  %v1614 = vmul.f32 %v1499, 1.442695
  %v1615 = vpow.pop %v1614
  %v1616 = vmul.f32 %v1500, 1.442695
  %v1617 = vpow.pop %v1616
  %v1618 = vmul.f32 %v1501, 1.442695
  %v1619 = vpow.pop %v1618
  %v1620 = vmul.f32 %v1502, 1.442695
  %v1621 = vpow.pop %v1620
  %v1622 = vmul.f32 %v1503, 1.442695
  %v1623 = vpow.pop %v1622
  %v1624 = vmul.f32 %v1504, 1.442695
  %v1625 = vpow.pop %v1624
  %v1626 = vmul.f32 %v1505, 1.442695
  %v1627 = vpow.pop %v1626
  %v1628 = vmul.f32 %v1506, 1.442695
  %v1629 = vpow.pop %v1628
  %v1630 = vmul.f32 %v1507, 1.442695
  %v1631 = vpow.pop %v1630
  %v1632 = vmul.f32 %v1508, 1.442695
  %v1633 = vpow.pop %v1632
  %v1634 = vmul.f32 %v1509, 1.442695
  %v1635 = vpow.pop %v1634
  %v1636 = vmul.f32 %v1510, 1.442695
  %v1637 = vpow.pop %v1636
  %v1638 = vmul.f32 %v1511, 1.442695
  %v1639 = vpow.pop %v1638
  %v1640 = vadd.f32 %v1513, 1.0
  %v1641 = vadd.f32 %v1515, 1.0
  %v1642 = vadd.f32 %v1517, 1.0
  %v1643 = vadd.f32 %v1519, 1.0
  %v1644 = vadd.f32 %v1521, 1.0
  %v1645 = vadd.f32 %v1523, 1.0
  %v1646 = vadd.f32 %v1525, 1.0
  %v1647 = vadd.f32 %v1527, 1.0
  %v1648 = vadd.f32 %v1529, 1.0
  %v1649 = vadd.f32 %v1531, 1.0
  %v1650 = vadd.f32 %v1533, 1.0
  %v1651 = vadd.f32 %v1535, 1.0
  %v1652 = vadd.f32 %v1537, 1.0
  %v1653 = vadd.f32 %v1539, 1.0
  %v1654 = vadd.f32 %v1541, 1.0
  %v1655 = vadd.f32 %v1543, 1.0
  %v1656 = vadd.f32 %v1545, 1.0
  %v1657 = vadd.f32 %v1547, 1.0
  %v1658 = vadd.f32 %v1549, 1.0
  %v1659 = vadd.f32 %v1551, 1.0
  %v1660 = vadd.f32 %v1553, 1.0
  %v1661 = vadd.f32 %v1555, 1.0
  %v1662 = vadd.f32 %v1557, 1.0
  %v1663 = vadd.f32 %v1559, 1.0
  %v1664 = vadd.f32 %v1561, 1.0
  %v1665 = vadd.f32 %v1563, 1.0
  %v1666 = vadd.f32 %v1565, 1.0
  %v1667 = vadd.f32 %v1567, 1.0
  %v1668 = vadd.f32 %v1569, 1.0
  %v1669 = vadd.f32 %v1571, 1.0
  %v1670 = vadd.f32 %v1573, 1.0
  %v1671 = vadd.f32 %v1575, 1.0
  %v1672 = vadd.f32 %v1577, 1.0
  %v1673 = vadd.f32 %v1579, 1.0
  %v1674 = vadd.f32 %v1581, 1.0
  %v1675 = vadd.f32 %v1583, 1.0
  %v1676 = vadd.f32 %v1585, 1.0
  %v1677 = vadd.f32 %v1587, 1.0
  %v1678 = vadd.f32 %v1589, 1.0
  %v1679 = vadd.f32 %v1591, 1.0
  %v1680 = vadd.f32 %v1593, 1.0
  %v1681 = vadd.f32 %v1595, 1.0
  %v1682 = vadd.f32 %v1597, 1.0
  %v1683 = vadd.f32 %v1599, 1.0
  %v1684 = vadd.f32 %v1601, 1.0
  %v1685 = vadd.f32 %v1603, 1.0
  %v1686 = vadd.f32 %v1605, 1.0
  %v1687 = vadd.f32 %v1607, 1.0
  %v1688 = vadd.f32 %v1609, 1.0
  %v1689 = vadd.f32 %v1611, 1.0
  %v1690 = vadd.f32 %v1613, 1.0
  %v1691 = vadd.f32 %v1615, 1.0
  %v1692 = vadd.f32 %v1617, 1.0
  %v1693 = vadd.f32 %v1619, 1.0
  %v1694 = vadd.f32 %v1621, 1.0
  %v1695 = vadd.f32 %v1623, 1.0
  %v1696 = vadd.f32 %v1625, 1.0
  %v1697 = vadd.f32 %v1627, 1.0
  %v1698 = vadd.f32 %v1629, 1.0
  %v1699 = vadd.f32 %v1631, 1.0
  %v1700 = vadd.f32 %v1633, 1.0
  %v1701 = vadd.f32 %v1635, 1.0
  %v1702 = vadd.f32 %v1637, 1.0
  %v1703 = vadd.f32 %v1639, 1.0
  %v1704 = vrcp.pop %v1640
  %v1705 = vmul.f32 1.0, %v1704
  %v1706 = vrcp.pop %v1641
  %v1707 = vmul.f32 1.0, %v1706
  %v1708 = vrcp.pop %v1642
  %v1709 = vmul.f32 1.0, %v1708
  %v1710 = vrcp.pop %v1643
  %v1711 = vmul.f32 1.0, %v1710
  %v1712 = vrcp.pop %v1644
  %v1713 = vmul.f32 1.0, %v1712
  %v1714 = vrcp.pop %v1645
  %v1715 = vmul.f32 1.0, %v1714
  %v1716 = vrcp.pop %v1646
  %v1717 = vmul.f32 1.0, %v1716
  %v1718 = vrcp.pop %v1647
  %v1719 = vmul.f32 1.0, %v1718
  %v1720 = vrcp.pop %v1648
  %v1721 = vmul.f32 1.0, %v1720
  %v1722 = vrcp.pop %v1649
  %v1723 = vmul.f32 1.0, %v1722
  %v1724 = vrcp.pop %v1650
  %v1725 = vmul.f32 1.0, %v1724
  %v1726 = vrcp.pop %v1651
  %v1727 = vmul.f32 1.0, %v1726
  %v1728 = vrcp.pop %v1652
  %v1729 = vmul.f32 1.0, %v1728
  %v1730 = vrcp.pop %v1653
  %v1731 = vmul.f32 1.0, %v1730
  %v1732 = vrcp.pop %v1654
  %v1733 = vmul.f32 1.0, %v1732
  %v1734 = vrcp.pop %v1655
  %v1735 = vmul.f32 1.0, %v1734
  %v1736 = vrcp.pop %v1656
  %v1737 = vmul.f32 1.0, %v1736
  %v1738 = vrcp.pop %v1657
  %v1739 = vmul.f32 1.0, %v1738
  %v1740 = vrcp.pop %v1658
  %v1741 = vmul.f32 1.0, %v1740
  %v1742 = vrcp.pop %v1659
  %v1743 = vmul.f32 1.0, %v1742
  %v1744 = vrcp.pop %v1660
  %v1745 = vmul.f32 1.0, %v1744
  %v1746 = vrcp.pop %v1661
  %v1747 = vmul.f32 1.0, %v1746
  %v1748 = vrcp.pop %v1662
  %v1749 = vmul.f32 1.0, %v1748
  %v1750 = vrcp.pop %v1663
  %v1751 = vmul.f32 1.0, %v1750
  %v1752 = vrcp.pop %v1664
  %v1753 = vmul.f32 1.0, %v1752
  %v1754 = vrcp.pop %v1665
  %v1755 = vmul.f32 1.0, %v1754
  %v1756 = vrcp.pop %v1666
  %v1757 = vmul.f32 1.0, %v1756
  %v1758 = vrcp.pop %v1667
  %v1759 = vmul.f32 1.0, %v1758
  %v1760 = vrcp.pop %v1668
  %v1761 = vmul.f32 1.0, %v1760
  %v1762 = vrcp.pop %v1669
  %v1763 = vmul.f32 1.0, %v1762
  %v1764 = vrcp.pop %v1670
  %v1765 = vmul.f32 1.0, %v1764
  %v1766 = vrcp.pop %v1671
  %v1767 = vmul.f32 1.0, %v1766
  %v1768 = vrcp.pop %v1672
  %v1769 = vmul.f32 1.0, %v1768
  %v1770 = vrcp.pop %v1673
  %v1771 = vmul.f32 1.0, %v1770
  %v1772 = vrcp.pop %v1674
  %v1773 = vmul.f32 1.0, %v1772
  %v1774 = vrcp.pop %v1675
  %v1775 = vmul.f32 1.0, %v1774
  %v1776 = vrcp.pop %v1676
  %v1777 = vmul.f32 1.0, %v1776
  %v1778 = vrcp.pop %v1677
  %v1779 = vmul.f32 1.0, %v1778
  %v1780 = vrcp.pop %v1678
  %v1781 = vmul.f32 1.0, %v1780
  %v1782 = vrcp.pop %v1679
  %v1783 = vmul.f32 1.0, %v1782
  %v1784 = vrcp.pop %v1680
  %v1785 = vmul.f32 1.0, %v1784
  %v1786 = vrcp.pop %v1681
  %v1787 = vmul.f32 1.0, %v1786
  %v1788 = vrcp.pop %v1682
  %v1789 = vmul.f32 1.0, %v1788
  %v1790 = vrcp.pop %v1683
  %v1791 = vmul.f32 1.0, %v1790
  %v1792 = vrcp.pop %v1684
  %v1793 = vmul.f32 1.0, %v1792
  %v1794 = vrcp.pop %v1685
  %v1795 = vmul.f32 1.0, %v1794
  %v1796 = vrcp.pop %v1686
  %v1797 = vmul.f32 1.0, %v1796
  %v1798 = vrcp.pop %v1687
  %v1799 = vmul.f32 1.0, %v1798
  %v1800 = vrcp.pop %v1688
  %v1801 = vmul.f32 1.0, %v1800
  %v1802 = vrcp.pop %v1689
  %v1803 = vmul.f32 1.0, %v1802
  %v1804 = vrcp.pop %v1690
  %v1805 = vmul.f32 1.0, %v1804
  %v1806 = vrcp.pop %v1691
  %v1807 = vmul.f32 1.0, %v1806
  %v1808 = vrcp.pop %v1692
  %v1809 = vmul.f32 1.0, %v1808
  %v1810 = vrcp.pop %v1693
  %v1811 = vmul.f32 1.0, %v1810
  %v1812 = vrcp.pop %v1694
  %v1813 = vmul.f32 1.0, %v1812
  %v1814 = vrcp.pop %v1695
  %v1815 = vmul.f32 1.0, %v1814
  %v1816 = vrcp.pop %v1696
  %v1817 = vmul.f32 1.0, %v1816
  %v1818 = vrcp.pop %v1697
  %v1819 = vmul.f32 1.0, %v1818
  %v1820 = vrcp.pop %v1698
  %v1821 = vmul.f32 1.0, %v1820
  %v1822 = vrcp.pop %v1699
  %v1823 = vmul.f32 1.0, %v1822
  %v1824 = vrcp.pop %v1700
  %v1825 = vmul.f32 1.0, %v1824
  %v1826 = vrcp.pop %v1701
  %v1827 = vmul.f32 1.0, %v1826
  %v1828 = vrcp.pop %v1702
  %v1829 = vmul.f32 1.0, %v1828
  %v1830 = vrcp.pop %v1703
  %v1831 = vmul.f32 1.0, %v1830
  %1832 = vst [vmem:[%s3] sm:$0xff] %v1705
  %1833 = vst [vmem:[%s3 + $0x8] sm:$0xff] %v1707
  %1834 = vst [vmem:[%s3 + $0x10] sm:$0xff] %v1709
  %1835 = vst [vmem:[%s3 + $0x18] sm:$0xff] %v1711
  %1836 = vst [vmem:[%s3 + $0x20] sm:$0xff] %v1713
  %1837 = vst [vmem:[%s3 + $0x28] sm:$0xff] %v1715
  %1838 = vst [vmem:[%s3 + $0x30] sm:$0xff] %v1717
  %1839 = vst [vmem:[%s3 + $0x38] sm:$0xff] %v1719
  %1840 = vst [vmem:[%s3 + $0x40] sm:$0xff] %v1721
  %1841 = vst [vmem:[%s3 + $0x48] sm:$0xff] %v1723
  %1842 = vst [vmem:[%s3 + $0x50] sm:$0xff] %v1725
  %1843 = vst [vmem:[%s3 + $0x58] sm:$0xff] %v1727
  %1844 = vst [vmem:[%s3 + $0x60] sm:$0xff] %v1729
  %1845 = vst [vmem:[%s3 + $0x68] sm:$0xff] %v1731
  %1846 = vst [vmem:[%s3 + $0x70] sm:$0xff] %v1733
  %1847 = vst [vmem:[%s3 + $0x78] sm:$0xff] %v1735
  %1848 = vst [vmem:[%s3 + $0x80] sm:$0xff] %v1737
  %1849 = vst [vmem:[%s3 + $0x88] sm:$0xff] %v1739
  %1850 = vst [vmem:[%s3 + $0x90] sm:$0xff] %v1741
  %1851 = vst [vmem:[%s3 + $0x98] sm:$0xff] %v1743
  %1852 = vst [vmem:[%s3 + $0xa0] sm:$0xff] %v1745
  %1853 = vst [vmem:[%s3 + $0xa8] sm:$0xff] %v1747
  %1854 = vst [vmem:[%s3 + $0xb0] sm:$0xff] %v1749
  %1855 = vst [vmem:[%s3 + $0xb8] sm:$0xff] %v1751
  %1856 = vst [vmem:[%s3 + $0xc0] sm:$0xff] %v1753
  %1857 = vst [vmem:[%s3 + $0xc8] sm:$0xff] %v1755
  %1858 = vst [vmem:[%s3 + $0xd0] sm:$0xff] %v1757
  %1859 = vst [vmem:[%s3 + $0xd8] sm:$0xff] %v1759
  %1860 = vst [vmem:[%s3 + $0xe0] sm:$0xff] %v1761
  %1861 = vst [vmem:[%s3 + $0xe8] sm:$0xff] %v1763
  %1862 = vst [vmem:[%s3 + $0xf0] sm:$0xff] %v1765
  %1863 = vst [vmem:[%s3 + $0xf8] sm:$0xff] %v1767
  %1864 = vst [vmem:[%s3 + $0x100] sm:$0xff] %v1769
  %1865 = vst [vmem:[%s3 + $0x108] sm:$0xff] %v1771
  %1866 = vst [vmem:[%s3 + $0x110] sm:$0xff] %v1773
  %1867 = vst [vmem:[%s3 + $0x118] sm:$0xff] %v1775
  %1868 = vst [vmem:[%s3 + $0x120] sm:$0xff] %v1777
  %1869 = vst [vmem:[%s3 + $0x128] sm:$0xff] %v1779
  %1870 = vst [vmem:[%s3 + $0x130] sm:$0xff] %v1781
  %1871 = vst [vmem:[%s3 + $0x138] sm:$0xff] %v1783
  %1872 = vst [vmem:[%s3 + $0x140] sm:$0xff] %v1785
  %1873 = vst [vmem:[%s3 + $0x148] sm:$0xff] %v1787
  %1874 = vst [vmem:[%s3 + $0x150] sm:$0xff] %v1789
  %1875 = vst [vmem:[%s3 + $0x158] sm:$0xff] %v1791
  %1876 = vst [vmem:[%s3 + $0x160] sm:$0xff] %v1793
  %1877 = vst [vmem:[%s3 + $0x168] sm:$0xff] %v1795
  %1878 = vst [vmem:[%s3 + $0x170] sm:$0xff] %v1797
  %1879 = vst [vmem:[%s3 + $0x178] sm:$0xff] %v1799
  %1880 = vst [vmem:[%s3 + $0x180] sm:$0xff] %v1801
  %1881 = vst [vmem:[%s3 + $0x188] sm:$0xff] %v1803
  %1882 = vst [vmem:[%s3 + $0x190] sm:$0xff] %v1805
  %1883 = vst [vmem:[%s3 + $0x198] sm:$0xff] %v1807
  %1884 = vst [vmem:[%s3 + $0x1a0] sm:$0xff] %v1809
  %1885 = vst [vmem:[%s3 + $0x1a8] sm:$0xff] %v1811
  %1886 = vst [vmem:[%s3 + $0x1b0] sm:$0xff] %v1813
  %1887 = vst [vmem:[%s3 + $0x1b8] sm:$0xff] %v1815
  %1888 = vst [vmem:[%s3 + $0x1c0] sm:$0xff] %v1817
  %1889 = vst [vmem:[%s3 + $0x1c8] sm:$0xff] %v1819
  %1890 = vst [vmem:[%s3 + $0x1d0] sm:$0xff] %v1821
  %1891 = vst [vmem:[%s3 + $0x1d8] sm:$0xff] %v1823
  %1892 = vst [vmem:[%s3 + $0x1e0] sm:$0xff] %v1825
  %1893 = vst [vmem:[%s3 + $0x1e8] sm:$0xff] %v1827
  %1894 = vst [vmem:[%s3 + $0x1f0] sm:$0xff] %v1829
  %1895 = vst [vmem:[%s3 + $0x1f8] sm:$0xff] %v1831
  // Predicated region
  $region14: #{vae_forward.9} parent=0 // pred_check
    _
  $region15: #{vae_forward.9} parent=0 // pred_check_branch
    %1897 = sbr.rel (0) target = $region17
  $region16: #{vae_forward.9} parent=0 // pred_region
    _
  $region17: #{vae_forward.9} parent=0 // pred_fallthru
    _
  // Predicated region
  $region18: #{vae_forward.9} parent=0 // pred_check
    _
  $region19: #{vae_forward.9} parent=0 // pred_check_branch
    %1899 = sbr.rel (0) target = $region21
  $region20: #{vae_forward.9} parent=0 // pred_region
    _
  $region21: #{vae_forward.9} parent=0 // pred_fallthru
    _

</llo_original>
